<compile_context>
chip_gen: v7x
topology: tpu7x:2x2x1
jax: 0.10.0
libtpu: 0.0.40
codegen_flags: <defaults>
</compile_context>

<pallas_src>
import jax
import jax.numpy as jnp
from jax.experimental import pallas as pl
from jax.experimental.pallas import tpu as pltpu


def affinity_kernel(h_ref, m_ref, w_ref, b_ref, score_ref, acc_ref, cnt_ref):
    # h_ref:     (tb, ts, H)  hidden states (bf16)
    # m_ref:     (tb, 2, ts)  stacked mention masks (same dtype as h, {0,1})
    # w_ref:     (2, H) f32   linear weight, row 0 -> mention_a, row 1 -> mention_b
    # b_ref:     (1, 1) f32   linear bias (SMEM)
    # score_ref: (tb, 1) f32  sigmoid affinity score
    # acc_ref:   (tb, 2, H) f32 scratch -- running masked sums of h
    # cnt_ref:   (tb, 2)    f32 scratch -- running mask token counts
    js = pl.program_id(1)

    @pl.when(js == 0)
    def _init():
        acc_ref[...] = jnp.zeros_like(acc_ref)
        cnt_ref[...] = jnp.zeros_like(cnt_ref)

    m = m_ref[...]
    h = h_ref[...]
    # Masked sum over the sequence tile on the MXU:
    # (tb, 2, ts) @ (tb, ts, H) -> (tb, 2, H), f32 accumulation.
    acc_ref[...] += jnp.einsum("bks,bsh->bkh", m, h,
                               preferred_element_type=jnp.float32)
    # Token counts for the mean (tiny lane reduction).
    cnt_ref[...] += jnp.sum(m.astype(jnp.float32), axis=2)

    @pl.when(js == pl.num_programs(1) - 1)
    def _finalize():
        cnt = cnt_ref[...]                                 # (tb, 2)
        # NOTE: like the PyTorch module, an all-zero mention mask yields NaN.
        mention = acc_ref[...] / cnt[:, :, None]           # (tb, 2, H) f32
        w = w_ref[...]                                     # (2, H) f32
        part = jnp.sum(mention * w[None, :, :], axis=2)    # (tb, 2)
        logit = jnp.sum(part, axis=1, keepdims=True) + b_ref[0, 0]   # (tb, 1)
        score_ref[...] = jax.nn.sigmoid(logit).astype(score_ref.dtype)


def _pick_block_b(batch):
    # Output block constraint: second-to-last block dim must be a multiple of 8
    # or equal to the full dim.
    return 8 if batch % 8 == 0 else batch


def _pick_block_s(seq, block_b, hidden, itemsize, budget_bytes=8 * 1024 * 1024):
    # Largest sequence tile that divides S, is a multiple of 128, and keeps the
    # h block under ~8 MiB (safe for double-buffering on v7x's smaller VMEM).
    candidates = [ts for ts in range(128, seq + 1, 128) if seq % ts == 0]
    best = None
    for ts in candidates:
        if block_b * ts * hidden * itemsize <= budget_bytes:
            best = ts
    if best is not None:
        return best
    if candidates:
        return candidates[0]
    return seq


def affinity_head(outputs, mention_mask_a, mention_mask_b, weight, bias,
                  *, compute_dtype=jnp.bfloat16, block_b=None, block_s=None):
    """Masked mean-pool two mentions, Linear(2H -> 1), sigmoid.

    outputs: (B, S, H); masks: (B, S); weight: (1, 2H); bias: (1,).
    Returns (B, 1) f32 affinity scores.
    """
    B, S, H = outputs.shape
    h = outputs.astype(compute_dtype)
    # Stacked masks with S on the lane axis; {0,1} values are exact in bf16.
    m = jnp.stack([mention_mask_a, mention_mask_b], axis=1).astype(compute_dtype)
    w2 = weight.reshape(2, H).astype(jnp.float32)      # [wa; wb]
    b2 = bias.reshape(1, 1).astype(jnp.float32)

    if block_b is None:
        block_b = _pick_block_b(B)
    if B % block_b != 0:
        block_b = B
    if block_s is None:
        block_s = _pick_block_s(S, block_b, H, h.dtype.itemsize)
    if S % block_s != 0:
        block_s = S

    grid = (B // block_b, S // block_s)

    cost = pl.CostEstimate(
        flops=2 * B * 2 * S * H + 2 * B * 2 * H,
        transcendentals=B,
        bytes_accessed=(h.size * h.dtype.itemsize + m.size * m.dtype.itemsize
                        + w2.size * 4 + B * 4 + 4),
    )

    grid_spec = pltpu.PrefetchScalarGridSpec(
        num_scalar_prefetch=0,
        grid=grid,
        in_specs=[
            pl.BlockSpec((block_b, block_s, H), lambda ib, js: (ib, js, 0)),
            pl.BlockSpec((block_b, 2, block_s), lambda ib, js: (ib, 0, js)),
            pl.BlockSpec((2, H), lambda ib, js: (0, 0)),
            pl.BlockSpec((1, 1), lambda ib, js: (0, 0),
                         memory_space=pltpu.MemorySpace.SMEM),
        ],
        out_specs=pl.BlockSpec((block_b, 1), lambda ib, js: (ib, 0)),
        scratch_shapes=[
            pltpu.VMEM((block_b, 2, H), jnp.float32),
            pltpu.VMEM((block_b, 2), jnp.float32),
        ],
    )

    return pl.pallas_call(
        affinity_kernel,
        out_shape=jax.ShapeDtypeStruct((B, 1), jnp.float32),
        grid_spec=grid_spec,
        compiler_params=pltpu.CompilerParams(
            dimension_semantics=("parallel", "arbitrary")),
        cost_estimate=cost,
    )(h, m, w2, b2)


def bert_stub(x, word_emb, type_emb):
    # TODO(synk): full BERT encoder (12-layer transformer) is an external
    # submodule with no weights provided; a deterministic embedding stand-in
    # is used here in plain JAX to produce the (B, S, H) hidden states.
    input_ids = x[:, 0, :]
    token_type_ids = x[:, 1, :]
    attention_mask = x[:, 2, :]
    h = word_emb[input_ids] + type_emb[token_type_ids]
    h = h * attention_mask[:, :, None].astype(h.dtype)
    return h


def forward(x, mention_mask_a, mention_mask_b, params, **kwargs):
    outputs = bert_stub(x, params["word_emb"], params["type_emb"])
    return affinity_head(outputs, mention_mask_a, mention_mask_b,
                         params["linear_w"], params["linear_b"], **kwargs)


if __name__ == "__main__":
    B, S, H, V = 16, 256, 768, 512   # H matches the module's hard-coded 768

    key = jax.random.PRNGKey(0)
    k1, k2, k3, k4 = jax.random.split(key, 4)

    params = {
        "word_emb": jax.random.normal(k1, (V, H), jnp.float32) * 0.02,
        "type_emb": jax.random.normal(k2, (2, H), jnp.float32) * 0.02,
        "linear_w": jax.random.normal(k3, (1, 2 * H), jnp.float32) * 0.02,
        "linear_b": jnp.zeros((1,), jnp.float32),
    }

    input_ids = jax.random.randint(k4, (B, S), 0, V, dtype=jnp.int32)
    token_type_ids = jnp.zeros((B, S), jnp.int32)
    attention_mask = jnp.ones((B, S), jnp.int32)
    x = jnp.stack([input_ids, token_type_ids, attention_mask], axis=1)  # (B, 3, S)

    pos = jnp.arange(S)[None, :]
    starts_a = (jnp.arange(B) % 7 + 1)[:, None]
    starts_b = (jnp.arange(B) % 11 + 32)[:, None]
    mention_mask_a = ((pos >= starts_a) & (pos < starts_a + 3)).astype(jnp.float32)
    mention_mask_b = ((pos >= starts_b) & (pos < starts_b + 5)).astype(jnp.float32)

    # block_s=128 exercises the multi-step sequence-reduction accumulation.
    score = forward(x, mention_mask_a, mention_mask_b, params, block_s=128)
    score = jax.block_until_ready(score)

    # Pure-JAX reference of the module's post-BERT forward, using the same
    # bf16-quantized hidden states the kernel consumes.
    outs = bert_stub(x, params["word_emb"], params["type_emb"])
    h_q = outs.astype(jnp.bfloat16).astype(jnp.float32)
    men_a = (jnp.sum(h_q * mention_mask_a[:, :, None], 1)
             / jnp.sum(mention_mask_a, 1)[:, None])
    men_b = (jnp.sum(h_q * mention_mask_b[:, :, None], 1)
             / jnp.sum(mention_mask_b, 1)[:, None])
    ref = jax.nn.sigmoid(
        jnp.concatenate([men_a, men_b], 1) @ params["linear_w"].T
        + params["linear_b"])

    assert score.shape == (B, 1)
    assert jnp.allclose(score, ref, atol=1e-4, rtol=1e-4), (score, ref)

    print("KERNEL_OK")
</pallas_src>

<mosaic_0001>
module attributes {stable_mosaic.version = 11 : i64} {
  func.func @affinity_kernel(%arg0: i32, %arg1: i32, %arg2: memref<8x128x768xbf16, #tpu.memory_space<vmem>>, %arg3: memref<8x2x128xbf16, #tpu.memory_space<vmem>>, %arg4: memref<2x768xf32, #tpu.memory_space<vmem>>, %arg5: memref<1x1xf32, #tpu.memory_space<smem>>, %arg6: memref<8x1xf32, #tpu.memory_space<vmem>>, %arg7: memref<8x2x768xf32, #tpu.memory_space<vmem>>, %arg8: memref<8x2xf32, #tpu.memory_space<vmem>>) attributes {dimension_semantics = [#tpu.dimension_semantics<parallel>, #tpu.dimension_semantics<arbitrary>], iteration_bounds = array<i64: 2, 2>, scalar_prefetch = 0 : i64, scratch_operands = 2 : i64, tpu.core_type = #tpu.core_type<tc>, window_params = [{transform_indices = @transform_0, window_bounds = array<i64: 8, 128, 768>}, {transform_indices = @transform_1, window_bounds = array<i64: 8, 2, 128>}, {pipeline_mode = #tpu.pipeline_mode<synchronous>, transform_indices = @transform_2, window_bounds = array<i64: 2, 768>}, {transform_indices = @transform_3, window_bounds = array<i64: 1, 1>}, {transform_indices = @transform_4, window_bounds = array<i64: 8, 1>}]} {
    %c0_i32 = arith.constant 0 : i32
    %0 = arith.cmpi eq, %arg1, %c0_i32 : i32
    %1 = arith.extui %0 : i1 to i32
    %c0_i32_0 = arith.constant 0 : i32
    %2 = arith.cmpi ne, %1, %c0_i32_0 : i32
    scf.if %2 {
      %cst_18 = arith.constant 0.000000e+00 : f32
      %17 = vector.broadcast %cst_18 : f32 to vector<8x2x768xf32>
      %c0_19 = arith.constant 0 : index
      %c0_20 = arith.constant 0 : index
      %c0_21 = arith.constant 0 : index
      %18 = vector.load %arg7[%c0_19, %c0_20, %c0_21] : memref<8x2x768xf32, #tpu.memory_space<vmem>>, vector<8x2x768xf32>
      tpu.vector_store %arg7[%c0_19, %c0_20, %c0_21], %17 {strides = array<i32>} : memref<8x2x768xf32, #tpu.memory_space<vmem>>, vector<8x2x768xf32>,
      %cst_22 = arith.constant 0.000000e+00 : f32
      %19 = vector.broadcast %cst_22 : f32 to vector<8x2xf32>
      %c0_23 = arith.constant 0 : index
      %c0_24 = arith.constant 0 : index
      %20 = vector.load %arg8[%c0_23, %c0_24] : memref<8x2xf32, #tpu.memory_space<vmem>>, vector<8x2xf32>
      tpu.vector_store %arg8[%c0_23, %c0_24], %19 {strides = array<i32>} : memref<8x2xf32, #tpu.memory_space<vmem>>, vector<8x2xf32>,
    } else {
    }
    %c0 = arith.constant 0 : index
    %c0_1 = arith.constant 0 : index
    %c0_2 = arith.constant 0 : index
    %3 = vector.load %arg3[%c0, %c0_1, %c0_2] : memref<8x2x128xbf16, #tpu.memory_space<vmem>>, vector<8x2x128xbf16>
    %c0_3 = arith.constant 0 : index
    %c0_4 = arith.constant 0 : index
    %c0_5 = arith.constant 0 : index
    %4 = vector.load %arg2[%c0_3, %c0_4, %c0_5] : memref<8x128x768xbf16, #tpu.memory_space<vmem>>, vector<8x128x768xbf16>
    %c0_6 = arith.constant 0 : index
    %c0_7 = arith.constant 0 : index
    %c0_8 = arith.constant 0 : index
    %5 = vector.load %arg7[%c0_6, %c0_7, %c0_8] : memref<8x2x768xf32, #tpu.memory_space<vmem>>, vector<8x2x768xf32>
    "tpu.trace_start"() <{level = 10 : i32, message = "bks,bsh->bkh"}> : () -> ()
    %cst = arith.constant dense<0.000000e+00> : vector<8x2x768xf32>
    %6 = tpu.matmul %3, %4, %cst {dimension_numbers = #tpu.dot_dimension_numbers<[2], [1], [1], [2], [0, 0, 0, 1, 1, 2], [0], [0]>} : vector<8x2x128xbf16>, vector<8x128x768xbf16>, vector<8x2x768xf32> -> vector<8x2x768xf32>
    "tpu.trace_stop"() : () -> ()
    %7 = arith.addf %5, %6 : vector<8x2x768xf32>
    %c0_9 = arith.constant 0 : index
    %c0_10 = arith.constant 0 : index
    %c0_11 = arith.constant 0 : index
    %8 = vector.load %arg7[%c0_9, %c0_10, %c0_11] : memref<8x2x768xf32, #tpu.memory_space<vmem>>, vector<8x2x768xf32>
    tpu.vector_store %arg7[%c0_9, %c0_10, %c0_11], %7 {strides = array<i32>} : memref<8x2x768xf32, #tpu.memory_space<vmem>>, vector<8x2x768xf32>,
    %c0_12 = arith.constant 0 : index
    %c0_13 = arith.constant 0 : index
    %9 = vector.load %arg8[%c0_12, %c0_13] : memref<8x2xf32, #tpu.memory_space<vmem>>, vector<8x2xf32>
    %10 = arith.extf %3 : vector<8x2x128xbf16> to vector<8x2x128xf32>
    %cst_14 = arith.constant dense<0.000000e+00> : vector<8x2xf32>
    %11 = vector.multi_reduction <add>, %10, %cst_14 [2] : vector<8x2x128xf32> to vector<8x2xf32>
    %12 = arith.addf %9, %11 : vector<8x2xf32>
    %c0_15 = arith.constant 0 : index
    %c0_16 = arith.constant 0 : index
    %13 = vector.load %arg8[%c0_15, %c0_16] : memref<8x2xf32, #tpu.memory_space<vmem>>, vector<8x2xf32>
    tpu.vector_store %arg8[%c0_15, %c0_16], %12 {strides = array<i32>} : memref<8x2xf32, #tpu.memory_space<vmem>>, vector<8x2xf32>,
    %c1_i32 = arith.constant 1 : i32
    %14 = arith.cmpi eq, %arg1, %c1_i32 : i32
    %15 = arith.extui %14 : i1 to i32
    %c0_i32_17 = arith.constant 0 : i32
    %16 = arith.cmpi ne, %15, %c0_i32_17 : i32
    scf.if %16 {
      %c0_18 = arith.constant 0 : index
      %c0_19 = arith.constant 0 : index
      %17 = vector.load %arg8[%c0_18, %c0_19] : memref<8x2xf32, #tpu.memory_space<vmem>>, vector<8x2xf32>
      %c0_20 = arith.constant 0 : index
      %c0_21 = arith.constant 0 : index
      %c0_22 = arith.constant 0 : index
      %18 = vector.load %arg7[%c0_20, %c0_21, %c0_22] : memref<8x2x768xf32, #tpu.memory_space<vmem>>, vector<8x2x768xf32>
      %19 = vector.shape_cast %17 : vector<8x2xf32> to vector<8x2x1xf32>
      %20 = vector.broadcast %19 : vector<8x2x1xf32> to vector<8x2x768xf32>
      %21 = arith.divf %18, %20 : vector<8x2x768xf32>
      %c0_23 = arith.constant 0 : index
      %c0_24 = arith.constant 0 : index
      %22 = vector.load %arg4[%c0_23, %c0_24] : memref<2x768xf32, #tpu.memory_space<vmem>>, vector<2x768xf32>
      %23 = vector.shape_cast %22 : vector<2x768xf32> to vector<1x2x768xf32>
      %24 = vector.broadcast %23 : vector<1x2x768xf32> to vector<8x2x768xf32>
      %25 = arith.mulf %21, %24 : vector<8x2x768xf32>
      %cst_25 = arith.constant dense<0.000000e+00> : vector<8x2xf32>
      %26 = vector.multi_reduction <add>, %25, %cst_25 [2] : vector<8x2x768xf32> to vector<8x2xf32>
      %cst_26 = arith.constant dense<0.000000e+00> : vector<8xf32>
      %27 = vector.multi_reduction <add>, %26, %cst_26 [1] : vector<8x2xf32> to vector<8xf32>
      %28 = vector.shape_cast %27 : vector<8xf32> to vector<8x1xf32>
      %c0_27 = arith.constant 0 : index
      %c0_28 = arith.constant 0 : index
      %29 = memref.load %arg5[%c0_27, %c0_28] : memref<1x1xf32, #tpu.memory_space<smem>>
      %30 = vector.broadcast %29 : f32 to vector<8x1xf32>
      %31 = arith.addf %28, %30 : vector<8x1xf32>
      %32 = arith.negf %31 : vector<8x1xf32>
      %33 = math.exp %32 : vector<8x1xf32>
      %cst_29 = arith.constant 1.000000e+00 : f32
      %34 = vector.broadcast %cst_29 : f32 to vector<8x1xf32>
      %35 = arith.addf %34, %33 : vector<8x1xf32>
      %36 = arith.divf %34, %35 : vector<8x1xf32>
      %c0_30 = arith.constant 0 : index
      %c0_31 = arith.constant 0 : index
      %37 = vector.load %arg6[%c0_30, %c0_31] : memref<8x1xf32, #tpu.memory_space<vmem>>, vector<8x1xf32>
      tpu.vector_store %arg6[%c0_30, %c0_31], %36 {strides = array<i32>} : memref<8x1xf32, #tpu.memory_space<vmem>>, vector<8x1xf32>,
    } else {
    }
    return
  }
  func.func @transform_0(%arg0: i32, %arg1: i32) -> (i32, i32, i32) {
    %c0_i32 = arith.constant 0 : i32
    %c0_i32_0 = arith.constant 0 : i32
    return %arg0, %arg1, %c0_i32 : i32, i32, i32
  }
  func.func @transform_1(%arg0: i32, %arg1: i32) -> (i32, i32, i32) {
    %c0_i32 = arith.constant 0 : i32
    %c0_i32_0 = arith.constant 0 : i32
    return %arg0, %c0_i32, %arg1 : i32, i32, i32
  }
  func.func @transform_2(%arg0: i32, %arg1: i32) -> (i32, i32) {
    %c0_i32 = arith.constant 0 : i32
    %c0_i32_0 = arith.constant 0 : i32
    %c0_i32_1 = arith.constant 0 : i32
    return %c0_i32, %c0_i32_0 : i32, i32
  }
  func.func @transform_3(%arg0: i32, %arg1: i32) -> (i32, i32) {
    %c0_i32 = arith.constant 0 : i32
    %c0_i32_0 = arith.constant 0 : i32
    %c0_i32_1 = arith.constant 0 : i32
    return %c0_i32, %c0_i32_0 : i32, i32
  }
  func.func @transform_4(%arg0: i32, %arg1: i32) -> (i32, i32) {
    %c0_i32 = arith.constant 0 : i32
    %c0_i32_0 = arith.constant 0 : i32
    return %arg0, %c0_i32 : i32, i32
  }
}

</mosaic_0001>

<llo_original>
// kernel: tpu_custom_call.1
$region0: #{tpu_custom_call.1}
  #allocation0 [shape = 'u32[]', space=smem, size = 0x4, offset = 0x4, fixed_abs, tag = 'smem constant byte address 0x4 - core index']
  #allocation1 [shape = 'u32[144,128]{1,0:T(1,128)}', space=vmem, size = 0x12000, scoped, tag = 'internal scratch']
  #allocation2 [shape = 'f32[8,2,768]{2,1,0:T(2,128)}', space=vmem, size = 0xc000, scoped, tag = 'scratch operand']
  #allocation3 [shape = 'f32[8,2]{1,0:T(8,128)}', space=vmem, size = 0x1000, scoped, tag = 'scratch operand']
  #allocation4 [shape = 'f32[1,1]{1,0:T(1,128)S(6)}', space=smem, size = 0x200, scoped, tag = 'scoped memory for tpu_custom_call.1']
  #allocation10 [shape = 's32[]', space=sflag, size = 0x4, offset = 0, fixed_abs, tag = 'sflag constant byte address 0x0 - dummy sync flag']
  %s0 = inlined_call_operand.hbm [shape: bf16[16,256,768], index: 0, kind: input, shape index: {}]
  %s1 = inlined_call_operand.hbm [shape: bf16[16,2,256], index: 1, kind: input, shape index: {}]
  %s2 = inlined_call_operand.hbm [shape: f32[2,768], index: 2, kind: input, shape index: {}]
  %s3 = inlined_call_operand.<no memory space> [shape: f32[1,1], index: 3, kind: input, shape index: {}]
  %s4 = inlined_call_operand.vmem [shape: f32[16,1], index: 4, kind: output, shape index: {}]
  %s5 = sld [smem:[#allocation0]]
  $region69: #{tpu_custom_call.1} parent=0
    _
  %s7 = ssub.s32 1, %s5
  %s8 = scalar_select 0, %s7, %s5
  %9 = sst [smem:[#allocation4]] %s3
  $region1: #{tpu_custom_call.1} parent=0
    #allocation5 [shape = 'u8[3145728]{0}', space=vmem, size = 0x300000, scoped, tag = 'input window, operand 0']
    #allocation6 [shape = 's32[2]{0}', space=sflag, size = 0x8, scoped, tag = 'scoped memory for tpu_custom_call.1']
    #allocation7 [shape = 'u8[8192]{0}', space=vmem, size = 0x2000, scoped, tag = 'input window, operand 1']
    #allocation8 [shape = 's32[2]{0}', space=sflag, size = 0x8, scoped, tag = 'scoped memory for tpu_custom_call.1']
    #allocation9 [shape = 'u8[6144]{0}', space=vmem, size = 0x1800, scoped, tag = 'input window, operand 2, single buffered']
    %10 = vsyncpa [#allocation6], 0
    %s11 = scalar_lea.sflag [#allocation6], 1
    %12 = vsyncpa %s11, 0
    %13 = vsyncpa [#allocation8], 0
    %s14 = scalar_lea.sflag [#allocation8], 1
    %15 = vsyncpa %s14, 0
    loop: start=0, step=1, limit=6
    $region2: #{tpu_custom_call.1} parent=1 // loop_pre_header
      _
    $region3: #{tpu_custom_call.1} parent=1 // loop_header
      %s17 = sphi 0, %s21
      %p18 = scmp.ge.s32.totalorder %s17, 6
      %s24 = sphi 0, %s36
      %s25 = sphi 0, %s32
      %s26 = sphi 0, %s24
      %s27 = sphi 0, %s25
      %s28 = sphi 0, %s26
      %s29 = sphi 0, %s27
      %s41 = sphi 0, %s43
      %s44 = sphi 0, %s41
      %s45 = sphi 0, %s44
      %s61 = sphi 0, %s45
      %s69 = sphi 0, %s71
      %s72 = sphi 0, %s69
      %s73 = sphi 0, %s72
      %s89 = sphi 0, %s73
      %s93 = sphi 0, %s93
      %s95 = sphi 0, %s93
      %s96 = sphi 0, %s95
      %s110 = sphi 0, %s96
      %s114 = sphi 0, %s114
      %s116 = sphi 0, %s114
      %s117 = sphi 0, %s116
      %s131 = sphi 0, %s117
      %s137 = sphi 0, %s139
      %s140 = sphi 0, %s137
      %s141 = sphi 0, %s140
      %s157 = sphi 0, %s141
    $region4: #{tpu_custom_call.1} parent=1 // loop_header_branch
      %20 = sbr.rel (%p18) target = $region8
    $region5: #{tpu_custom_call.1} parent=1 // loop_body
      %s22 = ssub.s32 %s17, 1
      %s23 = ssub.s32 %s17, 2
      %s30 = sadd.s32 1, %s25
      %p31 = scmp.ge.s32.totalorder %s30, 2
      %s32 = scalar_select %p31, 0, %s30
      %s33 = sadd.s32 1, %s24
      %s34 = scalar_select %p31, %s33, %s24
      %p35 = scmp.ge.s32.totalorder %s34, 2
      %s36 = scalar_select %p35, 0, %s34
      %s37 = ssub.s32 %s24, %s36
      %s38 = ssub.s32 %s25, %s32
      %s39 = sor.u32 %s37, %s38
      %p40 = scmp.eq.s32.totalorder %s39, 0
      %s42 = sadd.s32 %s41, 1
      %s43 = scalar_select %p40, %s41, %s42
      %p46 = pneg %p40
      %p47 = scmp.eq.s32.totalorder %s17, 3
      %p48 = por %p46, %p47
      %p49 = scmp.ne.s32.totalorder %s41, %s44
      %p50 = scmp.eq.s32.totalorder %s17, 0
      %p51 = por %p49, %p50
      %p52 = scmp.ne.s32.totalorder %s41, %s44
      %p53 = scmp.eq.s32.totalorder %s22, 3
      %p54 = por %p52, %p53
      %p55 = scmp.ne.s32.totalorder %s44, %s45
      %p56 = scmp.eq.s32.totalorder %s22, 0
      %p57 = por %p55, %p56
      %p58 = scmp.ne.s32.totalorder %s44, %s45
      %p59 = scmp.eq.s32.totalorder %s23, 3
      %p60 = por %p58, %p59
      %p62 = scmp.ne.s32.totalorder %s45, %s61
      %p63 = scmp.eq.s32.totalorder %s23, 0
      %p64 = por %p62, %p63
      %s65 = ssub.s32 %s24, %s36
      %s66 = ssub.s32 %s25, %s32
      %s67 = sor.u32 %s65, %s66
      %p68 = scmp.eq.s32.totalorder %s67, 0
      %s70 = sadd.s32 %s69, 1
      %s71 = scalar_select %p68, %s69, %s70
      %p74 = pneg %p68
      %p75 = scmp.eq.s32.totalorder %s17, 3
      %p76 = por %p74, %p75
      %p77 = scmp.ne.s32.totalorder %s69, %s72
      %p78 = scmp.eq.s32.totalorder %s17, 0
      %p79 = por %p77, %p78
      %p80 = scmp.ne.s32.totalorder %s69, %s72
      %p81 = scmp.eq.s32.totalorder %s22, 3
      %p82 = por %p80, %p81
      %p83 = scmp.ne.s32.totalorder %s72, %s73
      %p84 = scmp.eq.s32.totalorder %s22, 0
      %p85 = por %p83, %p84
      %p86 = scmp.ne.s32.totalorder %s72, %s73
      %p87 = scmp.eq.s32.totalorder %s23, 3
      %p88 = por %p86, %p87
      %p90 = scmp.ne.s32.totalorder %s73, %s89
      %p91 = scmp.eq.s32.totalorder %s23, 0
      %p92 = por %p90, %p91
      %s94 = sadd.s32 %s93, 1
      %p97 = scmp.eq.s32.totalorder %s17, 3
      %p98 = scmp.ne.s32.totalorder %s93, %s95
      %p99 = scmp.eq.s32.totalorder %s17, 0
      %p100 = por %p98, %p99
      %p101 = scmp.ne.s32.totalorder %s93, %s95
      %p102 = scmp.eq.s32.totalorder %s22, 3
      %p103 = por %p101, %p102
      %p104 = scmp.ne.s32.totalorder %s95, %s96
      %p105 = scmp.eq.s32.totalorder %s22, 0
      %p106 = por %p104, %p105
      %p107 = scmp.ne.s32.totalorder %s95, %s96
      %p108 = scmp.eq.s32.totalorder %s23, 3
      %p109 = por %p107, %p108
      %p111 = scmp.ne.s32.totalorder %s96, %s110
      %p112 = scmp.eq.s32.totalorder %s23, 0
      %p113 = por %p111, %p112
      %s115 = sadd.s32 %s114, 1
      %p118 = scmp.eq.s32.totalorder %s17, 3
      %p119 = scmp.ne.s32.totalorder %s114, %s116
      %p120 = scmp.eq.s32.totalorder %s17, 0
      %p121 = por %p119, %p120
      %p122 = scmp.ne.s32.totalorder %s114, %s116
      %p123 = scmp.eq.s32.totalorder %s22, 3
      %p124 = por %p122, %p123
      %p125 = scmp.ne.s32.totalorder %s116, %s117
      %p126 = scmp.eq.s32.totalorder %s22, 0
      %p127 = por %p125, %p126
      %p128 = scmp.ne.s32.totalorder %s116, %s117
      %p129 = scmp.eq.s32.totalorder %s23, 3
      %p130 = por %p128, %p129
      %p132 = scmp.ne.s32.totalorder %s117, %s131
      %p133 = scmp.eq.s32.totalorder %s23, 0
      %p134 = por %p132, %p133
      %s135 = ssub.s32 %s24, %s36
      %p136 = scmp.eq.s32.totalorder %s135, 0
      %s138 = sadd.s32 %s137, 1
      %s139 = scalar_select %p136, %s137, %s138
      %p142 = pneg %p136
      %p143 = scmp.eq.s32.totalorder %s17, 3
      %p144 = por %p142, %p143
      %p145 = scmp.ne.s32.totalorder %s137, %s140
      %p146 = scmp.eq.s32.totalorder %s17, 0
      %p147 = por %p145, %p146
      %p148 = scmp.ne.s32.totalorder %s137, %s140
      %p149 = scmp.eq.s32.totalorder %s22, 3
      %p150 = por %p148, %p149
      %p151 = scmp.ne.s32.totalorder %s140, %s141
      %p152 = scmp.eq.s32.totalorder %s22, 0
      %p153 = por %p151, %p152
      %p154 = scmp.ne.s32.totalorder %s140, %s141
      %p155 = scmp.eq.s32.totalorder %s23, 3
      %p156 = por %p154, %p155
      %p158 = scmp.ne.s32.totalorder %s141, %s157
      %p159 = scmp.eq.s32.totalorder %s23, 0
      %p160 = por %p158, %p159
      %p161 = scmp.le.s32.totalorder 1, %s17
      %p162 = scmp.lt.s32.totalorder %s17, 5
      %p163 = pnand %p161, %p162
      %p164 = pneg %p163
      // Predicated region
      $region9: #{tpu_custom_call.1} parent=5 // pred_check
        _
      $region10: #{tpu_custom_call.1} parent=5 // pred_check_branch
        %166 = sbr.rel (%p163) target = $region12
      $region11: #{tpu_custom_call.1} parent=5 // pred_region
        %s167 = ssub.s32 %s17, 1
        // Predicated region
        $region13: #{tpu_custom_call.1} parent=11 // pred_check
          %p168 = pneg %p106
        $region14: #{tpu_custom_call.1} parent=11 // pred_check_branch
          %170 = sbr.rel (%p168) target = $region16
        $region15: #{tpu_custom_call.1} parent=11 // pred_region
          %s172 = ssub.s32 192, 192
          %173 = vsyncadd [#allocation8], %s172
          %s175 = sshll.u32 [#allocation9], 4
          %s176 = int_to_ptr.vmem [resolvable:$true] %s175
          %178 = dma.hbm_to_vmem [thread:$0]  %s2, 192, %s176, [#allocation8]
        $region16: #{tpu_custom_call.1} parent=11 // pred_fallthru
          _
        // Predicated region
        $region17: #{tpu_custom_call.1} parent=11 // pred_check
          %p179 = pneg %p127
        $region18: #{tpu_custom_call.1} parent=11 // pred_check_branch
          %181 = sbr.rel (%p179) target = $region20
        $region19: #{tpu_custom_call.1} parent=11 // pred_region
          _
        $region20: #{tpu_custom_call.1} parent=11 // pred_fallthru
          _
      $region12: #{tpu_custom_call.1} parent=5 // pred_fallthru
        _
      %p182 = scmp.lt.s32.totalorder %s17, 4
      // Predicated region
      $region21: #{tpu_custom_call.1} parent=5 // pred_check
        %p183 = pneg %p182
      $region22: #{tpu_custom_call.1} parent=5 // pred_check_branch
        %185 = sbr.rel (%p183) target = $region24
      $region23: #{tpu_custom_call.1} parent=5 // pred_region
        // Predicated region
        $region25: #{tpu_custom_call.1} parent=23 // pred_check
          %p186 = pneg %p51
        $region26: #{tpu_custom_call.1} parent=23 // pred_check_branch
          %188 = sbr.rel (%p186) target = $region28
        $region27: #{tpu_custom_call.1} parent=23 // pred_region
          #allocation11 [shape = 'u32[6]{0}', space=smem, size = 0x18, scoped, tag = 'DMA stride descriptor']
          %s189 = sand.u32 %s41, 1
          %s190 = scalar_lea.sflag [#allocation6], %s189
          %s191 = sand.u32 %s41, 1
          %s192 = smul.addr %s191, 3072
          %s193 = scalar_lea.vmem [#allocation5], %s192
          %s194 = smul.u32 8, %s24
          %s195 = smul.u32 16, %s25
          %s197 = ssub.s32 49152, 49152
          %198 = vsyncadd %s190, %s197
          %s199 = smul.addr %s195, 6
          %s200 = smul.addr %s194, 192
          %s201 = sadd.s32 %s199, %s200
          %s202 = smul.addr %s201, 64
          %s203 = scalar_lea.hbm %s0, %s202
          %s205 = sshll.u32 1, 14
          %s206 = sxor.u32 4294967295, %s205
          %s208 = sld [smem:[#allocation0]]
          %s209 = sadd.s32 2, %s208
          %s211 = sshll.u32 7, 26
          %s212 = sxor.u32 4294967295, %s211
          %s213 = sand.u32 0, %s212
          %s214 = sshll.u32 %s209, 26
          %s215 = sor.u32 %s213, %s214
          %s216 = sshll.u32 %s193, 4
          %s217 = int_to_ptr.vmem [resolvable:$true] %s216
          %223 = sst [smem:[#allocation11]] 12288
          %s224 = scalar_lea.smem [#allocation11], 1
          %225 = sst [smem:[%s224]] 6144
          %s226 = scalar_lea.smem [#allocation11], 2
          %227 = sst [smem:[%s226]] 16
          %s228 = scalar_lea.smem [#allocation11], 3
          %229 = sst [smem:[%s228]] 384
          %s230 = scalar_lea.smem [#allocation11], 4
          %231 = sst [smem:[%s230]] 384
          %s232 = scalar_lea.smem [#allocation11], 5
          %233 = sst [smem:[%s232]] 24
          %235 = dma.general %s203, 49152, %s217, %s190, [#allocation10], [#allocation11], %s215, 0
        $region28: #{tpu_custom_call.1} parent=23 // pred_fallthru
          _
        // Predicated region
        $region29: #{tpu_custom_call.1} parent=23 // pred_check
          %p236 = pneg %p79
        $region30: #{tpu_custom_call.1} parent=23 // pred_check_branch
          %238 = sbr.rel (%p236) target = $region32
        $region31: #{tpu_custom_call.1} parent=23 // pred_region
          %s239 = sand.u32 %s17, 1
          %s240 = scalar_lea.sflag [#allocation8], %s239
          %s241 = sand.u32 %s69, 1
          %s242 = smul.addr %s241, 8
          %s243 = scalar_lea.vmem [#allocation7], %s242
          %s244 = smul.u32 8, %s24
          %s246 = ssub.s32 128, 128
          %247 = vsyncadd %s240, %s246
          %s248 = smul.addr %s244, 2
          %s249 = sadd.s32 %s25, %s248
          %s250 = smul.addr %s249, 16
          %s251 = scalar_lea.hbm %s1, %s250
          %s252 = sshll.u32 %s243, 4
          %s253 = int_to_ptr.vmem [resolvable:$true] %s252
          %258 = dma.hbm_to_vmem [thread:$0]  %s251, 128, %s253, %s240, 32, 16, 1
        $region32: #{tpu_custom_call.1} parent=23 // pred_fallthru
          _
      $region24: #{tpu_custom_call.1} parent=5 // pred_fallthru
        _
      %p259 = scmp.le.s32.totalorder 1, %s17
      %p260 = scmp.lt.s32.totalorder %s17, 5
      %p261 = pnand %p259, %p260
      %p262 = pneg %p261
      // Predicated region
      $region33: #{tpu_custom_call.1} parent=5 // pred_check
        _
      $region34: #{tpu_custom_call.1} parent=5 // pred_check_branch
        %264 = sbr.rel (%p261) target = $region36
      $region35: #{tpu_custom_call.1} parent=5 // pred_region
        %s265 = ssub.s32 %s17, 1
        %s266 = sand.u32 %s44, 1
        %s267 = scalar_lea.sflag [#allocation6], %s266
        %s268 = sand.u32 %s44, 1
        %s269 = smul.addr %s268, 3072
        %s270 = scalar_lea.vmem [#allocation5], %s269
        // Predicated region
        $region37: #{tpu_custom_call.1} parent=35 // pred_check
          %p271 = pneg %p57
        $region38: #{tpu_custom_call.1} parent=35 // pred_check_branch
          %273 = sbr.rel (%p271) target = $region40
        $region39: #{tpu_custom_call.1} parent=35 // pred_region
          %274 = dma.done %s267, 49152
        $region40: #{tpu_custom_call.1} parent=35 // pred_fallthru
          _
        %s275 = sand.u32 %s22, 1
        %s276 = scalar_lea.sflag [#allocation8], %s275
        %s277 = sand.u32 %s72, 1
        %s278 = smul.addr %s277, 8
        %s279 = scalar_lea.vmem [#allocation7], %s278
        // Predicated region
        $region41: #{tpu_custom_call.1} parent=35 // pred_check
          %p280 = pneg %p85
        $region42: #{tpu_custom_call.1} parent=35 // pred_check_branch
          %282 = sbr.rel (%p280) target = $region44
        $region43: #{tpu_custom_call.1} parent=35 // pred_region
          %283 = dma.done %s276, 128
        $region44: #{tpu_custom_call.1} parent=35 // pred_fallthru
          _
        // Predicated region
        $region45: #{tpu_custom_call.1} parent=35 // pred_check
          %p284 = pneg %p106
        $region46: #{tpu_custom_call.1} parent=35 // pred_check_branch
          %286 = sbr.rel (%p284) target = $region48
        $region47: #{tpu_custom_call.1} parent=35 // pred_region
          %287 = dma.done [#allocation8], 192
        $region48: #{tpu_custom_call.1} parent=35 // pred_fallthru
          _
        %s288 = sand.u32 %s44, 1
        %s289 = scalar_lea.sflag [#allocation6], %s288
        %s290 = sand.u32 %s44, 1
        %s291 = smul.addr %s290, 3072
        %s292 = scalar_lea.vmem [#allocation5], %s291
        %p293 = pneg %p57
        %p294 = pneg %p54
        %s295 = sand.u32 %s22, 1
        %s296 = scalar_lea.sflag [#allocation8], %s295
        %s297 = sand.u32 %s72, 1
        %s298 = smul.addr %s297, 8
        %s299 = scalar_lea.vmem [#allocation7], %s298
        %p300 = pneg %p85
        %p301 = pneg %p82
        %p302 = pneg %p106
        %p303 = pneg %p103
        %p304 = pneg %p127
        %p305 = pneg %p124
        %p306 = pneg %p153
        %p307 = pneg %p150
        %p308 = scmp.lt.s32.totalorder %s26, 1
        %s309 = scalar_select %p308, %s26, 1
        %s310 = smul.addr %s309, 8
        %s311 = scalar_lea.vmem %s4, %s310
        %s312 = smul.u32 8, %s26
        %s313 = smul.u32 16, %s27
        %s314 = smul.u32 8, %s26
        %p315 = scmp.lt.s32.totalorder %s26, 1
        %s316 = scalar_select %p315, %s26, 1
        %s317 = smul.addr %s316, 8
        %s318 = scalar_lea.vmem %s4, %s317
        %p320 = scmp.eq.s32.totalorder %s27, 0
        // Predicated region
        $region49: #{tpu_custom_call.1} parent=35 // pred_check
          %p321 = pneg %p320
        $region50: #{tpu_custom_call.1} parent=35 // pred_check_branch
          %323 = sbr.rel (%p321) target = $region52
        $region51: #{tpu_custom_call.1} parent=35 // pred_region
          %324 = vst [vmem:[#allocation2] sm:$0xff] 0.0
          %325 = vst [vmem:[#allocation2 + $0x8] sm:$0xf] 0.0
          %326 = vst [vmem:[#allocation2 + $0xc] sm:$0xff] 0.0
          %327 = vst [vmem:[#allocation2 + $0x14] sm:$0xf] 0.0
          %328 = vst [vmem:[#allocation2 + $0x18] sm:$0xff] 0.0
          %329 = vst [vmem:[#allocation2 + $0x20] sm:$0xf] 0.0
          %330 = vst [vmem:[#allocation2 + $0x24] sm:$0xff] 0.0
          %331 = vst [vmem:[#allocation2 + $0x2c] sm:$0xf] 0.0
          %332 = vst [vmem:[#allocation2 + $0x30] sm:$0xff] 0.0
          %333 = vst [vmem:[#allocation2 + $0x38] sm:$0xf] 0.0
          %334 = vst [vmem:[#allocation2 + $0x3c] sm:$0xff] 0.0
          %335 = vst [vmem:[#allocation2 + $0x44] sm:$0xf] 0.0
          %336 = vst [vmem:[#allocation2 + $0x48] sm:$0xff] 0.0
          %337 = vst [vmem:[#allocation2 + $0x50] sm:$0xf] 0.0
          %338 = vst [vmem:[#allocation2 + $0x54] sm:$0xff] 0.0
          %339 = vst [vmem:[#allocation2 + $0x5c] sm:$0xf] 0.0
          %vm340 = vcmask 15360
          %341 = vst.msk [vmem:[#allocation3] sm:$0xff] %vm340, 0.0
        $region52: #{tpu_custom_call.1} parent=35 // pred_fallthru
          _
        %v342 = vld [vmem:[%s279] sm:$0x1]
        %v343 = vld [vmem:[%s279 + $0x1] sm:$0x1]
        %v344 = vld [vmem:[%s279 + $0x2] sm:$0x1]
        %v345 = vld [vmem:[%s279 + $0x3] sm:$0x1]
        %v346 = vld [vmem:[%s279 + $0x4] sm:$0x1]
        %v347 = vld [vmem:[%s279 + $0x5] sm:$0x1]
        %v348 = vld [vmem:[%s279 + $0x6] sm:$0x1]
        %v349 = vld [vmem:[%s279 + $0x7] sm:$0x1]
        %v350 = vld [vmem:[%s270] sm:$0xff]
        %v351 = vld [vmem:[%s270 + $0x8] sm:$0xff]
        %v352 = vld [vmem:[%s270 + $0x10] sm:$0xff]
        %v353 = vld [vmem:[%s270 + $0x18] sm:$0xff]
        %v354 = vld [vmem:[%s270 + $0x20] sm:$0xff]
        %v355 = vld [vmem:[%s270 + $0x28] sm:$0xff]
        %v356 = vld [vmem:[%s270 + $0x30] sm:$0xff]
        %v357 = vld [vmem:[%s270 + $0x38] sm:$0xff]
        %v358 = vld [vmem:[%s270 + $0x40] sm:$0xff]
        %v359 = vld [vmem:[%s270 + $0x48] sm:$0xff]
        %v360 = vld [vmem:[%s270 + $0x50] sm:$0xff]
        %v361 = vld [vmem:[%s270 + $0x58] sm:$0xff]
        %v362 = vld [vmem:[%s270 + $0x60] sm:$0xff]
        %v363 = vld [vmem:[%s270 + $0x68] sm:$0xff]
        %v364 = vld [vmem:[%s270 + $0x70] sm:$0xff]
        %v365 = vld [vmem:[%s270 + $0x78] sm:$0xff]
        %v366 = vld [vmem:[%s270 + $0x80] sm:$0xff]
        %v367 = vld [vmem:[%s270 + $0x88] sm:$0xff]
        %v368 = vld [vmem:[%s270 + $0x90] sm:$0xff]
        %v369 = vld [vmem:[%s270 + $0x98] sm:$0xff]
        %v370 = vld [vmem:[%s270 + $0xa0] sm:$0xff]
        %v371 = vld [vmem:[%s270 + $0xa8] sm:$0xff]
        %v372 = vld [vmem:[%s270 + $0xb0] sm:$0xff]
        %v373 = vld [vmem:[%s270 + $0xb8] sm:$0xff]
        %v374 = vld [vmem:[%s270 + $0xc0] sm:$0xff]
        %v375 = vld [vmem:[%s270 + $0xc8] sm:$0xff]
        %v376 = vld [vmem:[%s270 + $0xd0] sm:$0xff]
        %v377 = vld [vmem:[%s270 + $0xd8] sm:$0xff]
        %v378 = vld [vmem:[%s270 + $0xe0] sm:$0xff]
        %v379 = vld [vmem:[%s270 + $0xe8] sm:$0xff]
        %v380 = vld [vmem:[%s270 + $0xf0] sm:$0xff]
        %v381 = vld [vmem:[%s270 + $0xf8] sm:$0xff]
        %v382 = vld [vmem:[%s270 + $0x100] sm:$0xff]
        %v383 = vld [vmem:[%s270 + $0x108] sm:$0xff]
        %v384 = vld [vmem:[%s270 + $0x110] sm:$0xff]
        %v385 = vld [vmem:[%s270 + $0x118] sm:$0xff]
        %v386 = vld [vmem:[%s270 + $0x120] sm:$0xff]
        %v387 = vld [vmem:[%s270 + $0x128] sm:$0xff]
        %v388 = vld [vmem:[%s270 + $0x130] sm:$0xff]
        %v389 = vld [vmem:[%s270 + $0x138] sm:$0xff]
        %v390 = vld [vmem:[%s270 + $0x140] sm:$0xff]
        %v391 = vld [vmem:[%s270 + $0x148] sm:$0xff]
        %v392 = vld [vmem:[%s270 + $0x150] sm:$0xff]
        %v393 = vld [vmem:[%s270 + $0x158] sm:$0xff]
        %v394 = vld [vmem:[%s270 + $0x160] sm:$0xff]
        %v395 = vld [vmem:[%s270 + $0x168] sm:$0xff]
        %v396 = vld [vmem:[%s270 + $0x170] sm:$0xff]
        %v397 = vld [vmem:[%s270 + $0x178] sm:$0xff]
        %v398 = vld [vmem:[%s270 + $0x180] sm:$0xff]
        %v399 = vld [vmem:[%s270 + $0x188] sm:$0xff]
        %v400 = vld [vmem:[%s270 + $0x190] sm:$0xff]
        %v401 = vld [vmem:[%s270 + $0x198] sm:$0xff]
        %v402 = vld [vmem:[%s270 + $0x1a0] sm:$0xff]
        %v403 = vld [vmem:[%s270 + $0x1a8] sm:$0xff]
        %v404 = vld [vmem:[%s270 + $0x1b0] sm:$0xff]
        %v405 = vld [vmem:[%s270 + $0x1b8] sm:$0xff]
        %v406 = vld [vmem:[%s270 + $0x1c0] sm:$0xff]
        %v407 = vld [vmem:[%s270 + $0x1c8] sm:$0xff]
        %v408 = vld [vmem:[%s270 + $0x1d0] sm:$0xff]
        %v409 = vld [vmem:[%s270 + $0x1d8] sm:$0xff]
        %v410 = vld [vmem:[%s270 + $0x1e0] sm:$0xff]
        %v411 = vld [vmem:[%s270 + $0x1e8] sm:$0xff]
        %v412 = vld [vmem:[%s270 + $0x1f0] sm:$0xff]
        %v413 = vld [vmem:[%s270 + $0x1f8] sm:$0xff]
        %v414 = vld [vmem:[%s270 + $0x200] sm:$0xff]
        %v415 = vld [vmem:[%s270 + $0x208] sm:$0xff]
        %v416 = vld [vmem:[%s270 + $0x210] sm:$0xff]
        %v417 = vld [vmem:[%s270 + $0x218] sm:$0xff]
        %v418 = vld [vmem:[%s270 + $0x220] sm:$0xff]
        %v419 = vld [vmem:[%s270 + $0x228] sm:$0xff]
        %v420 = vld [vmem:[%s270 + $0x230] sm:$0xff]
        %v421 = vld [vmem:[%s270 + $0x238] sm:$0xff]
        %v422 = vld [vmem:[%s270 + $0x240] sm:$0xff]
        %v423 = vld [vmem:[%s270 + $0x248] sm:$0xff]
        %v424 = vld [vmem:[%s270 + $0x250] sm:$0xff]
        %v425 = vld [vmem:[%s270 + $0x258] sm:$0xff]
        %v426 = vld [vmem:[%s270 + $0x260] sm:$0xff]
        %v427 = vld [vmem:[%s270 + $0x268] sm:$0xff]
        %v428 = vld [vmem:[%s270 + $0x270] sm:$0xff]
        %v429 = vld [vmem:[%s270 + $0x278] sm:$0xff]
        %v430 = vld [vmem:[%s270 + $0x280] sm:$0xff]
        %v431 = vld [vmem:[%s270 + $0x288] sm:$0xff]
        %v432 = vld [vmem:[%s270 + $0x290] sm:$0xff]
        %v433 = vld [vmem:[%s270 + $0x298] sm:$0xff]
        %v434 = vld [vmem:[%s270 + $0x2a0] sm:$0xff]
        %v435 = vld [vmem:[%s270 + $0x2a8] sm:$0xff]
        %v436 = vld [vmem:[%s270 + $0x2b0] sm:$0xff]
        %v437 = vld [vmem:[%s270 + $0x2b8] sm:$0xff]
        %v438 = vld [vmem:[%s270 + $0x2c0] sm:$0xff]
        %v439 = vld [vmem:[%s270 + $0x2c8] sm:$0xff]
        %v440 = vld [vmem:[%s270 + $0x2d0] sm:$0xff]
        %v441 = vld [vmem:[%s270 + $0x2d8] sm:$0xff]
        %v442 = vld [vmem:[%s270 + $0x2e0] sm:$0xff]
        %v443 = vld [vmem:[%s270 + $0x2e8] sm:$0xff]
        %v444 = vld [vmem:[%s270 + $0x2f0] sm:$0xff]
        %v445 = vld [vmem:[%s270 + $0x2f8] sm:$0xff]
        %v446 = vld [vmem:[%s270 + $0x300] sm:$0xff]
        %v447 = vld [vmem:[%s270 + $0x308] sm:$0xff]
        %v448 = vld [vmem:[%s270 + $0x310] sm:$0xff]
        %v449 = vld [vmem:[%s270 + $0x318] sm:$0xff]
        %v450 = vld [vmem:[%s270 + $0x320] sm:$0xff]
        %v451 = vld [vmem:[%s270 + $0x328] sm:$0xff]
        %v452 = vld [vmem:[%s270 + $0x330] sm:$0xff]
        %v453 = vld [vmem:[%s270 + $0x338] sm:$0xff]
        %v454 = vld [vmem:[%s270 + $0x340] sm:$0xff]
        %v455 = vld [vmem:[%s270 + $0x348] sm:$0xff]
        %v456 = vld [vmem:[%s270 + $0x350] sm:$0xff]
        %v457 = vld [vmem:[%s270 + $0x358] sm:$0xff]
        %v458 = vld [vmem:[%s270 + $0x360] sm:$0xff]
        %v459 = vld [vmem:[%s270 + $0x368] sm:$0xff]
        %v460 = vld [vmem:[%s270 + $0x370] sm:$0xff]
        %v461 = vld [vmem:[%s270 + $0x378] sm:$0xff]
        %v462 = vld [vmem:[%s270 + $0x380] sm:$0xff]
        %v463 = vld [vmem:[%s270 + $0x388] sm:$0xff]
        %v464 = vld [vmem:[%s270 + $0x390] sm:$0xff]
        %v465 = vld [vmem:[%s270 + $0x398] sm:$0xff]
        %v466 = vld [vmem:[%s270 + $0x3a0] sm:$0xff]
        %v467 = vld [vmem:[%s270 + $0x3a8] sm:$0xff]
        %v468 = vld [vmem:[%s270 + $0x3b0] sm:$0xff]
        %v469 = vld [vmem:[%s270 + $0x3b8] sm:$0xff]
        %v470 = vld [vmem:[%s270 + $0x3c0] sm:$0xff]
        %v471 = vld [vmem:[%s270 + $0x3c8] sm:$0xff]
        %v472 = vld [vmem:[%s270 + $0x3d0] sm:$0xff]
        %v473 = vld [vmem:[%s270 + $0x3d8] sm:$0xff]
        %v474 = vld [vmem:[%s270 + $0x3e0] sm:$0xff]
        %v475 = vld [vmem:[%s270 + $0x3e8] sm:$0xff]
        %v476 = vld [vmem:[%s270 + $0x3f0] sm:$0xff]
        %v477 = vld [vmem:[%s270 + $0x3f8] sm:$0xff]
        %v478 = vld [vmem:[%s270 + $0x400] sm:$0xff]
        %v479 = vld [vmem:[%s270 + $0x408] sm:$0xff]
        %v480 = vld [vmem:[%s270 + $0x410] sm:$0xff]
        %v481 = vld [vmem:[%s270 + $0x418] sm:$0xff]
        %v482 = vld [vmem:[%s270 + $0x420] sm:$0xff]
        %v483 = vld [vmem:[%s270 + $0x428] sm:$0xff]
        %v484 = vld [vmem:[%s270 + $0x430] sm:$0xff]
        %v485 = vld [vmem:[%s270 + $0x438] sm:$0xff]
        %v486 = vld [vmem:[%s270 + $0x440] sm:$0xff]
        %v487 = vld [vmem:[%s270 + $0x448] sm:$0xff]
        %v488 = vld [vmem:[%s270 + $0x450] sm:$0xff]
        %v489 = vld [vmem:[%s270 + $0x458] sm:$0xff]
        %v490 = vld [vmem:[%s270 + $0x460] sm:$0xff]
        %v491 = vld [vmem:[%s270 + $0x468] sm:$0xff]
        %v492 = vld [vmem:[%s270 + $0x470] sm:$0xff]
        %v493 = vld [vmem:[%s270 + $0x478] sm:$0xff]
        %v494 = vld [vmem:[%s270 + $0x480] sm:$0xff]
        %v495 = vld [vmem:[%s270 + $0x488] sm:$0xff]
        %v496 = vld [vmem:[%s270 + $0x490] sm:$0xff]
        %v497 = vld [vmem:[%s270 + $0x498] sm:$0xff]
        %v498 = vld [vmem:[%s270 + $0x4a0] sm:$0xff]
        %v499 = vld [vmem:[%s270 + $0x4a8] sm:$0xff]
        %v500 = vld [vmem:[%s270 + $0x4b0] sm:$0xff]
        %v501 = vld [vmem:[%s270 + $0x4b8] sm:$0xff]
        %v502 = vld [vmem:[%s270 + $0x4c0] sm:$0xff]
        %v503 = vld [vmem:[%s270 + $0x4c8] sm:$0xff]
        %v504 = vld [vmem:[%s270 + $0x4d0] sm:$0xff]
        %v505 = vld [vmem:[%s270 + $0x4d8] sm:$0xff]
        %v506 = vld [vmem:[%s270 + $0x4e0] sm:$0xff]
        %v507 = vld [vmem:[%s270 + $0x4e8] sm:$0xff]
        %v508 = vld [vmem:[%s270 + $0x4f0] sm:$0xff]
        %v509 = vld [vmem:[%s270 + $0x4f8] sm:$0xff]
        %v510 = vld [vmem:[%s270 + $0x500] sm:$0xff]
        %v511 = vld [vmem:[%s270 + $0x508] sm:$0xff]
        %v512 = vld [vmem:[%s270 + $0x510] sm:$0xff]
        %v513 = vld [vmem:[%s270 + $0x518] sm:$0xff]
        %v514 = vld [vmem:[%s270 + $0x520] sm:$0xff]
        %v515 = vld [vmem:[%s270 + $0x528] sm:$0xff]
        %v516 = vld [vmem:[%s270 + $0x530] sm:$0xff]
        %v517 = vld [vmem:[%s270 + $0x538] sm:$0xff]
        %v518 = vld [vmem:[%s270 + $0x540] sm:$0xff]
        %v519 = vld [vmem:[%s270 + $0x548] sm:$0xff]
        %v520 = vld [vmem:[%s270 + $0x550] sm:$0xff]
        %v521 = vld [vmem:[%s270 + $0x558] sm:$0xff]
        %v522 = vld [vmem:[%s270 + $0x560] sm:$0xff]
        %v523 = vld [vmem:[%s270 + $0x568] sm:$0xff]
        %v524 = vld [vmem:[%s270 + $0x570] sm:$0xff]
        %v525 = vld [vmem:[%s270 + $0x578] sm:$0xff]
        %v526 = vld [vmem:[%s270 + $0x580] sm:$0xff]
        %v527 = vld [vmem:[%s270 + $0x588] sm:$0xff]
        %v528 = vld [vmem:[%s270 + $0x590] sm:$0xff]
        %v529 = vld [vmem:[%s270 + $0x598] sm:$0xff]
        %v530 = vld [vmem:[%s270 + $0x5a0] sm:$0xff]
        %v531 = vld [vmem:[%s270 + $0x5a8] sm:$0xff]
        %v532 = vld [vmem:[%s270 + $0x5b0] sm:$0xff]
        %v533 = vld [vmem:[%s270 + $0x5b8] sm:$0xff]
        %v534 = vld [vmem:[%s270 + $0x5c0] sm:$0xff]
        %v535 = vld [vmem:[%s270 + $0x5c8] sm:$0xff]
        %v536 = vld [vmem:[%s270 + $0x5d0] sm:$0xff]
        %v537 = vld [vmem:[%s270 + $0x5d8] sm:$0xff]
        %v538 = vld [vmem:[%s270 + $0x5e0] sm:$0xff]
        %v539 = vld [vmem:[%s270 + $0x5e8] sm:$0xff]
        %v540 = vld [vmem:[%s270 + $0x5f0] sm:$0xff]
        %v541 = vld [vmem:[%s270 + $0x5f8] sm:$0xff]
        %v542 = vld [vmem:[%s270 + $0x600] sm:$0xff]
        %v543 = vld [vmem:[%s270 + $0x608] sm:$0xff]
        %v544 = vld [vmem:[%s270 + $0x610] sm:$0xff]
        %v545 = vld [vmem:[%s270 + $0x618] sm:$0xff]
        %v546 = vld [vmem:[%s270 + $0x620] sm:$0xff]
        %v547 = vld [vmem:[%s270 + $0x628] sm:$0xff]
        %v548 = vld [vmem:[%s270 + $0x630] sm:$0xff]
        %v549 = vld [vmem:[%s270 + $0x638] sm:$0xff]
        %v550 = vld [vmem:[%s270 + $0x640] sm:$0xff]
        %v551 = vld [vmem:[%s270 + $0x648] sm:$0xff]
        %v552 = vld [vmem:[%s270 + $0x650] sm:$0xff]
        %v553 = vld [vmem:[%s270 + $0x658] sm:$0xff]
        %v554 = vld [vmem:[%s270 + $0x660] sm:$0xff]
        %v555 = vld [vmem:[%s270 + $0x668] sm:$0xff]
        %v556 = vld [vmem:[%s270 + $0x670] sm:$0xff]
        %v557 = vld [vmem:[%s270 + $0x678] sm:$0xff]
        %v558 = vld [vmem:[%s270 + $0x680] sm:$0xff]
        %v559 = vld [vmem:[%s270 + $0x688] sm:$0xff]
        %v560 = vld [vmem:[%s270 + $0x690] sm:$0xff]
        %v561 = vld [vmem:[%s270 + $0x698] sm:$0xff]
        %v562 = vld [vmem:[%s270 + $0x6a0] sm:$0xff]
        %v563 = vld [vmem:[%s270 + $0x6a8] sm:$0xff]
        %v564 = vld [vmem:[%s270 + $0x6b0] sm:$0xff]
        %v565 = vld [vmem:[%s270 + $0x6b8] sm:$0xff]
        %v566 = vld [vmem:[%s270 + $0x6c0] sm:$0xff]
        %v567 = vld [vmem:[%s270 + $0x6c8] sm:$0xff]
        %v568 = vld [vmem:[%s270 + $0x6d0] sm:$0xff]
        %v569 = vld [vmem:[%s270 + $0x6d8] sm:$0xff]
        %v570 = vld [vmem:[%s270 + $0x6e0] sm:$0xff]
        %v571 = vld [vmem:[%s270 + $0x6e8] sm:$0xff]
        %v572 = vld [vmem:[%s270 + $0x6f0] sm:$0xff]
        %v573 = vld [vmem:[%s270 + $0x6f8] sm:$0xff]
        %v574 = vld [vmem:[%s270 + $0x700] sm:$0xff]
        %v575 = vld [vmem:[%s270 + $0x708] sm:$0xff]
        %v576 = vld [vmem:[%s270 + $0x710] sm:$0xff]
        %v577 = vld [vmem:[%s270 + $0x718] sm:$0xff]
        %v578 = vld [vmem:[%s270 + $0x720] sm:$0xff]
        %v579 = vld [vmem:[%s270 + $0x728] sm:$0xff]
        %v580 = vld [vmem:[%s270 + $0x730] sm:$0xff]
        %v581 = vld [vmem:[%s270 + $0x738] sm:$0xff]
        %v582 = vld [vmem:[%s270 + $0x740] sm:$0xff]
        %v583 = vld [vmem:[%s270 + $0x748] sm:$0xff]
        %v584 = vld [vmem:[%s270 + $0x750] sm:$0xff]
        %v585 = vld [vmem:[%s270 + $0x758] sm:$0xff]
        %v586 = vld [vmem:[%s270 + $0x760] sm:$0xff]
        %v587 = vld [vmem:[%s270 + $0x768] sm:$0xff]
        %v588 = vld [vmem:[%s270 + $0x770] sm:$0xff]
        %v589 = vld [vmem:[%s270 + $0x778] sm:$0xff]
        %v590 = vld [vmem:[%s270 + $0x780] sm:$0xff]
        %v591 = vld [vmem:[%s270 + $0x788] sm:$0xff]
        %v592 = vld [vmem:[%s270 + $0x790] sm:$0xff]
        %v593 = vld [vmem:[%s270 + $0x798] sm:$0xff]
        %v594 = vld [vmem:[%s270 + $0x7a0] sm:$0xff]
        %v595 = vld [vmem:[%s270 + $0x7a8] sm:$0xff]
        %v596 = vld [vmem:[%s270 + $0x7b0] sm:$0xff]
        %v597 = vld [vmem:[%s270 + $0x7b8] sm:$0xff]
        %v598 = vld [vmem:[%s270 + $0x7c0] sm:$0xff]
        %v599 = vld [vmem:[%s270 + $0x7c8] sm:$0xff]
        %v600 = vld [vmem:[%s270 + $0x7d0] sm:$0xff]
        %v601 = vld [vmem:[%s270 + $0x7d8] sm:$0xff]
        %v602 = vld [vmem:[%s270 + $0x7e0] sm:$0xff]
        %v603 = vld [vmem:[%s270 + $0x7e8] sm:$0xff]
        %v604 = vld [vmem:[%s270 + $0x7f0] sm:$0xff]
        %v605 = vld [vmem:[%s270 + $0x7f8] sm:$0xff]
        %v606 = vld [vmem:[%s270 + $0x800] sm:$0xff]
        %v607 = vld [vmem:[%s270 + $0x808] sm:$0xff]
        %v608 = vld [vmem:[%s270 + $0x810] sm:$0xff]
        %v609 = vld [vmem:[%s270 + $0x818] sm:$0xff]
        %v610 = vld [vmem:[%s270 + $0x820] sm:$0xff]
        %v611 = vld [vmem:[%s270 + $0x828] sm:$0xff]
        %v612 = vld [vmem:[%s270 + $0x830] sm:$0xff]
        %v613 = vld [vmem:[%s270 + $0x838] sm:$0xff]
        %v614 = vld [vmem:[%s270 + $0x840] sm:$0xff]
        %v615 = vld [vmem:[%s270 + $0x848] sm:$0xff]
        %v616 = vld [vmem:[%s270 + $0x850] sm:$0xff]
        %v617 = vld [vmem:[%s270 + $0x858] sm:$0xff]
        %v618 = vld [vmem:[%s270 + $0x860] sm:$0xff]
        %v619 = vld [vmem:[%s270 + $0x868] sm:$0xff]
        %v620 = vld [vmem:[%s270 + $0x870] sm:$0xff]
        %v621 = vld [vmem:[%s270 + $0x878] sm:$0xff]
        %v622 = vld [vmem:[%s270 + $0x880] sm:$0xff]
        %v623 = vld [vmem:[%s270 + $0x888] sm:$0xff]
        %v624 = vld [vmem:[%s270 + $0x890] sm:$0xff]
        %v625 = vld [vmem:[%s270 + $0x898] sm:$0xff]
        %v626 = vld [vmem:[%s270 + $0x8a0] sm:$0xff]
        %v627 = vld [vmem:[%s270 + $0x8a8] sm:$0xff]
        %v628 = vld [vmem:[%s270 + $0x8b0] sm:$0xff]
        %v629 = vld [vmem:[%s270 + $0x8b8] sm:$0xff]
        %v630 = vld [vmem:[%s270 + $0x8c0] sm:$0xff]
        %v631 = vld [vmem:[%s270 + $0x8c8] sm:$0xff]
        %v632 = vld [vmem:[%s270 + $0x8d0] sm:$0xff]
        %v633 = vld [vmem:[%s270 + $0x8d8] sm:$0xff]
        %v634 = vld [vmem:[%s270 + $0x8e0] sm:$0xff]
        %v635 = vld [vmem:[%s270 + $0x8e8] sm:$0xff]
        %v636 = vld [vmem:[%s270 + $0x8f0] sm:$0xff]
        %v637 = vld [vmem:[%s270 + $0x8f8] sm:$0xff]
        %v638 = vld [vmem:[%s270 + $0x900] sm:$0xff]
        %v639 = vld [vmem:[%s270 + $0x908] sm:$0xff]
        %v640 = vld [vmem:[%s270 + $0x910] sm:$0xff]
        %v641 = vld [vmem:[%s270 + $0x918] sm:$0xff]
        %v642 = vld [vmem:[%s270 + $0x920] sm:$0xff]
        %v643 = vld [vmem:[%s270 + $0x928] sm:$0xff]
        %v644 = vld [vmem:[%s270 + $0x930] sm:$0xff]
        %v645 = vld [vmem:[%s270 + $0x938] sm:$0xff]
        %v646 = vld [vmem:[%s270 + $0x940] sm:$0xff]
        %v647 = vld [vmem:[%s270 + $0x948] sm:$0xff]
        %v648 = vld [vmem:[%s270 + $0x950] sm:$0xff]
        %v649 = vld [vmem:[%s270 + $0x958] sm:$0xff]
        %v650 = vld [vmem:[%s270 + $0x960] sm:$0xff]
        %v651 = vld [vmem:[%s270 + $0x968] sm:$0xff]
        %v652 = vld [vmem:[%s270 + $0x970] sm:$0xff]
        %v653 = vld [vmem:[%s270 + $0x978] sm:$0xff]
        %v654 = vld [vmem:[%s270 + $0x980] sm:$0xff]
        %v655 = vld [vmem:[%s270 + $0x988] sm:$0xff]
        %v656 = vld [vmem:[%s270 + $0x990] sm:$0xff]
        %v657 = vld [vmem:[%s270 + $0x998] sm:$0xff]
        %v658 = vld [vmem:[%s270 + $0x9a0] sm:$0xff]
        %v659 = vld [vmem:[%s270 + $0x9a8] sm:$0xff]
        %v660 = vld [vmem:[%s270 + $0x9b0] sm:$0xff]
        %v661 = vld [vmem:[%s270 + $0x9b8] sm:$0xff]
        %v662 = vld [vmem:[%s270 + $0x9c0] sm:$0xff]
        %v663 = vld [vmem:[%s270 + $0x9c8] sm:$0xff]
        %v664 = vld [vmem:[%s270 + $0x9d0] sm:$0xff]
        %v665 = vld [vmem:[%s270 + $0x9d8] sm:$0xff]
        %v666 = vld [vmem:[%s270 + $0x9e0] sm:$0xff]
        %v667 = vld [vmem:[%s270 + $0x9e8] sm:$0xff]
        %v668 = vld [vmem:[%s270 + $0x9f0] sm:$0xff]
        %v669 = vld [vmem:[%s270 + $0x9f8] sm:$0xff]
        %v670 = vld [vmem:[%s270 + $0xa00] sm:$0xff]
        %v671 = vld [vmem:[%s270 + $0xa08] sm:$0xff]
        %v672 = vld [vmem:[%s270 + $0xa10] sm:$0xff]
        %v673 = vld [vmem:[%s270 + $0xa18] sm:$0xff]
        %v674 = vld [vmem:[%s270 + $0xa20] sm:$0xff]
        %v675 = vld [vmem:[%s270 + $0xa28] sm:$0xff]
        %v676 = vld [vmem:[%s270 + $0xa30] sm:$0xff]
        %v677 = vld [vmem:[%s270 + $0xa38] sm:$0xff]
        %v678 = vld [vmem:[%s270 + $0xa40] sm:$0xff]
        %v679 = vld [vmem:[%s270 + $0xa48] sm:$0xff]
        %v680 = vld [vmem:[%s270 + $0xa50] sm:$0xff]
        %v681 = vld [vmem:[%s270 + $0xa58] sm:$0xff]
        %v682 = vld [vmem:[%s270 + $0xa60] sm:$0xff]
        %v683 = vld [vmem:[%s270 + $0xa68] sm:$0xff]
        %v684 = vld [vmem:[%s270 + $0xa70] sm:$0xff]
        %v685 = vld [vmem:[%s270 + $0xa78] sm:$0xff]
        %v686 = vld [vmem:[%s270 + $0xa80] sm:$0xff]
        %v687 = vld [vmem:[%s270 + $0xa88] sm:$0xff]
        %v688 = vld [vmem:[%s270 + $0xa90] sm:$0xff]
        %v689 = vld [vmem:[%s270 + $0xa98] sm:$0xff]
        %v690 = vld [vmem:[%s270 + $0xaa0] sm:$0xff]
        %v691 = vld [vmem:[%s270 + $0xaa8] sm:$0xff]
        %v692 = vld [vmem:[%s270 + $0xab0] sm:$0xff]
        %v693 = vld [vmem:[%s270 + $0xab8] sm:$0xff]
        %v694 = vld [vmem:[%s270 + $0xac0] sm:$0xff]
        %v695 = vld [vmem:[%s270 + $0xac8] sm:$0xff]
        %v696 = vld [vmem:[%s270 + $0xad0] sm:$0xff]
        %v697 = vld [vmem:[%s270 + $0xad8] sm:$0xff]
        %v698 = vld [vmem:[%s270 + $0xae0] sm:$0xff]
        %v699 = vld [vmem:[%s270 + $0xae8] sm:$0xff]
        %v700 = vld [vmem:[%s270 + $0xaf0] sm:$0xff]
        %v701 = vld [vmem:[%s270 + $0xaf8] sm:$0xff]
        %v702 = vld [vmem:[%s270 + $0xb00] sm:$0xff]
        %v703 = vld [vmem:[%s270 + $0xb08] sm:$0xff]
        %v704 = vld [vmem:[%s270 + $0xb10] sm:$0xff]
        %v705 = vld [vmem:[%s270 + $0xb18] sm:$0xff]
        %v706 = vld [vmem:[%s270 + $0xb20] sm:$0xff]
        %v707 = vld [vmem:[%s270 + $0xb28] sm:$0xff]
        %v708 = vld [vmem:[%s270 + $0xb30] sm:$0xff]
        %v709 = vld [vmem:[%s270 + $0xb38] sm:$0xff]
        %v710 = vld [vmem:[%s270 + $0xb40] sm:$0xff]
        %v711 = vld [vmem:[%s270 + $0xb48] sm:$0xff]
        %v712 = vld [vmem:[%s270 + $0xb50] sm:$0xff]
        %v713 = vld [vmem:[%s270 + $0xb58] sm:$0xff]
        %v714 = vld [vmem:[%s270 + $0xb60] sm:$0xff]
        %v715 = vld [vmem:[%s270 + $0xb68] sm:$0xff]
        %v716 = vld [vmem:[%s270 + $0xb70] sm:$0xff]
        %v717 = vld [vmem:[%s270 + $0xb78] sm:$0xff]
        %v718 = vld [vmem:[%s270 + $0xb80] sm:$0xff]
        %v719 = vld [vmem:[%s270 + $0xb88] sm:$0xff]
        %v720 = vld [vmem:[%s270 + $0xb90] sm:$0xff]
        %v721 = vld [vmem:[%s270 + $0xb98] sm:$0xff]
        %v722 = vld [vmem:[%s270 + $0xba0] sm:$0xff]
        %v723 = vld [vmem:[%s270 + $0xba8] sm:$0xff]
        %v724 = vld [vmem:[%s270 + $0xbb0] sm:$0xff]
        %v725 = vld [vmem:[%s270 + $0xbb8] sm:$0xff]
        %v726 = vld [vmem:[%s270 + $0xbc0] sm:$0xff]
        %v727 = vld [vmem:[%s270 + $0xbc8] sm:$0xff]
        %v728 = vld [vmem:[%s270 + $0xbd0] sm:$0xff]
        %v729 = vld [vmem:[%s270 + $0xbd8] sm:$0xff]
        %v730 = vld [vmem:[%s270 + $0xbe0] sm:$0xff]
        %v731 = vld [vmem:[%s270 + $0xbe8] sm:$0xff]
        %v732 = vld [vmem:[%s270 + $0xbf0] sm:$0xff]
        %v733 = vld [vmem:[%s270 + $0xbf8] sm:$0xff]
        %v734 = vld [vmem:[#allocation2] sm:$0xff]
        %v735 = vld [vmem:[#allocation2 + $0x8] sm:$0xf]
        %v736 = vld [vmem:[#allocation2 + $0xc] sm:$0xff]
        %v737 = vld [vmem:[#allocation2 + $0x14] sm:$0xf]
        %v738 = vld [vmem:[#allocation2 + $0x18] sm:$0xff]
        %v739 = vld [vmem:[#allocation2 + $0x20] sm:$0xf]
        %v740 = vld [vmem:[#allocation2 + $0x24] sm:$0xff]
        %v741 = vld [vmem:[#allocation2 + $0x2c] sm:$0xf]
        %v742 = vld [vmem:[#allocation2 + $0x30] sm:$0xff]
        %v743 = vld [vmem:[#allocation2 + $0x38] sm:$0xf]
        %v744 = vld [vmem:[#allocation2 + $0x3c] sm:$0xff]
        %v745 = vld [vmem:[#allocation2 + $0x44] sm:$0xf]
        %v746 = vld [vmem:[#allocation2 + $0x48] sm:$0xff]
        %v747 = vld [vmem:[#allocation2 + $0x50] sm:$0xf]
        %v748 = vld [vmem:[#allocation2 + $0x54] sm:$0xff]
        %v749 = vld [vmem:[#allocation2 + $0x5c] sm:$0xf]
        %v798 = vunpack.c.l.b16 %v350
        %v799 = vunpack.c.h.b16 %v350
        %v800 = vunpack.c.l.b16 %v351
        %v801 = vunpack.c.h.b16 %v351
        %v802 = vunpack.c.l.b16 %v352
        %v803 = vunpack.c.h.b16 %v352
        %v804 = vunpack.c.l.b16 %v353
        %v805 = vunpack.c.h.b16 %v353
        %v806 = vunpack.c.l.b16 %v354
        %v807 = vunpack.c.h.b16 %v354
        %v808 = vunpack.c.l.b16 %v355
        %v809 = vunpack.c.h.b16 %v355
        %v810 = vunpack.c.l.b16 %v356
        %v811 = vunpack.c.h.b16 %v356
        %v812 = vunpack.c.l.b16 %v357
        %v813 = vunpack.c.h.b16 %v357
        %v814 = vunpack.c.l.b16 %v358
        %v815 = vunpack.c.h.b16 %v358
        %v816 = vunpack.c.l.b16 %v359
        %v817 = vunpack.c.h.b16 %v359
        %v818 = vunpack.c.l.b16 %v360
        %v819 = vunpack.c.h.b16 %v360
        %v820 = vunpack.c.l.b16 %v361
        %v821 = vunpack.c.h.b16 %v361
        %v822 = vunpack.c.l.b16 %v362
        %v823 = vunpack.c.h.b16 %v362
        %v824 = vunpack.c.l.b16 %v363
        %v825 = vunpack.c.h.b16 %v363
        %v826 = vunpack.c.l.b16 %v364
        %v827 = vunpack.c.h.b16 %v364
        %v828 = vunpack.c.l.b16 %v365
        %v829 = vunpack.c.h.b16 %v365
        %v830 = vunpack.c.l.b16 %v366
        %v831 = vunpack.c.h.b16 %v366
        %v832 = vunpack.c.l.b16 %v367
        %v833 = vunpack.c.h.b16 %v367
        %v834 = vunpack.c.l.b16 %v368
        %v835 = vunpack.c.h.b16 %v368
        %v836 = vunpack.c.l.b16 %v369
        %v837 = vunpack.c.h.b16 %v369
        %v838 = vunpack.c.l.b16 %v370
        %v839 = vunpack.c.h.b16 %v370
        %v840 = vunpack.c.l.b16 %v371
        %v841 = vunpack.c.h.b16 %v371
        %v842 = vunpack.c.l.b16 %v372
        %v843 = vunpack.c.h.b16 %v372
        %v844 = vunpack.c.l.b16 %v373
        %v845 = vunpack.c.h.b16 %v373
        %v846 = vunpack.c.l.b16 %v374
        %v847 = vunpack.c.h.b16 %v374
        %v848 = vunpack.c.l.b16 %v375
        %v849 = vunpack.c.h.b16 %v375
        %v850 = vunpack.c.l.b16 %v376
        %v851 = vunpack.c.h.b16 %v376
        %v852 = vunpack.c.l.b16 %v377
        %v853 = vunpack.c.h.b16 %v377
        %v854 = vunpack.c.l.b16 %v378
        %v855 = vunpack.c.h.b16 %v378
        %v856 = vunpack.c.l.b16 %v379
        %v857 = vunpack.c.h.b16 %v379
        %v858 = vunpack.c.l.b16 %v380
        %v859 = vunpack.c.h.b16 %v380
        %v860 = vunpack.c.l.b16 %v381
        %v861 = vunpack.c.h.b16 %v381
        %v862 = vunpack.c.l.b16 %v382
        %v863 = vunpack.c.h.b16 %v382
        %v864 = vunpack.c.l.b16 %v383
        %v865 = vunpack.c.h.b16 %v383
        %v866 = vunpack.c.l.b16 %v384
        %v867 = vunpack.c.h.b16 %v384
        %v868 = vunpack.c.l.b16 %v385
        %v869 = vunpack.c.h.b16 %v385
        %v870 = vunpack.c.l.b16 %v386
        %v871 = vunpack.c.h.b16 %v386
        %v872 = vunpack.c.l.b16 %v387
        %v873 = vunpack.c.h.b16 %v387
        %v874 = vunpack.c.l.b16 %v388
        %v875 = vunpack.c.h.b16 %v388
        %v876 = vunpack.c.l.b16 %v389
        %v877 = vunpack.c.h.b16 %v389
        %v878 = vunpack.c.l.b16 %v390
        %v879 = vunpack.c.h.b16 %v390
        %v880 = vunpack.c.l.b16 %v391
        %v881 = vunpack.c.h.b16 %v391
        %v882 = vunpack.c.l.b16 %v392
        %v883 = vunpack.c.h.b16 %v392
        %v884 = vunpack.c.l.b16 %v393
        %v885 = vunpack.c.h.b16 %v393
        %v886 = vunpack.c.l.b16 %v394
        %v887 = vunpack.c.h.b16 %v394
        %v888 = vunpack.c.l.b16 %v395
        %v889 = vunpack.c.h.b16 %v395
        %v890 = vunpack.c.l.b16 %v396
        %v891 = vunpack.c.h.b16 %v396
        %v892 = vunpack.c.l.b16 %v397
        %v893 = vunpack.c.h.b16 %v397
        %v894 = vpack.c.b16 %v804, %v798
        %v895 = vpack.c.b16 %v805, %v799
        %v896 = vpack.c.b16 %v806, %v800
        %v897 = vpack.c.b16 %v807, %v801
        %v898 = vpack.c.b16 %v808, %v802
        %v899 = vpack.c.b16 %v809, %v803
        %v900 = vpack.c.b16 %v816, %v810
        %v901 = vpack.c.b16 %v817, %v811
        %v902 = vpack.c.b16 %v818, %v812
        %v903 = vpack.c.b16 %v819, %v813
        %v904 = vpack.c.b16 %v820, %v814
        %v905 = vpack.c.b16 %v821, %v815
        %v906 = vpack.c.b16 %v828, %v822
        %v907 = vpack.c.b16 %v829, %v823
        %v908 = vpack.c.b16 %v830, %v824
        %v909 = vpack.c.b16 %v831, %v825
        %v910 = vpack.c.b16 %v832, %v826
        %v911 = vpack.c.b16 %v833, %v827
        %v912 = vpack.c.b16 %v840, %v834
        %v913 = vpack.c.b16 %v841, %v835
        %v914 = vpack.c.b16 %v842, %v836
        %v915 = vpack.c.b16 %v843, %v837
        %v916 = vpack.c.b16 %v844, %v838
        %v917 = vpack.c.b16 %v845, %v839
        %v918 = vpack.c.b16 %v852, %v846
        %v919 = vpack.c.b16 %v853, %v847
        %v920 = vpack.c.b16 %v854, %v848
        %v921 = vpack.c.b16 %v855, %v849
        %v922 = vpack.c.b16 %v856, %v850
        %v923 = vpack.c.b16 %v857, %v851
        %v924 = vpack.c.b16 %v864, %v858
        %v925 = vpack.c.b16 %v865, %v859
        %v926 = vpack.c.b16 %v866, %v860
        %v927 = vpack.c.b16 %v867, %v861
        %v928 = vpack.c.b16 %v868, %v862
        %v929 = vpack.c.b16 %v869, %v863
        %v930 = vpack.c.b16 %v876, %v870
        %v931 = vpack.c.b16 %v877, %v871
        %v932 = vpack.c.b16 %v878, %v872
        %v933 = vpack.c.b16 %v879, %v873
        %v934 = vpack.c.b16 %v880, %v874
        %v935 = vpack.c.b16 %v881, %v875
        %v936 = vpack.c.b16 %v888, %v882
        %v937 = vpack.c.b16 %v889, %v883
        %v938 = vpack.c.b16 %v890, %v884
        %v939 = vpack.c.b16 %v891, %v885
        %v940 = vpack.c.b16 %v892, %v886
        %v941 = vpack.c.b16 %v893, %v887
        %990 = vmatprep.subr.bf16.mxu0 %v895
        %991 = vmatpush1.bf16.msra.mxu0 %v894
        %992 = vmatprep.subr.bf16.mxu0 %v901
        %993 = vmatpush1.bf16.msra.mxu0 %v900
        %994 = vmatprep.subr.bf16.mxu0 %v907
        %995 = vmatpush1.bf16.msra.mxu0 %v906
        %996 = vmatprep.subr.bf16.mxu0 %v913
        %997 = vmatpush1.bf16.msra.mxu0 %v912
        %998 = vmatprep.subr.bf16.mxu0 %v919
        %999 = vmatpush1.bf16.msra.mxu0 %v918
        %1000 = vmatprep.subr.bf16.mxu0 %v925
        %1001 = vmatpush1.bf16.msra.mxu0 %v924
        %1002 = vmatprep.subr.bf16.mxu0 %v931
        %1003 = vmatpush1.bf16.msra.mxu0 %v930
        %1004 = vmatprep.subr.bf16.mxu0 %v937
        %1005 = vmatpush1.bf16.msra.mxu0 %v936
        %1006 = vmatprep.subr.bf16.mxu0 0
        %1007 = vmatpush1.bf16.msra.mxu0 0
        %1008 = vmatprep.subr.bf16.mxu0 0
        %1009 = vmatpush1.bf16.msra.mxu0 0
        %1010 = vmatprep.subr.bf16.mxu0 0
        %1011 = vmatpush1.bf16.msra.mxu0 0
        %1012 = vmatprep.subr.bf16.mxu0 0
        %1013 = vmatpush1.bf16.msra.mxu0 0
        %1014 = vmatprep.subr.bf16.mxu0 0
        %1015 = vmatpush1.bf16.msra.mxu0 0
        %1016 = vmatprep.subr.bf16.mxu0 0
        %1017 = vmatpush1.bf16.msra.mxu0 0
        %1018 = vmatprep.subr.bf16.mxu0 0
        %1019 = vmatpush1.bf16.msra.mxu0 0
        %1020 = vmatprep.subr.bf16.mxu0 0
        %1021 = vmatpush1.bf16.msra.mxu0 0
        %1022 = vmatprep.mubr.bf16.mxu0 0
        %1023 = vmatmul.mubr.bf16.gmra.mrb[0].mxu0 %v342
        %v1024 = vpop.f32.mrb[0].mxu0
        %v1025 = vadd.f32 0.0, %v1024
        %v1026 = vpop.f32.mrb[0].mxu0
        %v1027 = vadd.f32 0.0, %v1026
        %v1028 = vpop.f32.mrb[0].mxu0
        %v1029 = vpop.f32.mrb[0].mxu0
        %1030 = vdwg.mxu0
        %1031 = vmatprep.subr.bf16.mxu0 %v897
        %1032 = vmatpush1.bf16.msra.mxu0 %v896
        %1033 = vmatprep.subr.bf16.mxu0 %v903
        %1034 = vmatpush1.bf16.msra.mxu0 %v902
        %1035 = vmatprep.subr.bf16.mxu0 %v909
        %1036 = vmatpush1.bf16.msra.mxu0 %v908
        %1037 = vmatprep.subr.bf16.mxu0 %v915
        %1038 = vmatpush1.bf16.msra.mxu0 %v914
        %1039 = vmatprep.subr.bf16.mxu0 %v921
        %1040 = vmatpush1.bf16.msra.mxu0 %v920
        %1041 = vmatprep.subr.bf16.mxu0 %v927
        %1042 = vmatpush1.bf16.msra.mxu0 %v926
        %1043 = vmatprep.subr.bf16.mxu0 %v933
        %1044 = vmatpush1.bf16.msra.mxu0 %v932
        %1045 = vmatprep.subr.bf16.mxu0 %v939
        %1046 = vmatpush1.bf16.msra.mxu0 %v938
        %1047 = vmatprep.subr.bf16.mxu0 0
        %1048 = vmatpush1.bf16.msra.mxu0 0
        %1049 = vmatprep.subr.bf16.mxu0 0
        %1050 = vmatpush1.bf16.msra.mxu0 0
        %1051 = vmatprep.subr.bf16.mxu0 0
        %1052 = vmatpush1.bf16.msra.mxu0 0
        %1053 = vmatprep.subr.bf16.mxu0 0
        %1054 = vmatpush1.bf16.msra.mxu0 0
        %1055 = vmatprep.subr.bf16.mxu0 0
        %1056 = vmatpush1.bf16.msra.mxu0 0
        %1057 = vmatprep.subr.bf16.mxu0 0
        %1058 = vmatpush1.bf16.msra.mxu0 0
        %1059 = vmatprep.subr.bf16.mxu0 0
        %1060 = vmatpush1.bf16.msra.mxu0 0
        %1061 = vmatprep.subr.bf16.mxu0 0
        %1062 = vmatpush1.bf16.msra.mxu0 0
        %1063 = vmatprep.mubr.bf16.mxu0 0
        %1064 = vmatmul.mubr.bf16.gmra.mrb[0].mxu0 %v342
        %v1065 = vpop.f32.mrb[0].mxu0
        %v1066 = vadd.f32 0.0, %v1065
        %v1067 = vpop.f32.mrb[0].mxu0
        %v1068 = vadd.f32 0.0, %v1067
        %v1069 = vpop.f32.mrb[0].mxu0
        %v1070 = vpop.f32.mrb[0].mxu0
        %1071 = vdwg.mxu0
        %1072 = vmatprep.subr.bf16.mxu0 %v899
        %1073 = vmatpush1.bf16.msra.mxu0 %v898
        %1074 = vmatprep.subr.bf16.mxu0 %v905
        %1075 = vmatpush1.bf16.msra.mxu0 %v904
        %1076 = vmatprep.subr.bf16.mxu0 %v911
        %1077 = vmatpush1.bf16.msra.mxu0 %v910
        %1078 = vmatprep.subr.bf16.mxu0 %v917
        %1079 = vmatpush1.bf16.msra.mxu0 %v916
        %1080 = vmatprep.subr.bf16.mxu0 %v923
        %1081 = vmatpush1.bf16.msra.mxu0 %v922
        %1082 = vmatprep.subr.bf16.mxu0 %v929
        %1083 = vmatpush1.bf16.msra.mxu0 %v928
        %1084 = vmatprep.subr.bf16.mxu0 %v935
        %1085 = vmatpush1.bf16.msra.mxu0 %v934
        %1086 = vmatprep.subr.bf16.mxu0 %v941
        %1087 = vmatpush1.bf16.msra.mxu0 %v940
        %1088 = vmatprep.subr.bf16.mxu0 0
        %1089 = vmatpush1.bf16.msra.mxu0 0
        %1090 = vmatprep.subr.bf16.mxu0 0
        %1091 = vmatpush1.bf16.msra.mxu0 0
        %1092 = vmatprep.subr.bf16.mxu0 0
        %1093 = vmatpush1.bf16.msra.mxu0 0
        %1094 = vmatprep.subr.bf16.mxu0 0
        %1095 = vmatpush1.bf16.msra.mxu0 0
        %1096 = vmatprep.subr.bf16.mxu0 0
        %1097 = vmatpush1.bf16.msra.mxu0 0
        %1098 = vmatprep.subr.bf16.mxu0 0
        %1099 = vmatpush1.bf16.msra.mxu0 0
        %1100 = vmatprep.subr.bf16.mxu0 0
        %1101 = vmatpush1.bf16.msra.mxu0 0
        %1102 = vmatprep.subr.bf16.mxu0 0
        %1103 = vmatpush1.bf16.msra.mxu0 0
        %1104 = vmatprep.mubr.bf16.mxu0 0
        %1105 = vmatmul.mubr.bf16.gmra.mrb[0].mxu0 %v342
        %v1106 = vpop.f32.mrb[0].mxu0
        %v1107 = vadd.f32 0.0, %v1106
        %v1108 = vpop.f32.mrb[0].mxu0
        %v1109 = vadd.f32 0.0, %v1108
        %v1110 = vpop.f32.mrb[0].mxu0
        %v1111 = vpop.f32.mrb[0].mxu0
        %1112 = vdwg.mxu0
        %v1161 = vunpack.c.l.b16 %v398
        %v1162 = vunpack.c.h.b16 %v398
        %v1163 = vunpack.c.l.b16 %v399
        %v1164 = vunpack.c.h.b16 %v399
        %v1165 = vunpack.c.l.b16 %v400
        %v1166 = vunpack.c.h.b16 %v400
        %v1167 = vunpack.c.l.b16 %v401
        %v1168 = vunpack.c.h.b16 %v401
        %v1169 = vunpack.c.l.b16 %v402
        %v1170 = vunpack.c.h.b16 %v402
        %v1171 = vunpack.c.l.b16 %v403
        %v1172 = vunpack.c.h.b16 %v403
        %v1173 = vunpack.c.l.b16 %v404
        %v1174 = vunpack.c.h.b16 %v404
        %v1175 = vunpack.c.l.b16 %v405
        %v1176 = vunpack.c.h.b16 %v405
        %v1177 = vunpack.c.l.b16 %v406
        %v1178 = vunpack.c.h.b16 %v406
        %v1179 = vunpack.c.l.b16 %v407
        %v1180 = vunpack.c.h.b16 %v407
        %v1181 = vunpack.c.l.b16 %v408
        %v1182 = vunpack.c.h.b16 %v408
        %v1183 = vunpack.c.l.b16 %v409
        %v1184 = vunpack.c.h.b16 %v409
        %v1185 = vunpack.c.l.b16 %v410
        %v1186 = vunpack.c.h.b16 %v410
        %v1187 = vunpack.c.l.b16 %v411
        %v1188 = vunpack.c.h.b16 %v411
        %v1189 = vunpack.c.l.b16 %v412
        %v1190 = vunpack.c.h.b16 %v412
        %v1191 = vunpack.c.l.b16 %v413
        %v1192 = vunpack.c.h.b16 %v413
        %v1193 = vunpack.c.l.b16 %v414
        %v1194 = vunpack.c.h.b16 %v414
        %v1195 = vunpack.c.l.b16 %v415
        %v1196 = vunpack.c.h.b16 %v415
        %v1197 = vunpack.c.l.b16 %v416
        %v1198 = vunpack.c.h.b16 %v416
        %v1199 = vunpack.c.l.b16 %v417
        %v1200 = vunpack.c.h.b16 %v417
        %v1201 = vunpack.c.l.b16 %v418
        %v1202 = vunpack.c.h.b16 %v418
        %v1203 = vunpack.c.l.b16 %v419
        %v1204 = vunpack.c.h.b16 %v419
        %v1205 = vunpack.c.l.b16 %v420
        %v1206 = vunpack.c.h.b16 %v420
        %v1207 = vunpack.c.l.b16 %v421
        %v1208 = vunpack.c.h.b16 %v421
        %v1209 = vunpack.c.l.b16 %v422
        %v1210 = vunpack.c.h.b16 %v422
        %v1211 = vunpack.c.l.b16 %v423
        %v1212 = vunpack.c.h.b16 %v423
        %v1213 = vunpack.c.l.b16 %v424
        %v1214 = vunpack.c.h.b16 %v424
        %v1215 = vunpack.c.l.b16 %v425
        %v1216 = vunpack.c.h.b16 %v425
        %v1217 = vunpack.c.l.b16 %v426
        %v1218 = vunpack.c.h.b16 %v426
        %v1219 = vunpack.c.l.b16 %v427
        %v1220 = vunpack.c.h.b16 %v427
        %v1221 = vunpack.c.l.b16 %v428
        %v1222 = vunpack.c.h.b16 %v428
        %v1223 = vunpack.c.l.b16 %v429
        %v1224 = vunpack.c.h.b16 %v429
        %v1225 = vunpack.c.l.b16 %v430
        %v1226 = vunpack.c.h.b16 %v430
        %v1227 = vunpack.c.l.b16 %v431
        %v1228 = vunpack.c.h.b16 %v431
        %v1229 = vunpack.c.l.b16 %v432
        %v1230 = vunpack.c.h.b16 %v432
        %v1231 = vunpack.c.l.b16 %v433
        %v1232 = vunpack.c.h.b16 %v433
        %v1233 = vunpack.c.l.b16 %v434
        %v1234 = vunpack.c.h.b16 %v434
        %v1235 = vunpack.c.l.b16 %v435
        %v1236 = vunpack.c.h.b16 %v435
        %v1237 = vunpack.c.l.b16 %v436
        %v1238 = vunpack.c.h.b16 %v436
        %v1239 = vunpack.c.l.b16 %v437
        %v1240 = vunpack.c.h.b16 %v437
        %v1241 = vunpack.c.l.b16 %v438
        %v1242 = vunpack.c.h.b16 %v438
        %v1243 = vunpack.c.l.b16 %v439
        %v1244 = vunpack.c.h.b16 %v439
        %v1245 = vunpack.c.l.b16 %v440
        %v1246 = vunpack.c.h.b16 %v440
        %v1247 = vunpack.c.l.b16 %v441
        %v1248 = vunpack.c.h.b16 %v441
        %v1249 = vunpack.c.l.b16 %v442
        %v1250 = vunpack.c.h.b16 %v442
        %v1251 = vunpack.c.l.b16 %v443
        %v1252 = vunpack.c.h.b16 %v443
        %v1253 = vunpack.c.l.b16 %v444
        %v1254 = vunpack.c.h.b16 %v444
        %v1255 = vunpack.c.l.b16 %v445
        %v1256 = vunpack.c.h.b16 %v445
        %v1257 = vpack.c.b16 %v1167, %v1161
        %v1258 = vpack.c.b16 %v1168, %v1162
        %v1259 = vpack.c.b16 %v1169, %v1163
        %v1260 = vpack.c.b16 %v1170, %v1164
        %v1261 = vpack.c.b16 %v1171, %v1165
        %v1262 = vpack.c.b16 %v1172, %v1166
        %v1263 = vpack.c.b16 %v1179, %v1173
        %v1264 = vpack.c.b16 %v1180, %v1174
        %v1265 = vpack.c.b16 %v1181, %v1175
        %v1266 = vpack.c.b16 %v1182, %v1176
        %v1267 = vpack.c.b16 %v1183, %v1177
        %v1268 = vpack.c.b16 %v1184, %v1178
        %v1269 = vpack.c.b16 %v1191, %v1185
        %v1270 = vpack.c.b16 %v1192, %v1186
        %v1271 = vpack.c.b16 %v1193, %v1187
        %v1272 = vpack.c.b16 %v1194, %v1188
        %v1273 = vpack.c.b16 %v1195, %v1189
        %v1274 = vpack.c.b16 %v1196, %v1190
        %v1275 = vpack.c.b16 %v1203, %v1197
        %v1276 = vpack.c.b16 %v1204, %v1198
        %v1277 = vpack.c.b16 %v1205, %v1199
        %v1278 = vpack.c.b16 %v1206, %v1200
        %v1279 = vpack.c.b16 %v1207, %v1201
        %v1280 = vpack.c.b16 %v1208, %v1202
        %v1281 = vpack.c.b16 %v1215, %v1209
        %v1282 = vpack.c.b16 %v1216, %v1210
        %v1283 = vpack.c.b16 %v1217, %v1211
        %v1284 = vpack.c.b16 %v1218, %v1212
        %v1285 = vpack.c.b16 %v1219, %v1213
        %v1286 = vpack.c.b16 %v1220, %v1214
        %v1287 = vpack.c.b16 %v1227, %v1221
        %v1288 = vpack.c.b16 %v1228, %v1222
        %v1289 = vpack.c.b16 %v1229, %v1223
        %v1290 = vpack.c.b16 %v1230, %v1224
        %v1291 = vpack.c.b16 %v1231, %v1225
        %v1292 = vpack.c.b16 %v1232, %v1226
        %v1293 = vpack.c.b16 %v1239, %v1233
        %v1294 = vpack.c.b16 %v1240, %v1234
        %v1295 = vpack.c.b16 %v1241, %v1235
        %v1296 = vpack.c.b16 %v1242, %v1236
        %v1297 = vpack.c.b16 %v1243, %v1237
        %v1298 = vpack.c.b16 %v1244, %v1238
        %v1299 = vpack.c.b16 %v1251, %v1245
        %v1300 = vpack.c.b16 %v1252, %v1246
        %v1301 = vpack.c.b16 %v1253, %v1247
        %v1302 = vpack.c.b16 %v1254, %v1248
        %v1303 = vpack.c.b16 %v1255, %v1249
        %v1304 = vpack.c.b16 %v1256, %v1250
        %1353 = vmatprep.subr.bf16.mxu0 %v1258
        %1354 = vmatpush1.bf16.msra.mxu0 %v1257
        %1355 = vmatprep.subr.bf16.mxu0 %v1264
        %1356 = vmatpush1.bf16.msra.mxu0 %v1263
        %1357 = vmatprep.subr.bf16.mxu0 %v1270
        %1358 = vmatpush1.bf16.msra.mxu0 %v1269
        %1359 = vmatprep.subr.bf16.mxu0 %v1276
        %1360 = vmatpush1.bf16.msra.mxu0 %v1275
        %1361 = vmatprep.subr.bf16.mxu0 %v1282
        %1362 = vmatpush1.bf16.msra.mxu0 %v1281
        %1363 = vmatprep.subr.bf16.mxu0 %v1288
        %1364 = vmatpush1.bf16.msra.mxu0 %v1287
        %1365 = vmatprep.subr.bf16.mxu0 %v1294
        %1366 = vmatpush1.bf16.msra.mxu0 %v1293
        %1367 = vmatprep.subr.bf16.mxu0 %v1300
        %1368 = vmatpush1.bf16.msra.mxu0 %v1299
        %1369 = vmatprep.subr.bf16.mxu0 0
        %1370 = vmatpush1.bf16.msra.mxu0 0
        %1371 = vmatprep.subr.bf16.mxu0 0
        %1372 = vmatpush1.bf16.msra.mxu0 0
        %1373 = vmatprep.subr.bf16.mxu0 0
        %1374 = vmatpush1.bf16.msra.mxu0 0
        %1375 = vmatprep.subr.bf16.mxu0 0
        %1376 = vmatpush1.bf16.msra.mxu0 0
        %1377 = vmatprep.subr.bf16.mxu0 0
        %1378 = vmatpush1.bf16.msra.mxu0 0
        %1379 = vmatprep.subr.bf16.mxu0 0
        %1380 = vmatpush1.bf16.msra.mxu0 0
        %1381 = vmatprep.subr.bf16.mxu0 0
        %1382 = vmatpush1.bf16.msra.mxu0 0
        %1383 = vmatprep.subr.bf16.mxu0 0
        %1384 = vmatpush1.bf16.msra.mxu0 0
        %1385 = vmatprep.mubr.bf16.mxu0 0
        %1386 = vmatmul.mubr.bf16.gmra.mrb[0].mxu0 %v343
        %v1387 = vpop.f32.mrb[0].mxu0
        %v1388 = vadd.f32 0.0, %v1387
        %v1389 = vpop.f32.mrb[0].mxu0
        %v1390 = vadd.f32 0.0, %v1389
        %v1391 = vpop.f32.mrb[0].mxu0
        %v1392 = vpop.f32.mrb[0].mxu0
        %1393 = vdwg.mxu0
        %1394 = vmatprep.subr.bf16.mxu0 %v1260
        %1395 = vmatpush1.bf16.msra.mxu0 %v1259
        %1396 = vmatprep.subr.bf16.mxu0 %v1266
        %1397 = vmatpush1.bf16.msra.mxu0 %v1265
        %1398 = vmatprep.subr.bf16.mxu0 %v1272
        %1399 = vmatpush1.bf16.msra.mxu0 %v1271
        %1400 = vmatprep.subr.bf16.mxu0 %v1278
        %1401 = vmatpush1.bf16.msra.mxu0 %v1277
        %1402 = vmatprep.subr.bf16.mxu0 %v1284
        %1403 = vmatpush1.bf16.msra.mxu0 %v1283
        %1404 = vmatprep.subr.bf16.mxu0 %v1290
        %1405 = vmatpush1.bf16.msra.mxu0 %v1289
        %1406 = vmatprep.subr.bf16.mxu0 %v1296
        %1407 = vmatpush1.bf16.msra.mxu0 %v1295
        %1408 = vmatprep.subr.bf16.mxu0 %v1302
        %1409 = vmatpush1.bf16.msra.mxu0 %v1301
        %1410 = vmatprep.subr.bf16.mxu0 0
        %1411 = vmatpush1.bf16.msra.mxu0 0
        %1412 = vmatprep.subr.bf16.mxu0 0
        %1413 = vmatpush1.bf16.msra.mxu0 0
        %1414 = vmatprep.subr.bf16.mxu0 0
        %1415 = vmatpush1.bf16.msra.mxu0 0
        %1416 = vmatprep.subr.bf16.mxu0 0
        %1417 = vmatpush1.bf16.msra.mxu0 0
        %1418 = vmatprep.subr.bf16.mxu0 0
        %1419 = vmatpush1.bf16.msra.mxu0 0
        %1420 = vmatprep.subr.bf16.mxu0 0
        %1421 = vmatpush1.bf16.msra.mxu0 0
        %1422 = vmatprep.subr.bf16.mxu0 0
        %1423 = vmatpush1.bf16.msra.mxu0 0
        %1424 = vmatprep.subr.bf16.mxu0 0
        %1425 = vmatpush1.bf16.msra.mxu0 0
        %1426 = vmatprep.mubr.bf16.mxu0 0
        %1427 = vmatmul.mubr.bf16.gmra.mrb[0].mxu0 %v343
        %v1428 = vpop.f32.mrb[0].mxu0
        %v1429 = vadd.f32 0.0, %v1428
        %v1430 = vpop.f32.mrb[0].mxu0
        %v1431 = vadd.f32 0.0, %v1430
        %v1432 = vpop.f32.mrb[0].mxu0
        %v1433 = vpop.f32.mrb[0].mxu0
        %1434 = vdwg.mxu0
        %1435 = vmatprep.subr.bf16.mxu0 %v1262
        %1436 = vmatpush1.bf16.msra.mxu0 %v1261
        %1437 = vmatprep.subr.bf16.mxu0 %v1268
        %1438 = vmatpush1.bf16.msra.mxu0 %v1267
        %1439 = vmatprep.subr.bf16.mxu0 %v1274
        %1440 = vmatpush1.bf16.msra.mxu0 %v1273
        %1441 = vmatprep.subr.bf16.mxu0 %v1280
        %1442 = vmatpush1.bf16.msra.mxu0 %v1279
        %1443 = vmatprep.subr.bf16.mxu0 %v1286
        %1444 = vmatpush1.bf16.msra.mxu0 %v1285
        %1445 = vmatprep.subr.bf16.mxu0 %v1292
        %1446 = vmatpush1.bf16.msra.mxu0 %v1291
        %1447 = vmatprep.subr.bf16.mxu0 %v1298
        %1448 = vmatpush1.bf16.msra.mxu0 %v1297
        %1449 = vmatprep.subr.bf16.mxu0 %v1304
        %1450 = vmatpush1.bf16.msra.mxu0 %v1303
        %1451 = vmatprep.subr.bf16.mxu0 0
        %1452 = vmatpush1.bf16.msra.mxu0 0
        %1453 = vmatprep.subr.bf16.mxu0 0
        %1454 = vmatpush1.bf16.msra.mxu0 0
        %1455 = vmatprep.subr.bf16.mxu0 0
        %1456 = vmatpush1.bf16.msra.mxu0 0
        %1457 = vmatprep.subr.bf16.mxu0 0
        %1458 = vmatpush1.bf16.msra.mxu0 0
        %1459 = vmatprep.subr.bf16.mxu0 0
        %1460 = vmatpush1.bf16.msra.mxu0 0
        %1461 = vmatprep.subr.bf16.mxu0 0
        %1462 = vmatpush1.bf16.msra.mxu0 0
        %1463 = vmatprep.subr.bf16.mxu0 0
        %1464 = vmatpush1.bf16.msra.mxu0 0
        %1465 = vmatprep.subr.bf16.mxu0 0
        %1466 = vmatpush1.bf16.msra.mxu0 0
        %1467 = vmatprep.mubr.bf16.mxu0 0
        %1468 = vmatmul.mubr.bf16.gmra.mrb[0].mxu0 %v343
        %v1469 = vpop.f32.mrb[0].mxu0
        %v1470 = vadd.f32 0.0, %v1469
        %v1471 = vpop.f32.mrb[0].mxu0
        %v1472 = vadd.f32 0.0, %v1471
        %v1473 = vpop.f32.mrb[0].mxu0
        %v1474 = vpop.f32.mrb[0].mxu0
        %1475 = vdwg.mxu0
        %v1524 = vunpack.c.l.b16 %v446
        %v1525 = vunpack.c.h.b16 %v446
        %v1526 = vunpack.c.l.b16 %v447
        %v1527 = vunpack.c.h.b16 %v447
        %v1528 = vunpack.c.l.b16 %v448
        %v1529 = vunpack.c.h.b16 %v448
        %v1530 = vunpack.c.l.b16 %v449
        %v1531 = vunpack.c.h.b16 %v449
        %v1532 = vunpack.c.l.b16 %v450
        %v1533 = vunpack.c.h.b16 %v450
        %v1534 = vunpack.c.l.b16 %v451
        %v1535 = vunpack.c.h.b16 %v451
        %v1536 = vunpack.c.l.b16 %v452
        %v1537 = vunpack.c.h.b16 %v452
        %v1538 = vunpack.c.l.b16 %v453
        %v1539 = vunpack.c.h.b16 %v453
        %v1540 = vunpack.c.l.b16 %v454
        %v1541 = vunpack.c.h.b16 %v454
        %v1542 = vunpack.c.l.b16 %v455
        %v1543 = vunpack.c.h.b16 %v455
        %v1544 = vunpack.c.l.b16 %v456
        %v1545 = vunpack.c.h.b16 %v456
        %v1546 = vunpack.c.l.b16 %v457
        %v1547 = vunpack.c.h.b16 %v457
        %v1548 = vunpack.c.l.b16 %v458
        %v1549 = vunpack.c.h.b16 %v458
        %v1550 = vunpack.c.l.b16 %v459
        %v1551 = vunpack.c.h.b16 %v459
        %v1552 = vunpack.c.l.b16 %v460
        %v1553 = vunpack.c.h.b16 %v460
        %v1554 = vunpack.c.l.b16 %v461
        %v1555 = vunpack.c.h.b16 %v461
        %v1556 = vunpack.c.l.b16 %v462
        %v1557 = vunpack.c.h.b16 %v462
        %v1558 = vunpack.c.l.b16 %v463
        %v1559 = vunpack.c.h.b16 %v463
        %v1560 = vunpack.c.l.b16 %v464
        %v1561 = vunpack.c.h.b16 %v464
        %v1562 = vunpack.c.l.b16 %v465
        %v1563 = vunpack.c.h.b16 %v465
        %v1564 = vunpack.c.l.b16 %v466
        %v1565 = vunpack.c.h.b16 %v466
        %v1566 = vunpack.c.l.b16 %v467
        %v1567 = vunpack.c.h.b16 %v467
        %v1568 = vunpack.c.l.b16 %v468
        %v1569 = vunpack.c.h.b16 %v468
        %v1570 = vunpack.c.l.b16 %v469
        %v1571 = vunpack.c.h.b16 %v469
        %v1572 = vunpack.c.l.b16 %v470
        %v1573 = vunpack.c.h.b16 %v470
        %v1574 = vunpack.c.l.b16 %v471
        %v1575 = vunpack.c.h.b16 %v471
        %v1576 = vunpack.c.l.b16 %v472
        %v1577 = vunpack.c.h.b16 %v472
        %v1578 = vunpack.c.l.b16 %v473
        %v1579 = vunpack.c.h.b16 %v473
        %v1580 = vunpack.c.l.b16 %v474
        %v1581 = vunpack.c.h.b16 %v474
        %v1582 = vunpack.c.l.b16 %v475
        %v1583 = vunpack.c.h.b16 %v475
        %v1584 = vunpack.c.l.b16 %v476
        %v1585 = vunpack.c.h.b16 %v476
        %v1586 = vunpack.c.l.b16 %v477
        %v1587 = vunpack.c.h.b16 %v477
        %v1588 = vunpack.c.l.b16 %v478
        %v1589 = vunpack.c.h.b16 %v478
        %v1590 = vunpack.c.l.b16 %v479
        %v1591 = vunpack.c.h.b16 %v479
        %v1592 = vunpack.c.l.b16 %v480
        %v1593 = vunpack.c.h.b16 %v480
        %v1594 = vunpack.c.l.b16 %v481
        %v1595 = vunpack.c.h.b16 %v481
        %v1596 = vunpack.c.l.b16 %v482
        %v1597 = vunpack.c.h.b16 %v482
        %v1598 = vunpack.c.l.b16 %v483
        %v1599 = vunpack.c.h.b16 %v483
        %v1600 = vunpack.c.l.b16 %v484
        %v1601 = vunpack.c.h.b16 %v484
        %v1602 = vunpack.c.l.b16 %v485
        %v1603 = vunpack.c.h.b16 %v485
        %v1604 = vunpack.c.l.b16 %v486
        %v1605 = vunpack.c.h.b16 %v486
        %v1606 = vunpack.c.l.b16 %v487
        %v1607 = vunpack.c.h.b16 %v487
        %v1608 = vunpack.c.l.b16 %v488
        %v1609 = vunpack.c.h.b16 %v488
        %v1610 = vunpack.c.l.b16 %v489
        %v1611 = vunpack.c.h.b16 %v489
        %v1612 = vunpack.c.l.b16 %v490
        %v1613 = vunpack.c.h.b16 %v490
        %v1614 = vunpack.c.l.b16 %v491
        %v1615 = vunpack.c.h.b16 %v491
        %v1616 = vunpack.c.l.b16 %v492
        %v1617 = vunpack.c.h.b16 %v492
        %v1618 = vunpack.c.l.b16 %v493
        %v1619 = vunpack.c.h.b16 %v493
        %v1620 = vpack.c.b16 %v1530, %v1524
        %v1621 = vpack.c.b16 %v1531, %v1525
        %v1622 = vpack.c.b16 %v1532, %v1526
        %v1623 = vpack.c.b16 %v1533, %v1527
        %v1624 = vpack.c.b16 %v1534, %v1528
        %v1625 = vpack.c.b16 %v1535, %v1529
        %v1626 = vpack.c.b16 %v1542, %v1536
        %v1627 = vpack.c.b16 %v1543, %v1537
        %v1628 = vpack.c.b16 %v1544, %v1538
        %v1629 = vpack.c.b16 %v1545, %v1539
        %v1630 = vpack.c.b16 %v1546, %v1540
        %v1631 = vpack.c.b16 %v1547, %v1541
        %v1632 = vpack.c.b16 %v1554, %v1548
        %v1633 = vpack.c.b16 %v1555, %v1549
        %v1634 = vpack.c.b16 %v1556, %v1550
        %v1635 = vpack.c.b16 %v1557, %v1551
        %v1636 = vpack.c.b16 %v1558, %v1552
        %v1637 = vpack.c.b16 %v1559, %v1553
        %v1638 = vpack.c.b16 %v1566, %v1560
        %v1639 = vpack.c.b16 %v1567, %v1561
        %v1640 = vpack.c.b16 %v1568, %v1562
        %v1641 = vpack.c.b16 %v1569, %v1563
        %v1642 = vpack.c.b16 %v1570, %v1564
        %v1643 = vpack.c.b16 %v1571, %v1565
        %v1644 = vpack.c.b16 %v1578, %v1572
        %v1645 = vpack.c.b16 %v1579, %v1573
        %v1646 = vpack.c.b16 %v1580, %v1574
        %v1647 = vpack.c.b16 %v1581, %v1575
        %v1648 = vpack.c.b16 %v1582, %v1576
        %v1649 = vpack.c.b16 %v1583, %v1577
        %v1650 = vpack.c.b16 %v1590, %v1584
        %v1651 = vpack.c.b16 %v1591, %v1585
        %v1652 = vpack.c.b16 %v1592, %v1586
        %v1653 = vpack.c.b16 %v1593, %v1587
        %v1654 = vpack.c.b16 %v1594, %v1588
        %v1655 = vpack.c.b16 %v1595, %v1589
        %v1656 = vpack.c.b16 %v1602, %v1596
        %v1657 = vpack.c.b16 %v1603, %v1597
        %v1658 = vpack.c.b16 %v1604, %v1598
        %v1659 = vpack.c.b16 %v1605, %v1599
        %v1660 = vpack.c.b16 %v1606, %v1600
        %v1661 = vpack.c.b16 %v1607, %v1601
        %v1662 = vpack.c.b16 %v1614, %v1608
        %v1663 = vpack.c.b16 %v1615, %v1609
        %v1664 = vpack.c.b16 %v1616, %v1610
        %v1665 = vpack.c.b16 %v1617, %v1611
        %v1666 = vpack.c.b16 %v1618, %v1612
        %v1667 = vpack.c.b16 %v1619, %v1613
        %1716 = vmatprep.subr.bf16.mxu0 %v1621
        %1717 = vmatpush1.bf16.msra.mxu0 %v1620
        %1718 = vmatprep.subr.bf16.mxu0 %v1627
        %1719 = vmatpush1.bf16.msra.mxu0 %v1626
        %1720 = vmatprep.subr.bf16.mxu0 %v1633
        %1721 = vmatpush1.bf16.msra.mxu0 %v1632
        %1722 = vmatprep.subr.bf16.mxu0 %v1639
        %1723 = vmatpush1.bf16.msra.mxu0 %v1638
        %1724 = vmatprep.subr.bf16.mxu0 %v1645
        %1725 = vmatpush1.bf16.msra.mxu0 %v1644
        %1726 = vmatprep.subr.bf16.mxu0 %v1651
        %1727 = vmatpush1.bf16.msra.mxu0 %v1650
        %1728 = vmatprep.subr.bf16.mxu0 %v1657
        %1729 = vmatpush1.bf16.msra.mxu0 %v1656
        %1730 = vmatprep.subr.bf16.mxu0 %v1663
        %1731 = vmatpush1.bf16.msra.mxu0 %v1662
        %1732 = vmatprep.subr.bf16.mxu0 0
        %1733 = vmatpush1.bf16.msra.mxu0 0
        %1734 = vmatprep.subr.bf16.mxu0 0
        %1735 = vmatpush1.bf16.msra.mxu0 0
        %1736 = vmatprep.subr.bf16.mxu0 0
        %1737 = vmatpush1.bf16.msra.mxu0 0
        %1738 = vmatprep.subr.bf16.mxu0 0
        %1739 = vmatpush1.bf16.msra.mxu0 0
        %1740 = vmatprep.subr.bf16.mxu0 0
        %1741 = vmatpush1.bf16.msra.mxu0 0
        %1742 = vmatprep.subr.bf16.mxu0 0
        %1743 = vmatpush1.bf16.msra.mxu0 0
        %1744 = vmatprep.subr.bf16.mxu0 0
        %1745 = vmatpush1.bf16.msra.mxu0 0
        %1746 = vmatprep.subr.bf16.mxu0 0
        %1747 = vmatpush1.bf16.msra.mxu0 0
        %1748 = vmatprep.mubr.bf16.mxu0 0
        %1749 = vmatmul.mubr.bf16.gmra.mrb[0].mxu0 %v344
        %v1750 = vpop.f32.mrb[0].mxu0
        %v1751 = vadd.f32 0.0, %v1750
        %v1752 = vpop.f32.mrb[0].mxu0
        %v1753 = vadd.f32 0.0, %v1752
        %v1754 = vpop.f32.mrb[0].mxu0
        %v1755 = vpop.f32.mrb[0].mxu0
        %1756 = vdwg.mxu0
        %1757 = vmatprep.subr.bf16.mxu0 %v1623
        %1758 = vmatpush1.bf16.msra.mxu0 %v1622
        %1759 = vmatprep.subr.bf16.mxu0 %v1629
        %1760 = vmatpush1.bf16.msra.mxu0 %v1628
        %1761 = vmatprep.subr.bf16.mxu0 %v1635
        %1762 = vmatpush1.bf16.msra.mxu0 %v1634
        %1763 = vmatprep.subr.bf16.mxu0 %v1641
        %1764 = vmatpush1.bf16.msra.mxu0 %v1640
        %1765 = vmatprep.subr.bf16.mxu0 %v1647
        %1766 = vmatpush1.bf16.msra.mxu0 %v1646
        %1767 = vmatprep.subr.bf16.mxu0 %v1653
        %1768 = vmatpush1.bf16.msra.mxu0 %v1652
        %1769 = vmatprep.subr.bf16.mxu0 %v1659
        %1770 = vmatpush1.bf16.msra.mxu0 %v1658
        %1771 = vmatprep.subr.bf16.mxu0 %v1665
        %1772 = vmatpush1.bf16.msra.mxu0 %v1664
        %1773 = vmatprep.subr.bf16.mxu0 0
        %1774 = vmatpush1.bf16.msra.mxu0 0
        %1775 = vmatprep.subr.bf16.mxu0 0
        %1776 = vmatpush1.bf16.msra.mxu0 0
        %1777 = vmatprep.subr.bf16.mxu0 0
        %1778 = vmatpush1.bf16.msra.mxu0 0
        %1779 = vmatprep.subr.bf16.mxu0 0
        %1780 = vmatpush1.bf16.msra.mxu0 0
        %1781 = vmatprep.subr.bf16.mxu0 0
        %1782 = vmatpush1.bf16.msra.mxu0 0
        %1783 = vmatprep.subr.bf16.mxu0 0
        %1784 = vmatpush1.bf16.msra.mxu0 0
        %1785 = vmatprep.subr.bf16.mxu0 0
        %1786 = vmatpush1.bf16.msra.mxu0 0
        %1787 = vmatprep.subr.bf16.mxu0 0
        %1788 = vmatpush1.bf16.msra.mxu0 0
        %1789 = vmatprep.mubr.bf16.mxu0 0
        %1790 = vmatmul.mubr.bf16.gmra.mrb[0].mxu0 %v344
        %v1791 = vpop.f32.mrb[0].mxu0
        %v1792 = vadd.f32 0.0, %v1791
        %v1793 = vpop.f32.mrb[0].mxu0
        %v1794 = vadd.f32 0.0, %v1793
        %v1795 = vpop.f32.mrb[0].mxu0
        %v1796 = vpop.f32.mrb[0].mxu0
        %1797 = vdwg.mxu0
        %1798 = vmatprep.subr.bf16.mxu0 %v1625
        %1799 = vmatpush1.bf16.msra.mxu0 %v1624
        %1800 = vmatprep.subr.bf16.mxu0 %v1631
        %1801 = vmatpush1.bf16.msra.mxu0 %v1630
        %1802 = vmatprep.subr.bf16.mxu0 %v1637
        %1803 = vmatpush1.bf16.msra.mxu0 %v1636
        %1804 = vmatprep.subr.bf16.mxu0 %v1643
        %1805 = vmatpush1.bf16.msra.mxu0 %v1642
        %1806 = vmatprep.subr.bf16.mxu0 %v1649
        %1807 = vmatpush1.bf16.msra.mxu0 %v1648
        %1808 = vmatprep.subr.bf16.mxu0 %v1655
        %1809 = vmatpush1.bf16.msra.mxu0 %v1654
        %1810 = vmatprep.subr.bf16.mxu0 %v1661
        %1811 = vmatpush1.bf16.msra.mxu0 %v1660
        %1812 = vmatprep.subr.bf16.mxu0 %v1667
        %1813 = vmatpush1.bf16.msra.mxu0 %v1666
        %1814 = vmatprep.subr.bf16.mxu0 0
        %1815 = vmatpush1.bf16.msra.mxu0 0
        %1816 = vmatprep.subr.bf16.mxu0 0
        %1817 = vmatpush1.bf16.msra.mxu0 0
        %1818 = vmatprep.subr.bf16.mxu0 0
        %1819 = vmatpush1.bf16.msra.mxu0 0
        %1820 = vmatprep.subr.bf16.mxu0 0
        %1821 = vmatpush1.bf16.msra.mxu0 0
        %1822 = vmatprep.subr.bf16.mxu0 0
        %1823 = vmatpush1.bf16.msra.mxu0 0
        %1824 = vmatprep.subr.bf16.mxu0 0
        %1825 = vmatpush1.bf16.msra.mxu0 0
        %1826 = vmatprep.subr.bf16.mxu0 0
        %1827 = vmatpush1.bf16.msra.mxu0 0
        %1828 = vmatprep.subr.bf16.mxu0 0
        %1829 = vmatpush1.bf16.msra.mxu0 0
        %1830 = vmatprep.mubr.bf16.mxu0 0
        %1831 = vmatmul.mubr.bf16.gmra.mrb[0].mxu0 %v344
        %v1832 = vpop.f32.mrb[0].mxu0
        %v1833 = vadd.f32 0.0, %v1832
        %v1834 = vpop.f32.mrb[0].mxu0
        %v1835 = vadd.f32 0.0, %v1834
        %v1836 = vpop.f32.mrb[0].mxu0
        %v1837 = vpop.f32.mrb[0].mxu0
        %1838 = vdwg.mxu0
        %v1887 = vunpack.c.l.b16 %v494
        %v1888 = vunpack.c.h.b16 %v494
        %v1889 = vunpack.c.l.b16 %v495
        %v1890 = vunpack.c.h.b16 %v495
        %v1891 = vunpack.c.l.b16 %v496
        %v1892 = vunpack.c.h.b16 %v496
        %v1893 = vunpack.c.l.b16 %v497
        %v1894 = vunpack.c.h.b16 %v497
        %v1895 = vunpack.c.l.b16 %v498
        %v1896 = vunpack.c.h.b16 %v498
        %v1897 = vunpack.c.l.b16 %v499
        %v1898 = vunpack.c.h.b16 %v499
        %v1899 = vunpack.c.l.b16 %v500
        %v1900 = vunpack.c.h.b16 %v500
        %v1901 = vunpack.c.l.b16 %v501
        %v1902 = vunpack.c.h.b16 %v501
        %v1903 = vunpack.c.l.b16 %v502
        %v1904 = vunpack.c.h.b16 %v502
        %v1905 = vunpack.c.l.b16 %v503
        %v1906 = vunpack.c.h.b16 %v503
        %v1907 = vunpack.c.l.b16 %v504
        %v1908 = vunpack.c.h.b16 %v504
        %v1909 = vunpack.c.l.b16 %v505
        %v1910 = vunpack.c.h.b16 %v505
        %v1911 = vunpack.c.l.b16 %v506
        %v1912 = vunpack.c.h.b16 %v506
        %v1913 = vunpack.c.l.b16 %v507
        %v1914 = vunpack.c.h.b16 %v507
        %v1915 = vunpack.c.l.b16 %v508
        %v1916 = vunpack.c.h.b16 %v508
        %v1917 = vunpack.c.l.b16 %v509
        %v1918 = vunpack.c.h.b16 %v509
        %v1919 = vunpack.c.l.b16 %v510
        %v1920 = vunpack.c.h.b16 %v510
        %v1921 = vunpack.c.l.b16 %v511
        %v1922 = vunpack.c.h.b16 %v511
        %v1923 = vunpack.c.l.b16 %v512
        %v1924 = vunpack.c.h.b16 %v512
        %v1925 = vunpack.c.l.b16 %v513
        %v1926 = vunpack.c.h.b16 %v513
        %v1927 = vunpack.c.l.b16 %v514
        %v1928 = vunpack.c.h.b16 %v514
        %v1929 = vunpack.c.l.b16 %v515
        %v1930 = vunpack.c.h.b16 %v515
        %v1931 = vunpack.c.l.b16 %v516
        %v1932 = vunpack.c.h.b16 %v516
        %v1933 = vunpack.c.l.b16 %v517
        %v1934 = vunpack.c.h.b16 %v517
        %v1935 = vunpack.c.l.b16 %v518
        %v1936 = vunpack.c.h.b16 %v518
        %v1937 = vunpack.c.l.b16 %v519
        %v1938 = vunpack.c.h.b16 %v519
        %v1939 = vunpack.c.l.b16 %v520
        %v1940 = vunpack.c.h.b16 %v520
        %v1941 = vunpack.c.l.b16 %v521
        %v1942 = vunpack.c.h.b16 %v521
        %v1943 = vunpack.c.l.b16 %v522
        %v1944 = vunpack.c.h.b16 %v522
        %v1945 = vunpack.c.l.b16 %v523
        %v1946 = vunpack.c.h.b16 %v523
        %v1947 = vunpack.c.l.b16 %v524
        %v1948 = vunpack.c.h.b16 %v524
        %v1949 = vunpack.c.l.b16 %v525
        %v1950 = vunpack.c.h.b16 %v525
        %v1951 = vunpack.c.l.b16 %v526
        %v1952 = vunpack.c.h.b16 %v526
        %v1953 = vunpack.c.l.b16 %v527
        %v1954 = vunpack.c.h.b16 %v527
        %v1955 = vunpack.c.l.b16 %v528
        %v1956 = vunpack.c.h.b16 %v528
        %v1957 = vunpack.c.l.b16 %v529
        %v1958 = vunpack.c.h.b16 %v529
        %v1959 = vunpack.c.l.b16 %v530
        %v1960 = vunpack.c.h.b16 %v530
        %v1961 = vunpack.c.l.b16 %v531
        %v1962 = vunpack.c.h.b16 %v531
        %v1963 = vunpack.c.l.b16 %v532
        %v1964 = vunpack.c.h.b16 %v532
        %v1965 = vunpack.c.l.b16 %v533
        %v1966 = vunpack.c.h.b16 %v533
        %v1967 = vunpack.c.l.b16 %v534
        %v1968 = vunpack.c.h.b16 %v534
        %v1969 = vunpack.c.l.b16 %v535
        %v1970 = vunpack.c.h.b16 %v535
        %v1971 = vunpack.c.l.b16 %v536
        %v1972 = vunpack.c.h.b16 %v536
        %v1973 = vunpack.c.l.b16 %v537
        %v1974 = vunpack.c.h.b16 %v537
        %v1975 = vunpack.c.l.b16 %v538
        %v1976 = vunpack.c.h.b16 %v538
        %v1977 = vunpack.c.l.b16 %v539
        %v1978 = vunpack.c.h.b16 %v539
        %v1979 = vunpack.c.l.b16 %v540
        %v1980 = vunpack.c.h.b16 %v540
        %v1981 = vunpack.c.l.b16 %v541
        %v1982 = vunpack.c.h.b16 %v541
        %v1983 = vpack.c.b16 %v1893, %v1887
        %v1984 = vpack.c.b16 %v1894, %v1888
        %v1985 = vpack.c.b16 %v1895, %v1889
        %v1986 = vpack.c.b16 %v1896, %v1890
        %v1987 = vpack.c.b16 %v1897, %v1891
        %v1988 = vpack.c.b16 %v1898, %v1892
        %v1989 = vpack.c.b16 %v1905, %v1899
        %v1990 = vpack.c.b16 %v1906, %v1900
        %v1991 = vpack.c.b16 %v1907, %v1901
        %v1992 = vpack.c.b16 %v1908, %v1902
        %v1993 = vpack.c.b16 %v1909, %v1903
        %v1994 = vpack.c.b16 %v1910, %v1904
        %v1995 = vpack.c.b16 %v1917, %v1911
        %v1996 = vpack.c.b16 %v1918, %v1912
        %v1997 = vpack.c.b16 %v1919, %v1913
        %v1998 = vpack.c.b16 %v1920, %v1914
        %v1999 = vpack.c.b16 %v1921, %v1915
        %v2000 = vpack.c.b16 %v1922, %v1916
        %v2001 = vpack.c.b16 %v1929, %v1923
        %v2002 = vpack.c.b16 %v1930, %v1924
        %v2003 = vpack.c.b16 %v1931, %v1925
        %v2004 = vpack.c.b16 %v1932, %v1926
        %v2005 = vpack.c.b16 %v1933, %v1927
        %v2006 = vpack.c.b16 %v1934, %v1928
        %v2007 = vpack.c.b16 %v1941, %v1935
        %v2008 = vpack.c.b16 %v1942, %v1936
        %v2009 = vpack.c.b16 %v1943, %v1937
        %v2010 = vpack.c.b16 %v1944, %v1938
        %v2011 = vpack.c.b16 %v1945, %v1939
        %v2012 = vpack.c.b16 %v1946, %v1940
        %v2013 = vpack.c.b16 %v1953, %v1947
        %v2014 = vpack.c.b16 %v1954, %v1948
        %v2015 = vpack.c.b16 %v1955, %v1949
        %v2016 = vpack.c.b16 %v1956, %v1950
        %v2017 = vpack.c.b16 %v1957, %v1951
        %v2018 = vpack.c.b16 %v1958, %v1952
        %v2019 = vpack.c.b16 %v1965, %v1959
        %v2020 = vpack.c.b16 %v1966, %v1960
        %v2021 = vpack.c.b16 %v1967, %v1961
        %v2022 = vpack.c.b16 %v1968, %v1962
        %v2023 = vpack.c.b16 %v1969, %v1963
        %v2024 = vpack.c.b16 %v1970, %v1964
        %v2025 = vpack.c.b16 %v1977, %v1971
        %v2026 = vpack.c.b16 %v1978, %v1972
        %v2027 = vpack.c.b16 %v1979, %v1973
        %v2028 = vpack.c.b16 %v1980, %v1974
        %v2029 = vpack.c.b16 %v1981, %v1975
        %v2030 = vpack.c.b16 %v1982, %v1976
        %2079 = vmatprep.subr.bf16.mxu0 %v1984
        %2080 = vmatpush1.bf16.msra.mxu0 %v1983
        %2081 = vmatprep.subr.bf16.mxu0 %v1990
        %2082 = vmatpush1.bf16.msra.mxu0 %v1989
        %2083 = vmatprep.subr.bf16.mxu0 %v1996
        %2084 = vmatpush1.bf16.msra.mxu0 %v1995
        %2085 = vmatprep.subr.bf16.mxu0 %v2002
        %2086 = vmatpush1.bf16.msra.mxu0 %v2001
        %2087 = vmatprep.subr.bf16.mxu0 %v2008
        %2088 = vmatpush1.bf16.msra.mxu0 %v2007
        %2089 = vmatprep.subr.bf16.mxu0 %v2014
        %2090 = vmatpush1.bf16.msra.mxu0 %v2013
        %2091 = vmatprep.subr.bf16.mxu0 %v2020
        %2092 = vmatpush1.bf16.msra.mxu0 %v2019
        %2093 = vmatprep.subr.bf16.mxu0 %v2026
        %2094 = vmatpush1.bf16.msra.mxu0 %v2025
        %2095 = vmatprep.subr.bf16.mxu0 0
        %2096 = vmatpush1.bf16.msra.mxu0 0
        %2097 = vmatprep.subr.bf16.mxu0 0
        %2098 = vmatpush1.bf16.msra.mxu0 0
        %2099 = vmatprep.subr.bf16.mxu0 0
        %2100 = vmatpush1.bf16.msra.mxu0 0
        %2101 = vmatprep.subr.bf16.mxu0 0
        %2102 = vmatpush1.bf16.msra.mxu0 0
        %2103 = vmatprep.subr.bf16.mxu0 0
        %2104 = vmatpush1.bf16.msra.mxu0 0
        %2105 = vmatprep.subr.bf16.mxu0 0
        %2106 = vmatpush1.bf16.msra.mxu0 0
        %2107 = vmatprep.subr.bf16.mxu0 0
        %2108 = vmatpush1.bf16.msra.mxu0 0
        %2109 = vmatprep.subr.bf16.mxu0 0
        %2110 = vmatpush1.bf16.msra.mxu0 0
        %2111 = vmatprep.mubr.bf16.mxu0 0
        %2112 = vmatmul.mubr.bf16.gmra.mrb[0].mxu0 %v345
        %v2113 = vpop.f32.mrb[0].mxu0
        %v2114 = vadd.f32 0.0, %v2113
        %v2115 = vpop.f32.mrb[0].mxu0
        %v2116 = vadd.f32 0.0, %v2115
        %v2117 = vpop.f32.mrb[0].mxu0
        %v2118 = vpop.f32.mrb[0].mxu0
        %2119 = vdwg.mxu0
        %2120 = vmatprep.subr.bf16.mxu0 %v1986
        %2121 = vmatpush1.bf16.msra.mxu0 %v1985
        %2122 = vmatprep.subr.bf16.mxu0 %v1992
        %2123 = vmatpush1.bf16.msra.mxu0 %v1991
        %2124 = vmatprep.subr.bf16.mxu0 %v1998
        %2125 = vmatpush1.bf16.msra.mxu0 %v1997
        %2126 = vmatprep.subr.bf16.mxu0 %v2004
        %2127 = vmatpush1.bf16.msra.mxu0 %v2003
        %2128 = vmatprep.subr.bf16.mxu0 %v2010
        %2129 = vmatpush1.bf16.msra.mxu0 %v2009
        %2130 = vmatprep.subr.bf16.mxu0 %v2016
        %2131 = vmatpush1.bf16.msra.mxu0 %v2015
        %2132 = vmatprep.subr.bf16.mxu0 %v2022
        %2133 = vmatpush1.bf16.msra.mxu0 %v2021
        %2134 = vmatprep.subr.bf16.mxu0 %v2028
        %2135 = vmatpush1.bf16.msra.mxu0 %v2027
        %2136 = vmatprep.subr.bf16.mxu0 0
        %2137 = vmatpush1.bf16.msra.mxu0 0
        %2138 = vmatprep.subr.bf16.mxu0 0
        %2139 = vmatpush1.bf16.msra.mxu0 0
        %2140 = vmatprep.subr.bf16.mxu0 0
        %2141 = vmatpush1.bf16.msra.mxu0 0
        %2142 = vmatprep.subr.bf16.mxu0 0
        %2143 = vmatpush1.bf16.msra.mxu0 0
        %2144 = vmatprep.subr.bf16.mxu0 0
        %2145 = vmatpush1.bf16.msra.mxu0 0
        %2146 = vmatprep.subr.bf16.mxu0 0
        %2147 = vmatpush1.bf16.msra.mxu0 0
        %2148 = vmatprep.subr.bf16.mxu0 0
        %2149 = vmatpush1.bf16.msra.mxu0 0
        %2150 = vmatprep.subr.bf16.mxu0 0
        %2151 = vmatpush1.bf16.msra.mxu0 0
        %2152 = vmatprep.mubr.bf16.mxu0 0
        %2153 = vmatmul.mubr.bf16.gmra.mrb[0].mxu0 %v345
        %v2154 = vpop.f32.mrb[0].mxu0
        %v2155 = vadd.f32 0.0, %v2154
        %v2156 = vpop.f32.mrb[0].mxu0
        %v2157 = vadd.f32 0.0, %v2156
        %v2158 = vpop.f32.mrb[0].mxu0
        %v2159 = vpop.f32.mrb[0].mxu0
        %2160 = vdwg.mxu0
        %2161 = vmatprep.subr.bf16.mxu0 %v1988
        %2162 = vmatpush1.bf16.msra.mxu0 %v1987
        %2163 = vmatprep.subr.bf16.mxu0 %v1994
        %2164 = vmatpush1.bf16.msra.mxu0 %v1993
        %2165 = vmatprep.subr.bf16.mxu0 %v2000
        %2166 = vmatpush1.bf16.msra.mxu0 %v1999
        %2167 = vmatprep.subr.bf16.mxu0 %v2006
        %2168 = vmatpush1.bf16.msra.mxu0 %v2005
        %2169 = vmatprep.subr.bf16.mxu0 %v2012
        %2170 = vmatpush1.bf16.msra.mxu0 %v2011
        %2171 = vmatprep.subr.bf16.mxu0 %v2018
        %2172 = vmatpush1.bf16.msra.mxu0 %v2017
        %2173 = vmatprep.subr.bf16.mxu0 %v2024
        %2174 = vmatpush1.bf16.msra.mxu0 %v2023
        %2175 = vmatprep.subr.bf16.mxu0 %v2030
        %2176 = vmatpush1.bf16.msra.mxu0 %v2029
        %2177 = vmatprep.subr.bf16.mxu0 0
        %2178 = vmatpush1.bf16.msra.mxu0 0
        %2179 = vmatprep.subr.bf16.mxu0 0
        %2180 = vmatpush1.bf16.msra.mxu0 0
        %2181 = vmatprep.subr.bf16.mxu0 0
        %2182 = vmatpush1.bf16.msra.mxu0 0
        %2183 = vmatprep.subr.bf16.mxu0 0
        %2184 = vmatpush1.bf16.msra.mxu0 0
        %2185 = vmatprep.subr.bf16.mxu0 0
        %2186 = vmatpush1.bf16.msra.mxu0 0
        %2187 = vmatprep.subr.bf16.mxu0 0
        %2188 = vmatpush1.bf16.msra.mxu0 0
        %2189 = vmatprep.subr.bf16.mxu0 0
        %2190 = vmatpush1.bf16.msra.mxu0 0
        %2191 = vmatprep.subr.bf16.mxu0 0
        %2192 = vmatpush1.bf16.msra.mxu0 0
        %2193 = vmatprep.mubr.bf16.mxu0 0
        %2194 = vmatmul.mubr.bf16.gmra.mrb[0].mxu0 %v345
        %v2195 = vpop.f32.mrb[0].mxu0
        %v2196 = vadd.f32 0.0, %v2195
        %v2197 = vpop.f32.mrb[0].mxu0
        %v2198 = vadd.f32 0.0, %v2197
        %v2199 = vpop.f32.mrb[0].mxu0
        %v2200 = vpop.f32.mrb[0].mxu0
        %2201 = vdwg.mxu0
        %v2250 = vunpack.c.l.b16 %v542
        %v2251 = vunpack.c.h.b16 %v542
        %v2252 = vunpack.c.l.b16 %v543
        %v2253 = vunpack.c.h.b16 %v543
        %v2254 = vunpack.c.l.b16 %v544
        %v2255 = vunpack.c.h.b16 %v544
        %v2256 = vunpack.c.l.b16 %v545
        %v2257 = vunpack.c.h.b16 %v545
        %v2258 = vunpack.c.l.b16 %v546
        %v2259 = vunpack.c.h.b16 %v546
        %v2260 = vunpack.c.l.b16 %v547
        %v2261 = vunpack.c.h.b16 %v547
        %v2262 = vunpack.c.l.b16 %v548
        %v2263 = vunpack.c.h.b16 %v548
        %v2264 = vunpack.c.l.b16 %v549
        %v2265 = vunpack.c.h.b16 %v549
        %v2266 = vunpack.c.l.b16 %v550
        %v2267 = vunpack.c.h.b16 %v550
        %v2268 = vunpack.c.l.b16 %v551
        %v2269 = vunpack.c.h.b16 %v551
        %v2270 = vunpack.c.l.b16 %v552
        %v2271 = vunpack.c.h.b16 %v552
        %v2272 = vunpack.c.l.b16 %v553
        %v2273 = vunpack.c.h.b16 %v553
        %v2274 = vunpack.c.l.b16 %v554
        %v2275 = vunpack.c.h.b16 %v554
        %v2276 = vunpack.c.l.b16 %v555
        %v2277 = vunpack.c.h.b16 %v555
        %v2278 = vunpack.c.l.b16 %v556
        %v2279 = vunpack.c.h.b16 %v556
        %v2280 = vunpack.c.l.b16 %v557
        %v2281 = vunpack.c.h.b16 %v557
        %v2282 = vunpack.c.l.b16 %v558
        %v2283 = vunpack.c.h.b16 %v558
        %v2284 = vunpack.c.l.b16 %v559
        %v2285 = vunpack.c.h.b16 %v559
        %v2286 = vunpack.c.l.b16 %v560
        %v2287 = vunpack.c.h.b16 %v560
        %v2288 = vunpack.c.l.b16 %v561
        %v2289 = vunpack.c.h.b16 %v561
        %v2290 = vunpack.c.l.b16 %v562
        %v2291 = vunpack.c.h.b16 %v562
        %v2292 = vunpack.c.l.b16 %v563
        %v2293 = vunpack.c.h.b16 %v563
        %v2294 = vunpack.c.l.b16 %v564
        %v2295 = vunpack.c.h.b16 %v564
        %v2296 = vunpack.c.l.b16 %v565
        %v2297 = vunpack.c.h.b16 %v565
        %v2298 = vunpack.c.l.b16 %v566
        %v2299 = vunpack.c.h.b16 %v566
        %v2300 = vunpack.c.l.b16 %v567
        %v2301 = vunpack.c.h.b16 %v567
        %v2302 = vunpack.c.l.b16 %v568
        %v2303 = vunpack.c.h.b16 %v568
        %v2304 = vunpack.c.l.b16 %v569
        %v2305 = vunpack.c.h.b16 %v569
        %v2306 = vunpack.c.l.b16 %v570
        %v2307 = vunpack.c.h.b16 %v570
        %v2308 = vunpack.c.l.b16 %v571
        %v2309 = vunpack.c.h.b16 %v571
        %v2310 = vunpack.c.l.b16 %v572
        %v2311 = vunpack.c.h.b16 %v572
        %v2312 = vunpack.c.l.b16 %v573
        %v2313 = vunpack.c.h.b16 %v573
        %v2314 = vunpack.c.l.b16 %v574
        %v2315 = vunpack.c.h.b16 %v574
        %v2316 = vunpack.c.l.b16 %v575
        %v2317 = vunpack.c.h.b16 %v575
        %v2318 = vunpack.c.l.b16 %v576
        %v2319 = vunpack.c.h.b16 %v576
        %v2320 = vunpack.c.l.b16 %v577
        %v2321 = vunpack.c.h.b16 %v577
        %v2322 = vunpack.c.l.b16 %v578
        %v2323 = vunpack.c.h.b16 %v578
        %v2324 = vunpack.c.l.b16 %v579
        %v2325 = vunpack.c.h.b16 %v579
        %v2326 = vunpack.c.l.b16 %v580
        %v2327 = vunpack.c.h.b16 %v580
        %v2328 = vunpack.c.l.b16 %v581
        %v2329 = vunpack.c.h.b16 %v581
        %v2330 = vunpack.c.l.b16 %v582
        %v2331 = vunpack.c.h.b16 %v582
        %v2332 = vunpack.c.l.b16 %v583
        %v2333 = vunpack.c.h.b16 %v583
        %v2334 = vunpack.c.l.b16 %v584
        %v2335 = vunpack.c.h.b16 %v584
        %v2336 = vunpack.c.l.b16 %v585
        %v2337 = vunpack.c.h.b16 %v585
        %v2338 = vunpack.c.l.b16 %v586
        %v2339 = vunpack.c.h.b16 %v586
        %v2340 = vunpack.c.l.b16 %v587
        %v2341 = vunpack.c.h.b16 %v587
        %v2342 = vunpack.c.l.b16 %v588
        %v2343 = vunpack.c.h.b16 %v588
        %v2344 = vunpack.c.l.b16 %v589
        %v2345 = vunpack.c.h.b16 %v589
        %v2346 = vpack.c.b16 %v2256, %v2250
        %v2347 = vpack.c.b16 %v2257, %v2251
        %v2348 = vpack.c.b16 %v2258, %v2252
        %v2349 = vpack.c.b16 %v2259, %v2253
        %v2350 = vpack.c.b16 %v2260, %v2254
        %v2351 = vpack.c.b16 %v2261, %v2255
        %v2352 = vpack.c.b16 %v2268, %v2262
        %v2353 = vpack.c.b16 %v2269, %v2263
        %v2354 = vpack.c.b16 %v2270, %v2264
        %v2355 = vpack.c.b16 %v2271, %v2265
        %v2356 = vpack.c.b16 %v2272, %v2266
        %v2357 = vpack.c.b16 %v2273, %v2267
        %v2358 = vpack.c.b16 %v2280, %v2274
        %v2359 = vpack.c.b16 %v2281, %v2275
        %v2360 = vpack.c.b16 %v2282, %v2276
        %v2361 = vpack.c.b16 %v2283, %v2277
        %v2362 = vpack.c.b16 %v2284, %v2278
        %v2363 = vpack.c.b16 %v2285, %v2279
        %v2364 = vpack.c.b16 %v2292, %v2286
        %v2365 = vpack.c.b16 %v2293, %v2287
        %v2366 = vpack.c.b16 %v2294, %v2288
        %v2367 = vpack.c.b16 %v2295, %v2289
        %v2368 = vpack.c.b16 %v2296, %v2290
        %v2369 = vpack.c.b16 %v2297, %v2291
        %v2370 = vpack.c.b16 %v2304, %v2298
        %v2371 = vpack.c.b16 %v2305, %v2299
        %v2372 = vpack.c.b16 %v2306, %v2300
        %v2373 = vpack.c.b16 %v2307, %v2301
        %v2374 = vpack.c.b16 %v2308, %v2302
        %v2375 = vpack.c.b16 %v2309, %v2303
        %v2376 = vpack.c.b16 %v2316, %v2310
        %v2377 = vpack.c.b16 %v2317, %v2311
        %v2378 = vpack.c.b16 %v2318, %v2312
        %v2379 = vpack.c.b16 %v2319, %v2313
        %v2380 = vpack.c.b16 %v2320, %v2314
        %v2381 = vpack.c.b16 %v2321, %v2315
        %v2382 = vpack.c.b16 %v2328, %v2322
        %v2383 = vpack.c.b16 %v2329, %v2323
        %v2384 = vpack.c.b16 %v2330, %v2324
        %v2385 = vpack.c.b16 %v2331, %v2325
        %v2386 = vpack.c.b16 %v2332, %v2326
        %v2387 = vpack.c.b16 %v2333, %v2327
        %v2388 = vpack.c.b16 %v2340, %v2334
        %v2389 = vpack.c.b16 %v2341, %v2335
        %v2390 = vpack.c.b16 %v2342, %v2336
        %v2391 = vpack.c.b16 %v2343, %v2337
        %v2392 = vpack.c.b16 %v2344, %v2338
        %v2393 = vpack.c.b16 %v2345, %v2339
        %2442 = vmatprep.subr.bf16.mxu0 %v2347
        %2443 = vmatpush1.bf16.msra.mxu0 %v2346
        %2444 = vmatprep.subr.bf16.mxu0 %v2353
        %2445 = vmatpush1.bf16.msra.mxu0 %v2352
        %2446 = vmatprep.subr.bf16.mxu0 %v2359
        %2447 = vmatpush1.bf16.msra.mxu0 %v2358
        %2448 = vmatprep.subr.bf16.mxu0 %v2365
        %2449 = vmatpush1.bf16.msra.mxu0 %v2364
        %2450 = vmatprep.subr.bf16.mxu0 %v2371
        %2451 = vmatpush1.bf16.msra.mxu0 %v2370
        %2452 = vmatprep.subr.bf16.mxu0 %v2377
        %2453 = vmatpush1.bf16.msra.mxu0 %v2376
        %2454 = vmatprep.subr.bf16.mxu0 %v2383
        %2455 = vmatpush1.bf16.msra.mxu0 %v2382
        %2456 = vmatprep.subr.bf16.mxu0 %v2389
        %2457 = vmatpush1.bf16.msra.mxu0 %v2388
        %2458 = vmatprep.subr.bf16.mxu0 0
        %2459 = vmatpush1.bf16.msra.mxu0 0
        %2460 = vmatprep.subr.bf16.mxu0 0
        %2461 = vmatpush1.bf16.msra.mxu0 0
        %2462 = vmatprep.subr.bf16.mxu0 0
        %2463 = vmatpush1.bf16.msra.mxu0 0
        %2464 = vmatprep.subr.bf16.mxu0 0
        %2465 = vmatpush1.bf16.msra.mxu0 0
        %2466 = vmatprep.subr.bf16.mxu0 0
        %2467 = vmatpush1.bf16.msra.mxu0 0
        %2468 = vmatprep.subr.bf16.mxu0 0
        %2469 = vmatpush1.bf16.msra.mxu0 0
        %2470 = vmatprep.subr.bf16.mxu0 0
        %2471 = vmatpush1.bf16.msra.mxu0 0
        %2472 = vmatprep.subr.bf16.mxu0 0
        %2473 = vmatpush1.bf16.msra.mxu0 0
        %2474 = vmatprep.mubr.bf16.mxu0 0
        %2475 = vmatmul.mubr.bf16.gmra.mrb[0].mxu0 %v346
        %v2476 = vpop.f32.mrb[0].mxu0
        %v2477 = vadd.f32 0.0, %v2476
        %v2478 = vpop.f32.mrb[0].mxu0
        %v2479 = vadd.f32 0.0, %v2478
        %v2480 = vpop.f32.mrb[0].mxu0
        %v2481 = vpop.f32.mrb[0].mxu0
        %2482 = vdwg.mxu0
        %2483 = vmatprep.subr.bf16.mxu0 %v2349
        %2484 = vmatpush1.bf16.msra.mxu0 %v2348
        %2485 = vmatprep.subr.bf16.mxu0 %v2355
        %2486 = vmatpush1.bf16.msra.mxu0 %v2354
        %2487 = vmatprep.subr.bf16.mxu0 %v2361
        %2488 = vmatpush1.bf16.msra.mxu0 %v2360
        %2489 = vmatprep.subr.bf16.mxu0 %v2367
        %2490 = vmatpush1.bf16.msra.mxu0 %v2366
        %2491 = vmatprep.subr.bf16.mxu0 %v2373
        %2492 = vmatpush1.bf16.msra.mxu0 %v2372
        %2493 = vmatprep.subr.bf16.mxu0 %v2379
        %2494 = vmatpush1.bf16.msra.mxu0 %v2378
        %2495 = vmatprep.subr.bf16.mxu0 %v2385
        %2496 = vmatpush1.bf16.msra.mxu0 %v2384
        %2497 = vmatprep.subr.bf16.mxu0 %v2391
        %2498 = vmatpush1.bf16.msra.mxu0 %v2390
        %2499 = vmatprep.subr.bf16.mxu0 0
        %2500 = vmatpush1.bf16.msra.mxu0 0
        %2501 = vmatprep.subr.bf16.mxu0 0
        %2502 = vmatpush1.bf16.msra.mxu0 0
        %2503 = vmatprep.subr.bf16.mxu0 0
        %2504 = vmatpush1.bf16.msra.mxu0 0
        %2505 = vmatprep.subr.bf16.mxu0 0
        %2506 = vmatpush1.bf16.msra.mxu0 0
        %2507 = vmatprep.subr.bf16.mxu0 0
        %2508 = vmatpush1.bf16.msra.mxu0 0
        %2509 = vmatprep.subr.bf16.mxu0 0
        %2510 = vmatpush1.bf16.msra.mxu0 0
        %2511 = vmatprep.subr.bf16.mxu0 0
        %2512 = vmatpush1.bf16.msra.mxu0 0
        %2513 = vmatprep.subr.bf16.mxu0 0
        %2514 = vmatpush1.bf16.msra.mxu0 0
        %2515 = vmatprep.mubr.bf16.mxu0 0
        %2516 = vmatmul.mubr.bf16.gmra.mrb[0].mxu0 %v346
        %v2517 = vpop.f32.mrb[0].mxu0
        %v2518 = vadd.f32 0.0, %v2517
        %v2519 = vpop.f32.mrb[0].mxu0
        %v2520 = vadd.f32 0.0, %v2519
        %v2521 = vpop.f32.mrb[0].mxu0
        %v2522 = vpop.f32.mrb[0].mxu0
        %2523 = vdwg.mxu0
        %2524 = vmatprep.subr.bf16.mxu0 %v2351
        %2525 = vmatpush1.bf16.msra.mxu0 %v2350
        %2526 = vmatprep.subr.bf16.mxu0 %v2357
        %2527 = vmatpush1.bf16.msra.mxu0 %v2356
        %2528 = vmatprep.subr.bf16.mxu0 %v2363
        %2529 = vmatpush1.bf16.msra.mxu0 %v2362
        %2530 = vmatprep.subr.bf16.mxu0 %v2369
        %2531 = vmatpush1.bf16.msra.mxu0 %v2368
        %2532 = vmatprep.subr.bf16.mxu0 %v2375
        %2533 = vmatpush1.bf16.msra.mxu0 %v2374
        %2534 = vmatprep.subr.bf16.mxu0 %v2381
        %2535 = vmatpush1.bf16.msra.mxu0 %v2380
        %2536 = vmatprep.subr.bf16.mxu0 %v2387
        %2537 = vmatpush1.bf16.msra.mxu0 %v2386
        %2538 = vmatprep.subr.bf16.mxu0 %v2393
        %2539 = vmatpush1.bf16.msra.mxu0 %v2392
        %2540 = vmatprep.subr.bf16.mxu0 0
        %2541 = vmatpush1.bf16.msra.mxu0 0
        %2542 = vmatprep.subr.bf16.mxu0 0
        %2543 = vmatpush1.bf16.msra.mxu0 0
        %2544 = vmatprep.subr.bf16.mxu0 0
        %2545 = vmatpush1.bf16.msra.mxu0 0
        %2546 = vmatprep.subr.bf16.mxu0 0
        %2547 = vmatpush1.bf16.msra.mxu0 0
        %2548 = vmatprep.subr.bf16.mxu0 0
        %2549 = vmatpush1.bf16.msra.mxu0 0
        %2550 = vmatprep.subr.bf16.mxu0 0
        %2551 = vmatpush1.bf16.msra.mxu0 0
        %2552 = vmatprep.subr.bf16.mxu0 0
        %2553 = vmatpush1.bf16.msra.mxu0 0
        %2554 = vmatprep.subr.bf16.mxu0 0
        %2555 = vmatpush1.bf16.msra.mxu0 0
        %2556 = vmatprep.mubr.bf16.mxu0 0
        %2557 = vmatmul.mubr.bf16.gmra.mrb[0].mxu0 %v346
        %v2558 = vpop.f32.mrb[0].mxu0
        %v2559 = vadd.f32 0.0, %v2558
        %v2560 = vpop.f32.mrb[0].mxu0
        %v2561 = vadd.f32 0.0, %v2560
        %v2562 = vpop.f32.mrb[0].mxu0
        %v2563 = vpop.f32.mrb[0].mxu0
        %2564 = vdwg.mxu0
        %v2613 = vunpack.c.l.b16 %v590
        %v2614 = vunpack.c.h.b16 %v590
        %v2615 = vunpack.c.l.b16 %v591
        %v2616 = vunpack.c.h.b16 %v591
        %v2617 = vunpack.c.l.b16 %v592
        %v2618 = vunpack.c.h.b16 %v592
        %v2619 = vunpack.c.l.b16 %v593
        %v2620 = vunpack.c.h.b16 %v593
        %v2621 = vunpack.c.l.b16 %v594
        %v2622 = vunpack.c.h.b16 %v594
        %v2623 = vunpack.c.l.b16 %v595
        %v2624 = vunpack.c.h.b16 %v595
        %v2625 = vunpack.c.l.b16 %v596
        %v2626 = vunpack.c.h.b16 %v596
        %v2627 = vunpack.c.l.b16 %v597
        %v2628 = vunpack.c.h.b16 %v597
        %v2629 = vunpack.c.l.b16 %v598
        %v2630 = vunpack.c.h.b16 %v598
        %v2631 = vunpack.c.l.b16 %v599
        %v2632 = vunpack.c.h.b16 %v599
        %v2633 = vunpack.c.l.b16 %v600
        %v2634 = vunpack.c.h.b16 %v600
        %v2635 = vunpack.c.l.b16 %v601
        %v2636 = vunpack.c.h.b16 %v601
        %v2637 = vunpack.c.l.b16 %v602
        %v2638 = vunpack.c.h.b16 %v602
        %v2639 = vunpack.c.l.b16 %v603
        %v2640 = vunpack.c.h.b16 %v603
        %v2641 = vunpack.c.l.b16 %v604
        %v2642 = vunpack.c.h.b16 %v604
        %v2643 = vunpack.c.l.b16 %v605
        %v2644 = vunpack.c.h.b16 %v605
        %v2645 = vunpack.c.l.b16 %v606
        %v2646 = vunpack.c.h.b16 %v606
        %v2647 = vunpack.c.l.b16 %v607
        %v2648 = vunpack.c.h.b16 %v607
        %v2649 = vunpack.c.l.b16 %v608
        %v2650 = vunpack.c.h.b16 %v608
        %v2651 = vunpack.c.l.b16 %v609
        %v2652 = vunpack.c.h.b16 %v609
        %v2653 = vunpack.c.l.b16 %v610
        %v2654 = vunpack.c.h.b16 %v610
        %v2655 = vunpack.c.l.b16 %v611
        %v2656 = vunpack.c.h.b16 %v611
        %v2657 = vunpack.c.l.b16 %v612
        %v2658 = vunpack.c.h.b16 %v612
        %v2659 = vunpack.c.l.b16 %v613
        %v2660 = vunpack.c.h.b16 %v613
        %v2661 = vunpack.c.l.b16 %v614
        %v2662 = vunpack.c.h.b16 %v614
        %v2663 = vunpack.c.l.b16 %v615
        %v2664 = vunpack.c.h.b16 %v615
        %v2665 = vunpack.c.l.b16 %v616
        %v2666 = vunpack.c.h.b16 %v616
        %v2667 = vunpack.c.l.b16 %v617
        %v2668 = vunpack.c.h.b16 %v617
        %v2669 = vunpack.c.l.b16 %v618
        %v2670 = vunpack.c.h.b16 %v618
        %v2671 = vunpack.c.l.b16 %v619
        %v2672 = vunpack.c.h.b16 %v619
        %v2673 = vunpack.c.l.b16 %v620
        %v2674 = vunpack.c.h.b16 %v620
        %v2675 = vunpack.c.l.b16 %v621
        %v2676 = vunpack.c.h.b16 %v621
        %v2677 = vunpack.c.l.b16 %v622
        %v2678 = vunpack.c.h.b16 %v622
        %v2679 = vunpack.c.l.b16 %v623
        %v2680 = vunpack.c.h.b16 %v623
        %v2681 = vunpack.c.l.b16 %v624
        %v2682 = vunpack.c.h.b16 %v624
        %v2683 = vunpack.c.l.b16 %v625
        %v2684 = vunpack.c.h.b16 %v625
        %v2685 = vunpack.c.l.b16 %v626
        %v2686 = vunpack.c.h.b16 %v626
        %v2687 = vunpack.c.l.b16 %v627
        %v2688 = vunpack.c.h.b16 %v627
        %v2689 = vunpack.c.l.b16 %v628
        %v2690 = vunpack.c.h.b16 %v628
        %v2691 = vunpack.c.l.b16 %v629
        %v2692 = vunpack.c.h.b16 %v629
        %v2693 = vunpack.c.l.b16 %v630
        %v2694 = vunpack.c.h.b16 %v630
        %v2695 = vunpack.c.l.b16 %v631
        %v2696 = vunpack.c.h.b16 %v631
        %v2697 = vunpack.c.l.b16 %v632
        %v2698 = vunpack.c.h.b16 %v632
        %v2699 = vunpack.c.l.b16 %v633
        %v2700 = vunpack.c.h.b16 %v633
        %v2701 = vunpack.c.l.b16 %v634
        %v2702 = vunpack.c.h.b16 %v634
        %v2703 = vunpack.c.l.b16 %v635
        %v2704 = vunpack.c.h.b16 %v635
        %v2705 = vunpack.c.l.b16 %v636
        %v2706 = vunpack.c.h.b16 %v636
        %v2707 = vunpack.c.l.b16 %v637
        %v2708 = vunpack.c.h.b16 %v637
        %v2709 = vpack.c.b16 %v2619, %v2613
        %v2710 = vpack.c.b16 %v2620, %v2614
        %v2711 = vpack.c.b16 %v2621, %v2615
        %v2712 = vpack.c.b16 %v2622, %v2616
        %v2713 = vpack.c.b16 %v2623, %v2617
        %v2714 = vpack.c.b16 %v2624, %v2618
        %v2715 = vpack.c.b16 %v2631, %v2625
        %v2716 = vpack.c.b16 %v2632, %v2626
        %v2717 = vpack.c.b16 %v2633, %v2627
        %v2718 = vpack.c.b16 %v2634, %v2628
        %v2719 = vpack.c.b16 %v2635, %v2629
        %v2720 = vpack.c.b16 %v2636, %v2630
        %v2721 = vpack.c.b16 %v2643, %v2637
        %v2722 = vpack.c.b16 %v2644, %v2638
        %v2723 = vpack.c.b16 %v2645, %v2639
        %v2724 = vpack.c.b16 %v2646, %v2640
        %v2725 = vpack.c.b16 %v2647, %v2641
        %v2726 = vpack.c.b16 %v2648, %v2642
        %v2727 = vpack.c.b16 %v2655, %v2649
        %v2728 = vpack.c.b16 %v2656, %v2650
        %v2729 = vpack.c.b16 %v2657, %v2651
        %v2730 = vpack.c.b16 %v2658, %v2652
        %v2731 = vpack.c.b16 %v2659, %v2653
        %v2732 = vpack.c.b16 %v2660, %v2654
        %v2733 = vpack.c.b16 %v2667, %v2661
        %v2734 = vpack.c.b16 %v2668, %v2662
        %v2735 = vpack.c.b16 %v2669, %v2663
        %v2736 = vpack.c.b16 %v2670, %v2664
        %v2737 = vpack.c.b16 %v2671, %v2665
        %v2738 = vpack.c.b16 %v2672, %v2666
        %v2739 = vpack.c.b16 %v2679, %v2673
        %v2740 = vpack.c.b16 %v2680, %v2674
        %v2741 = vpack.c.b16 %v2681, %v2675
        %v2742 = vpack.c.b16 %v2682, %v2676
        %v2743 = vpack.c.b16 %v2683, %v2677
        %v2744 = vpack.c.b16 %v2684, %v2678
        %v2745 = vpack.c.b16 %v2691, %v2685
        %v2746 = vpack.c.b16 %v2692, %v2686
        %v2747 = vpack.c.b16 %v2693, %v2687
        %v2748 = vpack.c.b16 %v2694, %v2688
        %v2749 = vpack.c.b16 %v2695, %v2689
        %v2750 = vpack.c.b16 %v2696, %v2690
        %v2751 = vpack.c.b16 %v2703, %v2697
        %v2752 = vpack.c.b16 %v2704, %v2698
        %v2753 = vpack.c.b16 %v2705, %v2699
        %v2754 = vpack.c.b16 %v2706, %v2700
        %v2755 = vpack.c.b16 %v2707, %v2701
        %v2756 = vpack.c.b16 %v2708, %v2702
        %2805 = vmatprep.subr.bf16.mxu0 %v2710
        %2806 = vmatpush1.bf16.msra.mxu0 %v2709
        %2807 = vmatprep.subr.bf16.mxu0 %v2716
        %2808 = vmatpush1.bf16.msra.mxu0 %v2715
        %2809 = vmatprep.subr.bf16.mxu0 %v2722
        %2810 = vmatpush1.bf16.msra.mxu0 %v2721
        %2811 = vmatprep.subr.bf16.mxu0 %v2728
        %2812 = vmatpush1.bf16.msra.mxu0 %v2727
        %2813 = vmatprep.subr.bf16.mxu0 %v2734
        %2814 = vmatpush1.bf16.msra.mxu0 %v2733
        %2815 = vmatprep.subr.bf16.mxu0 %v2740
        %2816 = vmatpush1.bf16.msra.mxu0 %v2739
        %2817 = vmatprep.subr.bf16.mxu0 %v2746
        %2818 = vmatpush1.bf16.msra.mxu0 %v2745
        %2819 = vmatprep.subr.bf16.mxu0 %v2752
        %2820 = vmatpush1.bf16.msra.mxu0 %v2751
        %2821 = vmatprep.subr.bf16.mxu0 0
        %2822 = vmatpush1.bf16.msra.mxu0 0
        %2823 = vmatprep.subr.bf16.mxu0 0
        %2824 = vmatpush1.bf16.msra.mxu0 0
        %2825 = vmatprep.subr.bf16.mxu0 0
        %2826 = vmatpush1.bf16.msra.mxu0 0
        %2827 = vmatprep.subr.bf16.mxu0 0
        %2828 = vmatpush1.bf16.msra.mxu0 0
        %2829 = vmatprep.subr.bf16.mxu0 0
        %2830 = vmatpush1.bf16.msra.mxu0 0
        %2831 = vmatprep.subr.bf16.mxu0 0
        %2832 = vmatpush1.bf16.msra.mxu0 0
        %2833 = vmatprep.subr.bf16.mxu0 0
        %2834 = vmatpush1.bf16.msra.mxu0 0
        %2835 = vmatprep.subr.bf16.mxu0 0
        %2836 = vmatpush1.bf16.msra.mxu0 0
        %2837 = vmatprep.mubr.bf16.mxu0 0
        %2838 = vmatmul.mubr.bf16.gmra.mrb[0].mxu0 %v347
        %v2839 = vpop.f32.mrb[0].mxu0
        %v2840 = vadd.f32 0.0, %v2839
        %v2841 = vpop.f32.mrb[0].mxu0
        %v2842 = vadd.f32 0.0, %v2841
        %v2843 = vpop.f32.mrb[0].mxu0
        %v2844 = vpop.f32.mrb[0].mxu0
        %2845 = vdwg.mxu0
        %2846 = vmatprep.subr.bf16.mxu0 %v2712
        %2847 = vmatpush1.bf16.msra.mxu0 %v2711
        %2848 = vmatprep.subr.bf16.mxu0 %v2718
        %2849 = vmatpush1.bf16.msra.mxu0 %v2717
        %2850 = vmatprep.subr.bf16.mxu0 %v2724
        %2851 = vmatpush1.bf16.msra.mxu0 %v2723
        %2852 = vmatprep.subr.bf16.mxu0 %v2730
        %2853 = vmatpush1.bf16.msra.mxu0 %v2729
        %2854 = vmatprep.subr.bf16.mxu0 %v2736
        %2855 = vmatpush1.bf16.msra.mxu0 %v2735
        %2856 = vmatprep.subr.bf16.mxu0 %v2742
        %2857 = vmatpush1.bf16.msra.mxu0 %v2741
        %2858 = vmatprep.subr.bf16.mxu0 %v2748
        %2859 = vmatpush1.bf16.msra.mxu0 %v2747
        %2860 = vmatprep.subr.bf16.mxu0 %v2754
        %2861 = vmatpush1.bf16.msra.mxu0 %v2753
        %2862 = vmatprep.subr.bf16.mxu0 0
        %2863 = vmatpush1.bf16.msra.mxu0 0
        %2864 = vmatprep.subr.bf16.mxu0 0
        %2865 = vmatpush1.bf16.msra.mxu0 0
        %2866 = vmatprep.subr.bf16.mxu0 0
        %2867 = vmatpush1.bf16.msra.mxu0 0
        %2868 = vmatprep.subr.bf16.mxu0 0
        %2869 = vmatpush1.bf16.msra.mxu0 0
        %2870 = vmatprep.subr.bf16.mxu0 0
        %2871 = vmatpush1.bf16.msra.mxu0 0
        %2872 = vmatprep.subr.bf16.mxu0 0
        %2873 = vmatpush1.bf16.msra.mxu0 0
        %2874 = vmatprep.subr.bf16.mxu0 0
        %2875 = vmatpush1.bf16.msra.mxu0 0
        %2876 = vmatprep.subr.bf16.mxu0 0
        %2877 = vmatpush1.bf16.msra.mxu0 0
        %2878 = vmatprep.mubr.bf16.mxu0 0
        %2879 = vmatmul.mubr.bf16.gmra.mrb[0].mxu0 %v347
        %v2880 = vpop.f32.mrb[0].mxu0
        %v2881 = vadd.f32 0.0, %v2880
        %v2882 = vpop.f32.mrb[0].mxu0
        %v2883 = vadd.f32 0.0, %v2882
        %v2884 = vpop.f32.mrb[0].mxu0
        %v2885 = vpop.f32.mrb[0].mxu0
        %2886 = vdwg.mxu0
        %2887 = vmatprep.subr.bf16.mxu0 %v2714
        %2888 = vmatpush1.bf16.msra.mxu0 %v2713
        %2889 = vmatprep.subr.bf16.mxu0 %v2720
        %2890 = vmatpush1.bf16.msra.mxu0 %v2719
        %2891 = vmatprep.subr.bf16.mxu0 %v2726
        %2892 = vmatpush1.bf16.msra.mxu0 %v2725
        %2893 = vmatprep.subr.bf16.mxu0 %v2732
        %2894 = vmatpush1.bf16.msra.mxu0 %v2731
        %2895 = vmatprep.subr.bf16.mxu0 %v2738
        %2896 = vmatpush1.bf16.msra.mxu0 %v2737
        %2897 = vmatprep.subr.bf16.mxu0 %v2744
        %2898 = vmatpush1.bf16.msra.mxu0 %v2743
        %2899 = vmatprep.subr.bf16.mxu0 %v2750
        %2900 = vmatpush1.bf16.msra.mxu0 %v2749
        %2901 = vmatprep.subr.bf16.mxu0 %v2756
        %2902 = vmatpush1.bf16.msra.mxu0 %v2755
        %2903 = vmatprep.subr.bf16.mxu0 0
        %2904 = vmatpush1.bf16.msra.mxu0 0
        %2905 = vmatprep.subr.bf16.mxu0 0
        %2906 = vmatpush1.bf16.msra.mxu0 0
        %2907 = vmatprep.subr.bf16.mxu0 0
        %2908 = vmatpush1.bf16.msra.mxu0 0
        %2909 = vmatprep.subr.bf16.mxu0 0
        %2910 = vmatpush1.bf16.msra.mxu0 0
        %2911 = vmatprep.subr.bf16.mxu0 0
        %2912 = vmatpush1.bf16.msra.mxu0 0
        %2913 = vmatprep.subr.bf16.mxu0 0
        %2914 = vmatpush1.bf16.msra.mxu0 0
        %2915 = vmatprep.subr.bf16.mxu0 0
        %2916 = vmatpush1.bf16.msra.mxu0 0
        %2917 = vmatprep.subr.bf16.mxu0 0
        %2918 = vmatpush1.bf16.msra.mxu0 0
        %2919 = vmatprep.mubr.bf16.mxu0 0
        %2920 = vmatmul.mubr.bf16.gmra.mrb[0].mxu0 %v347
        %v2921 = vpop.f32.mrb[0].mxu0
        %v2922 = vadd.f32 0.0, %v2921
        %v2923 = vpop.f32.mrb[0].mxu0
        %v2924 = vadd.f32 0.0, %v2923
        %v2925 = vpop.f32.mrb[0].mxu0
        %v2926 = vpop.f32.mrb[0].mxu0
        %2927 = vdwg.mxu0
        %v2976 = vunpack.c.l.b16 %v638
        %v2977 = vunpack.c.h.b16 %v638
        %v2978 = vunpack.c.l.b16 %v639
        %v2979 = vunpack.c.h.b16 %v639
        %v2980 = vunpack.c.l.b16 %v640
        %v2981 = vunpack.c.h.b16 %v640
        %v2982 = vunpack.c.l.b16 %v641
        %v2983 = vunpack.c.h.b16 %v641
        %v2984 = vunpack.c.l.b16 %v642
        %v2985 = vunpack.c.h.b16 %v642
        %v2986 = vunpack.c.l.b16 %v643
        %v2987 = vunpack.c.h.b16 %v643
        %v2988 = vunpack.c.l.b16 %v644
        %v2989 = vunpack.c.h.b16 %v644
        %v2990 = vunpack.c.l.b16 %v645
        %v2991 = vunpack.c.h.b16 %v645
        %v2992 = vunpack.c.l.b16 %v646
        %v2993 = vunpack.c.h.b16 %v646
        %v2994 = vunpack.c.l.b16 %v647
        %v2995 = vunpack.c.h.b16 %v647
        %v2996 = vunpack.c.l.b16 %v648
        %v2997 = vunpack.c.h.b16 %v648
        %v2998 = vunpack.c.l.b16 %v649
        %v2999 = vunpack.c.h.b16 %v649
        %v3000 = vunpack.c.l.b16 %v650
        %v3001 = vunpack.c.h.b16 %v650
        %v3002 = vunpack.c.l.b16 %v651
        %v3003 = vunpack.c.h.b16 %v651
        %v3004 = vunpack.c.l.b16 %v652
        %v3005 = vunpack.c.h.b16 %v652
        %v3006 = vunpack.c.l.b16 %v653
        %v3007 = vunpack.c.h.b16 %v653
        %v3008 = vunpack.c.l.b16 %v654
        %v3009 = vunpack.c.h.b16 %v654
        %v3010 = vunpack.c.l.b16 %v655
        %v3011 = vunpack.c.h.b16 %v655
        %v3012 = vunpack.c.l.b16 %v656
        %v3013 = vunpack.c.h.b16 %v656
        %v3014 = vunpack.c.l.b16 %v657
        %v3015 = vunpack.c.h.b16 %v657
        %v3016 = vunpack.c.l.b16 %v658
        %v3017 = vunpack.c.h.b16 %v658
        %v3018 = vunpack.c.l.b16 %v659
        %v3019 = vunpack.c.h.b16 %v659
        %v3020 = vunpack.c.l.b16 %v660
        %v3021 = vunpack.c.h.b16 %v660
        %v3022 = vunpack.c.l.b16 %v661
        %v3023 = vunpack.c.h.b16 %v661
        %v3024 = vunpack.c.l.b16 %v662
        %v3025 = vunpack.c.h.b16 %v662
        %v3026 = vunpack.c.l.b16 %v663
        %v3027 = vunpack.c.h.b16 %v663
        %v3028 = vunpack.c.l.b16 %v664
        %v3029 = vunpack.c.h.b16 %v664
        %v3030 = vunpack.c.l.b16 %v665
        %v3031 = vunpack.c.h.b16 %v665
        %v3032 = vunpack.c.l.b16 %v666
        %v3033 = vunpack.c.h.b16 %v666
        %v3034 = vunpack.c.l.b16 %v667
        %v3035 = vunpack.c.h.b16 %v667
        %v3036 = vunpack.c.l.b16 %v668
        %v3037 = vunpack.c.h.b16 %v668
        %v3038 = vunpack.c.l.b16 %v669
        %v3039 = vunpack.c.h.b16 %v669
        %v3040 = vunpack.c.l.b16 %v670
        %v3041 = vunpack.c.h.b16 %v670
        %v3042 = vunpack.c.l.b16 %v671
        %v3043 = vunpack.c.h.b16 %v671
        %v3044 = vunpack.c.l.b16 %v672
        %v3045 = vunpack.c.h.b16 %v672
        %v3046 = vunpack.c.l.b16 %v673
        %v3047 = vunpack.c.h.b16 %v673
        %v3048 = vunpack.c.l.b16 %v674
        %v3049 = vunpack.c.h.b16 %v674
        %v3050 = vunpack.c.l.b16 %v675
        %v3051 = vunpack.c.h.b16 %v675
        %v3052 = vunpack.c.l.b16 %v676
        %v3053 = vunpack.c.h.b16 %v676
        %v3054 = vunpack.c.l.b16 %v677
        %v3055 = vunpack.c.h.b16 %v677
        %v3056 = vunpack.c.l.b16 %v678
        %v3057 = vunpack.c.h.b16 %v678
        %v3058 = vunpack.c.l.b16 %v679
        %v3059 = vunpack.c.h.b16 %v679
        %v3060 = vunpack.c.l.b16 %v680
        %v3061 = vunpack.c.h.b16 %v680
        %v3062 = vunpack.c.l.b16 %v681
        %v3063 = vunpack.c.h.b16 %v681
        %v3064 = vunpack.c.l.b16 %v682
        %v3065 = vunpack.c.h.b16 %v682
        %v3066 = vunpack.c.l.b16 %v683
        %v3067 = vunpack.c.h.b16 %v683
        %v3068 = vunpack.c.l.b16 %v684
        %v3069 = vunpack.c.h.b16 %v684
        %v3070 = vunpack.c.l.b16 %v685
        %v3071 = vunpack.c.h.b16 %v685
        %v3072 = vpack.c.b16 %v2982, %v2976
        %v3073 = vpack.c.b16 %v2983, %v2977
        %v3074 = vpack.c.b16 %v2984, %v2978
        %v3075 = vpack.c.b16 %v2985, %v2979
        %v3076 = vpack.c.b16 %v2986, %v2980
        %v3077 = vpack.c.b16 %v2987, %v2981
        %v3078 = vpack.c.b16 %v2994, %v2988
        %v3079 = vpack.c.b16 %v2995, %v2989
        %v3080 = vpack.c.b16 %v2996, %v2990
        %v3081 = vpack.c.b16 %v2997, %v2991
        %v3082 = vpack.c.b16 %v2998, %v2992
        %v3083 = vpack.c.b16 %v2999, %v2993
        %v3084 = vpack.c.b16 %v3006, %v3000
        %v3085 = vpack.c.b16 %v3007, %v3001
        %v3086 = vpack.c.b16 %v3008, %v3002
        %v3087 = vpack.c.b16 %v3009, %v3003
        %v3088 = vpack.c.b16 %v3010, %v3004
        %v3089 = vpack.c.b16 %v3011, %v3005
        %v3090 = vpack.c.b16 %v3018, %v3012
        %v3091 = vpack.c.b16 %v3019, %v3013
        %v3092 = vpack.c.b16 %v3020, %v3014
        %v3093 = vpack.c.b16 %v3021, %v3015
        %v3094 = vpack.c.b16 %v3022, %v3016
        %v3095 = vpack.c.b16 %v3023, %v3017
        %v3096 = vpack.c.b16 %v3030, %v3024
        %v3097 = vpack.c.b16 %v3031, %v3025
        %v3098 = vpack.c.b16 %v3032, %v3026
        %v3099 = vpack.c.b16 %v3033, %v3027
        %v3100 = vpack.c.b16 %v3034, %v3028
        %v3101 = vpack.c.b16 %v3035, %v3029
        %v3102 = vpack.c.b16 %v3042, %v3036
        %v3103 = vpack.c.b16 %v3043, %v3037
        %v3104 = vpack.c.b16 %v3044, %v3038
        %v3105 = vpack.c.b16 %v3045, %v3039
        %v3106 = vpack.c.b16 %v3046, %v3040
        %v3107 = vpack.c.b16 %v3047, %v3041
        %v3108 = vpack.c.b16 %v3054, %v3048
        %v3109 = vpack.c.b16 %v3055, %v3049
        %v3110 = vpack.c.b16 %v3056, %v3050
        %v3111 = vpack.c.b16 %v3057, %v3051
        %v3112 = vpack.c.b16 %v3058, %v3052
        %v3113 = vpack.c.b16 %v3059, %v3053
        %v3114 = vpack.c.b16 %v3066, %v3060
        %v3115 = vpack.c.b16 %v3067, %v3061
        %v3116 = vpack.c.b16 %v3068, %v3062
        %v3117 = vpack.c.b16 %v3069, %v3063
        %v3118 = vpack.c.b16 %v3070, %v3064
        %v3119 = vpack.c.b16 %v3071, %v3065
        %3168 = vmatprep.subr.bf16.mxu0 %v3073
        %3169 = vmatpush1.bf16.msra.mxu0 %v3072
        %3170 = vmatprep.subr.bf16.mxu0 %v3079
        %3171 = vmatpush1.bf16.msra.mxu0 %v3078
        %3172 = vmatprep.subr.bf16.mxu0 %v3085
        %3173 = vmatpush1.bf16.msra.mxu0 %v3084
        %3174 = vmatprep.subr.bf16.mxu0 %v3091
        %3175 = vmatpush1.bf16.msra.mxu0 %v3090
        %3176 = vmatprep.subr.bf16.mxu0 %v3097
        %3177 = vmatpush1.bf16.msra.mxu0 %v3096
        %3178 = vmatprep.subr.bf16.mxu0 %v3103
        %3179 = vmatpush1.bf16.msra.mxu0 %v3102
        %3180 = vmatprep.subr.bf16.mxu0 %v3109
        %3181 = vmatpush1.bf16.msra.mxu0 %v3108
        %3182 = vmatprep.subr.bf16.mxu0 %v3115
        %3183 = vmatpush1.bf16.msra.mxu0 %v3114
        %3184 = vmatprep.subr.bf16.mxu0 0
        %3185 = vmatpush1.bf16.msra.mxu0 0
        %3186 = vmatprep.subr.bf16.mxu0 0
        %3187 = vmatpush1.bf16.msra.mxu0 0
        %3188 = vmatprep.subr.bf16.mxu0 0
        %3189 = vmatpush1.bf16.msra.mxu0 0
        %3190 = vmatprep.subr.bf16.mxu0 0
        %3191 = vmatpush1.bf16.msra.mxu0 0
        %3192 = vmatprep.subr.bf16.mxu0 0
        %3193 = vmatpush1.bf16.msra.mxu0 0
        %3194 = vmatprep.subr.bf16.mxu0 0
        %3195 = vmatpush1.bf16.msra.mxu0 0
        %3196 = vmatprep.subr.bf16.mxu0 0
        %3197 = vmatpush1.bf16.msra.mxu0 0
        %3198 = vmatprep.subr.bf16.mxu0 0
        %3199 = vmatpush1.bf16.msra.mxu0 0
        %3200 = vmatprep.mubr.bf16.mxu0 0
        %3201 = vmatmul.mubr.bf16.gmra.mrb[0].mxu0 %v348
        %v3202 = vpop.f32.mrb[0].mxu0
        %v3203 = vadd.f32 0.0, %v3202
        %v3204 = vpop.f32.mrb[0].mxu0
        %v3205 = vadd.f32 0.0, %v3204
        %v3206 = vpop.f32.mrb[0].mxu0
        %v3207 = vpop.f32.mrb[0].mxu0
        %3208 = vdwg.mxu0
        %3209 = vmatprep.subr.bf16.mxu0 %v3075
        %3210 = vmatpush1.bf16.msra.mxu0 %v3074
        %3211 = vmatprep.subr.bf16.mxu0 %v3081
        %3212 = vmatpush1.bf16.msra.mxu0 %v3080
        %3213 = vmatprep.subr.bf16.mxu0 %v3087
        %3214 = vmatpush1.bf16.msra.mxu0 %v3086
        %3215 = vmatprep.subr.bf16.mxu0 %v3093
        %3216 = vmatpush1.bf16.msra.mxu0 %v3092
        %3217 = vmatprep.subr.bf16.mxu0 %v3099
        %3218 = vmatpush1.bf16.msra.mxu0 %v3098
        %3219 = vmatprep.subr.bf16.mxu0 %v3105
        %3220 = vmatpush1.bf16.msra.mxu0 %v3104
        %3221 = vmatprep.subr.bf16.mxu0 %v3111
        %3222 = vmatpush1.bf16.msra.mxu0 %v3110
        %3223 = vmatprep.subr.bf16.mxu0 %v3117
        %3224 = vmatpush1.bf16.msra.mxu0 %v3116
        %3225 = vmatprep.subr.bf16.mxu0 0
        %3226 = vmatpush1.bf16.msra.mxu0 0
        %3227 = vmatprep.subr.bf16.mxu0 0
        %3228 = vmatpush1.bf16.msra.mxu0 0
        %3229 = vmatprep.subr.bf16.mxu0 0
        %3230 = vmatpush1.bf16.msra.mxu0 0
        %3231 = vmatprep.subr.bf16.mxu0 0
        %3232 = vmatpush1.bf16.msra.mxu0 0
        %3233 = vmatprep.subr.bf16.mxu0 0
        %3234 = vmatpush1.bf16.msra.mxu0 0
        %3235 = vmatprep.subr.bf16.mxu0 0
        %3236 = vmatpush1.bf16.msra.mxu0 0
        %3237 = vmatprep.subr.bf16.mxu0 0
        %3238 = vmatpush1.bf16.msra.mxu0 0
        %3239 = vmatprep.subr.bf16.mxu0 0
        %3240 = vmatpush1.bf16.msra.mxu0 0
        %3241 = vmatprep.mubr.bf16.mxu0 0
        %3242 = vmatmul.mubr.bf16.gmra.mrb[0].mxu0 %v348
        %v3243 = vpop.f32.mrb[0].mxu0
        %v3244 = vadd.f32 0.0, %v3243
        %v3245 = vpop.f32.mrb[0].mxu0
        %v3246 = vadd.f32 0.0, %v3245
        %v3247 = vpop.f32.mrb[0].mxu0
        %v3248 = vpop.f32.mrb[0].mxu0
        %3249 = vdwg.mxu0
        %3250 = vmatprep.subr.bf16.mxu0 %v3077
        %3251 = vmatpush1.bf16.msra.mxu0 %v3076
        %3252 = vmatprep.subr.bf16.mxu0 %v3083
        %3253 = vmatpush1.bf16.msra.mxu0 %v3082
        %3254 = vmatprep.subr.bf16.mxu0 %v3089
        %3255 = vmatpush1.bf16.msra.mxu0 %v3088
        %3256 = vmatprep.subr.bf16.mxu0 %v3095
        %3257 = vmatpush1.bf16.msra.mxu0 %v3094
        %3258 = vmatprep.subr.bf16.mxu0 %v3101
        %3259 = vmatpush1.bf16.msra.mxu0 %v3100
        %3260 = vmatprep.subr.bf16.mxu0 %v3107
        %3261 = vmatpush1.bf16.msra.mxu0 %v3106
        %3262 = vmatprep.subr.bf16.mxu0 %v3113
        %3263 = vmatpush1.bf16.msra.mxu0 %v3112
        %3264 = vmatprep.subr.bf16.mxu0 %v3119
        %3265 = vmatpush1.bf16.msra.mxu0 %v3118
        %3266 = vmatprep.subr.bf16.mxu0 0
        %3267 = vmatpush1.bf16.msra.mxu0 0
        %3268 = vmatprep.subr.bf16.mxu0 0
        %3269 = vmatpush1.bf16.msra.mxu0 0
        %3270 = vmatprep.subr.bf16.mxu0 0
        %3271 = vmatpush1.bf16.msra.mxu0 0
        %3272 = vmatprep.subr.bf16.mxu0 0
        %3273 = vmatpush1.bf16.msra.mxu0 0
        %3274 = vmatprep.subr.bf16.mxu0 0
        %3275 = vmatpush1.bf16.msra.mxu0 0
        %3276 = vmatprep.subr.bf16.mxu0 0
        %3277 = vmatpush1.bf16.msra.mxu0 0
        %3278 = vmatprep.subr.bf16.mxu0 0
        %3279 = vmatpush1.bf16.msra.mxu0 0
        %3280 = vmatprep.subr.bf16.mxu0 0
        %3281 = vmatpush1.bf16.msra.mxu0 0
        %3282 = vmatprep.mubr.bf16.mxu0 0
        %3283 = vmatmul.mubr.bf16.gmra.mrb[0].mxu0 %v348
        %v3284 = vpop.f32.mrb[0].mxu0
        %v3285 = vadd.f32 0.0, %v3284
        %v3286 = vpop.f32.mrb[0].mxu0
        %v3287 = vadd.f32 0.0, %v3286
        %v3288 = vpop.f32.mrb[0].mxu0
        %v3289 = vpop.f32.mrb[0].mxu0
        %3290 = vdwg.mxu0
        %v3339 = vunpack.c.l.b16 %v686
        %v3340 = vunpack.c.h.b16 %v686
        %v3341 = vunpack.c.l.b16 %v687
        %v3342 = vunpack.c.h.b16 %v687
        %v3343 = vunpack.c.l.b16 %v688
        %v3344 = vunpack.c.h.b16 %v688
        %v3345 = vunpack.c.l.b16 %v689
        %v3346 = vunpack.c.h.b16 %v689
        %v3347 = vunpack.c.l.b16 %v690
        %v3348 = vunpack.c.h.b16 %v690
        %v3349 = vunpack.c.l.b16 %v691
        %v3350 = vunpack.c.h.b16 %v691
        %v3351 = vunpack.c.l.b16 %v692
        %v3352 = vunpack.c.h.b16 %v692
        %v3353 = vunpack.c.l.b16 %v693
        %v3354 = vunpack.c.h.b16 %v693
        %v3355 = vunpack.c.l.b16 %v694
        %v3356 = vunpack.c.h.b16 %v694
        %v3357 = vunpack.c.l.b16 %v695
        %v3358 = vunpack.c.h.b16 %v695
        %v3359 = vunpack.c.l.b16 %v696
        %v3360 = vunpack.c.h.b16 %v696
        %v3361 = vunpack.c.l.b16 %v697
        %v3362 = vunpack.c.h.b16 %v697
        %v3363 = vunpack.c.l.b16 %v698
        %v3364 = vunpack.c.h.b16 %v698
        %v3365 = vunpack.c.l.b16 %v699
        %v3366 = vunpack.c.h.b16 %v699
        %v3367 = vunpack.c.l.b16 %v700
        %v3368 = vunpack.c.h.b16 %v700
        %v3369 = vunpack.c.l.b16 %v701
        %v3370 = vunpack.c.h.b16 %v701
        %v3371 = vunpack.c.l.b16 %v702
        %v3372 = vunpack.c.h.b16 %v702
        %v3373 = vunpack.c.l.b16 %v703
        %v3374 = vunpack.c.h.b16 %v703
        %v3375 = vunpack.c.l.b16 %v704
        %v3376 = vunpack.c.h.b16 %v704
        %v3377 = vunpack.c.l.b16 %v705
        %v3378 = vunpack.c.h.b16 %v705
        %v3379 = vunpack.c.l.b16 %v706
        %v3380 = vunpack.c.h.b16 %v706
        %v3381 = vunpack.c.l.b16 %v707
        %v3382 = vunpack.c.h.b16 %v707
        %v3383 = vunpack.c.l.b16 %v708
        %v3384 = vunpack.c.h.b16 %v708
        %v3385 = vunpack.c.l.b16 %v709
        %v3386 = vunpack.c.h.b16 %v709
        %v3387 = vunpack.c.l.b16 %v710
        %v3388 = vunpack.c.h.b16 %v710
        %v3389 = vunpack.c.l.b16 %v711
        %v3390 = vunpack.c.h.b16 %v711
        %v3391 = vunpack.c.l.b16 %v712
        %v3392 = vunpack.c.h.b16 %v712
        %v3393 = vunpack.c.l.b16 %v713
        %v3394 = vunpack.c.h.b16 %v713
        %v3395 = vunpack.c.l.b16 %v714
        %v3396 = vunpack.c.h.b16 %v714
        %v3397 = vunpack.c.l.b16 %v715
        %v3398 = vunpack.c.h.b16 %v715
        %v3399 = vunpack.c.l.b16 %v716
        %v3400 = vunpack.c.h.b16 %v716
        %v3401 = vunpack.c.l.b16 %v717
        %v3402 = vunpack.c.h.b16 %v717
        %v3403 = vunpack.c.l.b16 %v718
        %v3404 = vunpack.c.h.b16 %v718
        %v3405 = vunpack.c.l.b16 %v719
        %v3406 = vunpack.c.h.b16 %v719
        %v3407 = vunpack.c.l.b16 %v720
        %v3408 = vunpack.c.h.b16 %v720
        %v3409 = vunpack.c.l.b16 %v721
        %v3410 = vunpack.c.h.b16 %v721
        %v3411 = vunpack.c.l.b16 %v722
        %v3412 = vunpack.c.h.b16 %v722
        %v3413 = vunpack.c.l.b16 %v723
        %v3414 = vunpack.c.h.b16 %v723
        %v3415 = vunpack.c.l.b16 %v724
        %v3416 = vunpack.c.h.b16 %v724
        %v3417 = vunpack.c.l.b16 %v725
        %v3418 = vunpack.c.h.b16 %v725
        %v3419 = vunpack.c.l.b16 %v726
        %v3420 = vunpack.c.h.b16 %v726
        %v3421 = vunpack.c.l.b16 %v727
        %v3422 = vunpack.c.h.b16 %v727
        %v3423 = vunpack.c.l.b16 %v728
        %v3424 = vunpack.c.h.b16 %v728
        %v3425 = vunpack.c.l.b16 %v729
        %v3426 = vunpack.c.h.b16 %v729
        %v3427 = vunpack.c.l.b16 %v730
        %v3428 = vunpack.c.h.b16 %v730
        %v3429 = vunpack.c.l.b16 %v731
        %v3430 = vunpack.c.h.b16 %v731
        %v3431 = vunpack.c.l.b16 %v732
        %v3432 = vunpack.c.h.b16 %v732
        %v3433 = vunpack.c.l.b16 %v733
        %v3434 = vunpack.c.h.b16 %v733
        %v3435 = vpack.c.b16 %v3345, %v3339
        %v3436 = vpack.c.b16 %v3346, %v3340
        %v3437 = vpack.c.b16 %v3347, %v3341
        %v3438 = vpack.c.b16 %v3348, %v3342
        %v3439 = vpack.c.b16 %v3349, %v3343
        %v3440 = vpack.c.b16 %v3350, %v3344
        %v3441 = vpack.c.b16 %v3357, %v3351
        %v3442 = vpack.c.b16 %v3358, %v3352
        %v3443 = vpack.c.b16 %v3359, %v3353
        %v3444 = vpack.c.b16 %v3360, %v3354
        %v3445 = vpack.c.b16 %v3361, %v3355
        %v3446 = vpack.c.b16 %v3362, %v3356
        %v3447 = vpack.c.b16 %v3369, %v3363
        %v3448 = vpack.c.b16 %v3370, %v3364
        %v3449 = vpack.c.b16 %v3371, %v3365
        %v3450 = vpack.c.b16 %v3372, %v3366
        %v3451 = vpack.c.b16 %v3373, %v3367
        %v3452 = vpack.c.b16 %v3374, %v3368
        %v3453 = vpack.c.b16 %v3381, %v3375
        %v3454 = vpack.c.b16 %v3382, %v3376
        %v3455 = vpack.c.b16 %v3383, %v3377
        %v3456 = vpack.c.b16 %v3384, %v3378
        %v3457 = vpack.c.b16 %v3385, %v3379
        %v3458 = vpack.c.b16 %v3386, %v3380
        %v3459 = vpack.c.b16 %v3393, %v3387
        %v3460 = vpack.c.b16 %v3394, %v3388
        %v3461 = vpack.c.b16 %v3395, %v3389
        %v3462 = vpack.c.b16 %v3396, %v3390
        %v3463 = vpack.c.b16 %v3397, %v3391
        %v3464 = vpack.c.b16 %v3398, %v3392
        %v3465 = vpack.c.b16 %v3405, %v3399
        %v3466 = vpack.c.b16 %v3406, %v3400
        %v3467 = vpack.c.b16 %v3407, %v3401
        %v3468 = vpack.c.b16 %v3408, %v3402
        %v3469 = vpack.c.b16 %v3409, %v3403
        %v3470 = vpack.c.b16 %v3410, %v3404
        %v3471 = vpack.c.b16 %v3417, %v3411
        %v3472 = vpack.c.b16 %v3418, %v3412
        %v3473 = vpack.c.b16 %v3419, %v3413
        %v3474 = vpack.c.b16 %v3420, %v3414
        %v3475 = vpack.c.b16 %v3421, %v3415
        %v3476 = vpack.c.b16 %v3422, %v3416
        %v3477 = vpack.c.b16 %v3429, %v3423
        %v3478 = vpack.c.b16 %v3430, %v3424
        %v3479 = vpack.c.b16 %v3431, %v3425
        %v3480 = vpack.c.b16 %v3432, %v3426
        %v3481 = vpack.c.b16 %v3433, %v3427
        %v3482 = vpack.c.b16 %v3434, %v3428
        %3531 = vmatprep.subr.bf16.mxu0 %v3436
        %3532 = vmatpush1.bf16.msra.mxu0 %v3435
        %3533 = vmatprep.subr.bf16.mxu0 %v3442
        %3534 = vmatpush1.bf16.msra.mxu0 %v3441
        %3535 = vmatprep.subr.bf16.mxu0 %v3448
        %3536 = vmatpush1.bf16.msra.mxu0 %v3447
        %3537 = vmatprep.subr.bf16.mxu0 %v3454
        %3538 = vmatpush1.bf16.msra.mxu0 %v3453
        %3539 = vmatprep.subr.bf16.mxu0 %v3460
        %3540 = vmatpush1.bf16.msra.mxu0 %v3459
        %3541 = vmatprep.subr.bf16.mxu0 %v3466
        %3542 = vmatpush1.bf16.msra.mxu0 %v3465
        %3543 = vmatprep.subr.bf16.mxu0 %v3472
        %3544 = vmatpush1.bf16.msra.mxu0 %v3471
        %3545 = vmatprep.subr.bf16.mxu0 %v3478
        %3546 = vmatpush1.bf16.msra.mxu0 %v3477
        %3547 = vmatprep.subr.bf16.mxu0 0
        %3548 = vmatpush1.bf16.msra.mxu0 0
        %3549 = vmatprep.subr.bf16.mxu0 0
        %3550 = vmatpush1.bf16.msra.mxu0 0
        %3551 = vmatprep.subr.bf16.mxu0 0
        %3552 = vmatpush1.bf16.msra.mxu0 0
        %3553 = vmatprep.subr.bf16.mxu0 0
        %3554 = vmatpush1.bf16.msra.mxu0 0
        %3555 = vmatprep.subr.bf16.mxu0 0
        %3556 = vmatpush1.bf16.msra.mxu0 0
        %3557 = vmatprep.subr.bf16.mxu0 0
        %3558 = vmatpush1.bf16.msra.mxu0 0
        %3559 = vmatprep.subr.bf16.mxu0 0
        %3560 = vmatpush1.bf16.msra.mxu0 0
        %3561 = vmatprep.subr.bf16.mxu0 0
        %3562 = vmatpush1.bf16.msra.mxu0 0
        %3563 = vmatprep.mubr.bf16.mxu0 0
        %3564 = vmatmul.mubr.bf16.gmra.mrb[0].mxu0 %v349
        %v3565 = vpop.f32.mrb[0].mxu0
        %v3566 = vadd.f32 0.0, %v3565
        %v3567 = vpop.f32.mrb[0].mxu0
        %v3568 = vadd.f32 0.0, %v3567
        %v3569 = vpop.f32.mrb[0].mxu0
        %v3570 = vpop.f32.mrb[0].mxu0
        %3571 = vdwg.mxu0
        %3572 = vmatprep.subr.bf16.mxu0 %v3438
        %3573 = vmatpush1.bf16.msra.mxu0 %v3437
        %3574 = vmatprep.subr.bf16.mxu0 %v3444
        %3575 = vmatpush1.bf16.msra.mxu0 %v3443
        %3576 = vmatprep.subr.bf16.mxu0 %v3450
        %3577 = vmatpush1.bf16.msra.mxu0 %v3449
        %3578 = vmatprep.subr.bf16.mxu0 %v3456
        %3579 = vmatpush1.bf16.msra.mxu0 %v3455
        %3580 = vmatprep.subr.bf16.mxu0 %v3462
        %3581 = vmatpush1.bf16.msra.mxu0 %v3461
        %3582 = vmatprep.subr.bf16.mxu0 %v3468
        %3583 = vmatpush1.bf16.msra.mxu0 %v3467
        %3584 = vmatprep.subr.bf16.mxu0 %v3474
        %3585 = vmatpush1.bf16.msra.mxu0 %v3473
        %3586 = vmatprep.subr.bf16.mxu0 %v3480
        %3587 = vmatpush1.bf16.msra.mxu0 %v3479
        %3588 = vmatprep.subr.bf16.mxu0 0
        %3589 = vmatpush1.bf16.msra.mxu0 0
        %3590 = vmatprep.subr.bf16.mxu0 0
        %3591 = vmatpush1.bf16.msra.mxu0 0
        %3592 = vmatprep.subr.bf16.mxu0 0
        %3593 = vmatpush1.bf16.msra.mxu0 0
        %3594 = vmatprep.subr.bf16.mxu0 0
        %3595 = vmatpush1.bf16.msra.mxu0 0
        %3596 = vmatprep.subr.bf16.mxu0 0
        %3597 = vmatpush1.bf16.msra.mxu0 0
        %3598 = vmatprep.subr.bf16.mxu0 0
        %3599 = vmatpush1.bf16.msra.mxu0 0
        %3600 = vmatprep.subr.bf16.mxu0 0
        %3601 = vmatpush1.bf16.msra.mxu0 0
        %3602 = vmatprep.subr.bf16.mxu0 0
        %3603 = vmatpush1.bf16.msra.mxu0 0
        %3604 = vmatprep.mubr.bf16.mxu0 0
        %3605 = vmatmul.mubr.bf16.gmra.mrb[0].mxu0 %v349
        %v3606 = vpop.f32.mrb[0].mxu0
        %v3607 = vadd.f32 0.0, %v3606
        %v3608 = vpop.f32.mrb[0].mxu0
        %v3609 = vadd.f32 0.0, %v3608
        %v3610 = vpop.f32.mrb[0].mxu0
        %v3611 = vpop.f32.mrb[0].mxu0
        %3612 = vdwg.mxu0
        %3613 = vmatprep.subr.bf16.mxu0 %v3440
        %3614 = vmatpush1.bf16.msra.mxu0 %v3439
        %3615 = vmatprep.subr.bf16.mxu0 %v3446
        %3616 = vmatpush1.bf16.msra.mxu0 %v3445
        %3617 = vmatprep.subr.bf16.mxu0 %v3452
        %3618 = vmatpush1.bf16.msra.mxu0 %v3451
        %3619 = vmatprep.subr.bf16.mxu0 %v3458
        %3620 = vmatpush1.bf16.msra.mxu0 %v3457
        %3621 = vmatprep.subr.bf16.mxu0 %v3464
        %3622 = vmatpush1.bf16.msra.mxu0 %v3463
        %3623 = vmatprep.subr.bf16.mxu0 %v3470
        %3624 = vmatpush1.bf16.msra.mxu0 %v3469
        %3625 = vmatprep.subr.bf16.mxu0 %v3476
        %3626 = vmatpush1.bf16.msra.mxu0 %v3475
        %3627 = vmatprep.subr.bf16.mxu0 %v3482
        %3628 = vmatpush1.bf16.msra.mxu0 %v3481
        %3629 = vmatprep.subr.bf16.mxu0 0
        %3630 = vmatpush1.bf16.msra.mxu0 0
        %3631 = vmatprep.subr.bf16.mxu0 0
        %3632 = vmatpush1.bf16.msra.mxu0 0
        %3633 = vmatprep.subr.bf16.mxu0 0
        %3634 = vmatpush1.bf16.msra.mxu0 0
        %3635 = vmatprep.subr.bf16.mxu0 0
        %3636 = vmatpush1.bf16.msra.mxu0 0
        %3637 = vmatprep.subr.bf16.mxu0 0
        %3638 = vmatpush1.bf16.msra.mxu0 0
        %3639 = vmatprep.subr.bf16.mxu0 0
        %3640 = vmatpush1.bf16.msra.mxu0 0
        %3641 = vmatprep.subr.bf16.mxu0 0
        %3642 = vmatpush1.bf16.msra.mxu0 0
        %3643 = vmatprep.subr.bf16.mxu0 0
        %3644 = vmatpush1.bf16.msra.mxu0 0
        %3645 = vmatprep.mubr.bf16.mxu0 0
        %3646 = vmatmul.mubr.bf16.gmra.mrb[0].mxu0 %v349
        %v3647 = vpop.f32.mrb[0].mxu0
        %v3648 = vadd.f32 0.0, %v3647
        %v3649 = vpop.f32.mrb[0].mxu0
        %v3650 = vadd.f32 0.0, %v3649
        %v3651 = vpop.f32.mrb[0].mxu0
        %v3652 = vpop.f32.mrb[0].mxu0
        %3653 = vdwg.mxu0
        %v3702 = vcombine.low %v1025, %v1027
        %v3703 = vcombine.low %v1066, %v1068
        %v3705 = vunpack.c.l.s4 1983009808
        %v3706 = vunpack.c.0.s8 %v3705
        %v3707 = vlaneseq
        %v3708 = vshrl.u32 %v3707, 7
        %v3709 = vsub.s32 %v3706, %v3708
        %v3710 = vrot.slane %v3702, %v3709
        %v3712 = vunpack.c.l.s4 1983009808
        %v3713 = vunpack.c.0.s8 %v3712
        %v3714 = vlaneseq
        %v3715 = vshrl.u32 %v3714, 7
        %v3716 = vsub.s32 %v3713, %v3715
        %v3717 = vrot.slane %v3703, %v3716
        %v3718 = vcombine.low %v3710, %v3717
        %v3719 = vcombine.low %v1107, %v1109
        %v3721 = vunpack.c.l.s4 1983009808
        %v3722 = vunpack.c.0.s8 %v3721
        %v3723 = vlaneseq
        %v3724 = vshrl.u32 %v3723, 7
        %v3725 = vsub.s32 %v3722, %v3724
        %v3726 = vrot.slane %v3719, %v3725
        %v3727 = vcombine.low %v1388, %v1390
        %v3728 = vcombine.low %v1429, %v1431
        %v3730 = vunpack.c.l.s4 1983009808
        %v3731 = vunpack.c.0.s8 %v3730
        %v3732 = vlaneseq
        %v3733 = vshrl.u32 %v3732, 7
        %v3734 = vsub.s32 %v3731, %v3733
        %v3735 = vrot.slane %v3727, %v3734
        %v3737 = vunpack.c.l.s4 1983009808
        %v3738 = vunpack.c.0.s8 %v3737
        %v3739 = vlaneseq
        %v3740 = vshrl.u32 %v3739, 7
        %v3741 = vsub.s32 %v3738, %v3740
        %v3742 = vrot.slane %v3728, %v3741
        %v3743 = vcombine.low %v3735, %v3742
        %v3744 = vcombine.low %v1470, %v1472
        %v3746 = vunpack.c.l.s4 1983009808
        %v3747 = vunpack.c.0.s8 %v3746
        %v3748 = vlaneseq
        %v3749 = vshrl.u32 %v3748, 7
        %v3750 = vsub.s32 %v3747, %v3749
        %v3751 = vrot.slane %v3744, %v3750
        %v3752 = vcombine.low %v1751, %v1753
        %v3753 = vcombine.low %v1792, %v1794
        %v3755 = vunpack.c.l.s4 1983009808
        %v3756 = vunpack.c.0.s8 %v3755
        %v3757 = vlaneseq
        %v3758 = vshrl.u32 %v3757, 7
        %v3759 = vsub.s32 %v3756, %v3758
        %v3760 = vrot.slane %v3752, %v3759
        %v3762 = vunpack.c.l.s4 1983009808
        %v3763 = vunpack.c.0.s8 %v3762
        %v3764 = vlaneseq
        %v3765 = vshrl.u32 %v3764, 7
        %v3766 = vsub.s32 %v3763, %v3765
        %v3767 = vrot.slane %v3753, %v3766
        %v3768 = vcombine.low %v3760, %v3767
        %v3769 = vcombine.low %v1833, %v1835
        %v3771 = vunpack.c.l.s4 1983009808
        %v3772 = vunpack.c.0.s8 %v3771
        %v3773 = vlaneseq
        %v3774 = vshrl.u32 %v3773, 7
        %v3775 = vsub.s32 %v3772, %v3774
        %v3776 = vrot.slane %v3769, %v3775
        %v3777 = vcombine.low %v2114, %v2116
        %v3778 = vcombine.low %v2155, %v2157
        %v3780 = vunpack.c.l.s4 1983009808
        %v3781 = vunpack.c.0.s8 %v3780
        %v3782 = vlaneseq
        %v3783 = vshrl.u32 %v3782, 7
        %v3784 = vsub.s32 %v3781, %v3783
        %v3785 = vrot.slane %v3777, %v3784
        %v3787 = vunpack.c.l.s4 1983009808
        %v3788 = vunpack.c.0.s8 %v3787
        %v3789 = vlaneseq
        %v3790 = vshrl.u32 %v3789, 7
        %v3791 = vsub.s32 %v3788, %v3790
        %v3792 = vrot.slane %v3778, %v3791
        %v3793 = vcombine.low %v3785, %v3792
        %v3794 = vcombine.low %v2196, %v2198
        %v3796 = vunpack.c.l.s4 1983009808
        %v3797 = vunpack.c.0.s8 %v3796
        %v3798 = vlaneseq
        %v3799 = vshrl.u32 %v3798, 7
        %v3800 = vsub.s32 %v3797, %v3799
        %v3801 = vrot.slane %v3794, %v3800
        %v3802 = vcombine.low %v2477, %v2479
        %v3803 = vcombine.low %v2518, %v2520
        %v3805 = vunpack.c.l.s4 1983009808
        %v3806 = vunpack.c.0.s8 %v3805
        %v3807 = vlaneseq
        %v3808 = vshrl.u32 %v3807, 7
        %v3809 = vsub.s32 %v3806, %v3808
        %v3810 = vrot.slane %v3802, %v3809
        %v3812 = vunpack.c.l.s4 1983009808
        %v3813 = vunpack.c.0.s8 %v3812
        %v3814 = vlaneseq
        %v3815 = vshrl.u32 %v3814, 7
        %v3816 = vsub.s32 %v3813, %v3815
        %v3817 = vrot.slane %v3803, %v3816
        %v3818 = vcombine.low %v3810, %v3817
        %v3819 = vcombine.low %v2559, %v2561
        %v3821 = vunpack.c.l.s4 1983009808
        %v3822 = vunpack.c.0.s8 %v3821
        %v3823 = vlaneseq
        %v3824 = vshrl.u32 %v3823, 7
        %v3825 = vsub.s32 %v3822, %v3824
        %v3826 = vrot.slane %v3819, %v3825
        %v3827 = vcombine.low %v2840, %v2842
        %v3828 = vcombine.low %v2881, %v2883
        %v3830 = vunpack.c.l.s4 1983009808
        %v3831 = vunpack.c.0.s8 %v3830
        %v3832 = vlaneseq
        %v3833 = vshrl.u32 %v3832, 7
        %v3834 = vsub.s32 %v3831, %v3833
        %v3835 = vrot.slane %v3827, %v3834
        %v3837 = vunpack.c.l.s4 1983009808
        %v3838 = vunpack.c.0.s8 %v3837
        %v3839 = vlaneseq
        %v3840 = vshrl.u32 %v3839, 7
        %v3841 = vsub.s32 %v3838, %v3840
        %v3842 = vrot.slane %v3828, %v3841
        %v3843 = vcombine.low %v3835, %v3842
        %v3844 = vcombine.low %v2922, %v2924
        %v3846 = vunpack.c.l.s4 1983009808
        %v3847 = vunpack.c.0.s8 %v3846
        %v3848 = vlaneseq
        %v3849 = vshrl.u32 %v3848, 7
        %v3850 = vsub.s32 %v3847, %v3849
        %v3851 = vrot.slane %v3844, %v3850
        %v3852 = vcombine.low %v3203, %v3205
        %v3853 = vcombine.low %v3244, %v3246
        %v3855 = vunpack.c.l.s4 1983009808
        %v3856 = vunpack.c.0.s8 %v3855
        %v3857 = vlaneseq
        %v3858 = vshrl.u32 %v3857, 7
        %v3859 = vsub.s32 %v3856, %v3858
        %v3860 = vrot.slane %v3852, %v3859
        %v3862 = vunpack.c.l.s4 1983009808
        %v3863 = vunpack.c.0.s8 %v3862
        %v3864 = vlaneseq
        %v3865 = vshrl.u32 %v3864, 7
        %v3866 = vsub.s32 %v3863, %v3865
        %v3867 = vrot.slane %v3853, %v3866
        %v3868 = vcombine.low %v3860, %v3867
        %v3869 = vcombine.low %v3285, %v3287
        %v3871 = vunpack.c.l.s4 1983009808
        %v3872 = vunpack.c.0.s8 %v3871
        %v3873 = vlaneseq
        %v3874 = vshrl.u32 %v3873, 7
        %v3875 = vsub.s32 %v3872, %v3874
        %v3876 = vrot.slane %v3869, %v3875
        %v3877 = vcombine.low %v3566, %v3568
        %v3878 = vcombine.low %v3607, %v3609
        %v3880 = vunpack.c.l.s4 1983009808
        %v3881 = vunpack.c.0.s8 %v3880
        %v3882 = vlaneseq
        %v3883 = vshrl.u32 %v3882, 7
        %v3884 = vsub.s32 %v3881, %v3883
        %v3885 = vrot.slane %v3877, %v3884
        %v3887 = vunpack.c.l.s4 1983009808
        %v3888 = vunpack.c.0.s8 %v3887
        %v3889 = vlaneseq
        %v3890 = vshrl.u32 %v3889, 7
        %v3891 = vsub.s32 %v3888, %v3890
        %v3892 = vrot.slane %v3878, %v3891
        %v3893 = vcombine.low %v3885, %v3892
        %v3894 = vcombine.low %v3648, %v3650
        %v3896 = vunpack.c.l.s4 1983009808
        %v3897 = vunpack.c.0.s8 %v3896
        %v3898 = vlaneseq
        %v3899 = vshrl.u32 %v3898, 7
        %v3900 = vsub.s32 %v3897, %v3899
        %v3901 = vrot.slane %v3894, %v3900
        %v3918 = vadd.f32 %v734, %v3718
        %v3919 = vadd.f32 %v735, %v3726
        %v3920 = vadd.f32 %v736, %v3743
        %v3921 = vadd.f32 %v737, %v3751
        %v3922 = vadd.f32 %v738, %v3768
        %v3923 = vadd.f32 %v739, %v3776
        %v3924 = vadd.f32 %v740, %v3793
        %v3925 = vadd.f32 %v741, %v3801
        %v3926 = vadd.f32 %v742, %v3818
        %v3927 = vadd.f32 %v743, %v3826
        %v3928 = vadd.f32 %v744, %v3843
        %v3929 = vadd.f32 %v745, %v3851
        %v3930 = vadd.f32 %v746, %v3868
        %v3931 = vadd.f32 %v747, %v3876
        %v3932 = vadd.f32 %v748, %v3893
        %v3933 = vadd.f32 %v749, %v3901
        %3934 = vst [vmem:[#allocation2] sm:$0xff] %v3918
        %3935 = vst [vmem:[#allocation2 + $0x8] sm:$0xf] %v3919
        %3936 = vst [vmem:[#allocation2 + $0xc] sm:$0xff] %v3920
        %3937 = vst [vmem:[#allocation2 + $0x14] sm:$0xf] %v3921
        %3938 = vst [vmem:[#allocation2 + $0x18] sm:$0xff] %v3922
        %3939 = vst [vmem:[#allocation2 + $0x20] sm:$0xf] %v3923
        %3940 = vst [vmem:[#allocation2 + $0x24] sm:$0xff] %v3924
        %3941 = vst [vmem:[#allocation2 + $0x2c] sm:$0xf] %v3925
        %3942 = vst [vmem:[#allocation2 + $0x30] sm:$0xff] %v3926
        %3943 = vst [vmem:[#allocation2 + $0x38] sm:$0xf] %v3927
        %3944 = vst [vmem:[#allocation2 + $0x3c] sm:$0xff] %v3928
        %3945 = vst [vmem:[#allocation2 + $0x44] sm:$0xf] %v3929
        %3946 = vst [vmem:[#allocation2 + $0x48] sm:$0xff] %v3930
        %3947 = vst [vmem:[#allocation2 + $0x50] sm:$0xf] %v3931
        %3948 = vst [vmem:[#allocation2 + $0x54] sm:$0xff] %v3932
        %3949 = vst [vmem:[#allocation2 + $0x5c] sm:$0xf] %v3933
        %v3950 = vld [vmem:[#allocation3] sm:$0xff]
        %v3951 = vunpack.c.l.bf16 %v342
        %v3952 = vunpack.c.l.bf16 %v343
        %v3953 = vunpack.c.l.bf16 %v344
        %v3954 = vunpack.c.l.bf16 %v345
        %v3955 = vunpack.c.l.bf16 %v346
        %v3956 = vunpack.c.l.bf16 %v347
        %v3957 = vunpack.c.l.bf16 %v348
        %v3958 = vunpack.c.l.bf16 %v349
        %vm3959 = vcmask 1041408
        %v3960 = vsel %vm3959, %v3951, 0.0
        %3961 = vadd.xlane.f32.xlu0 %v3960
        %v3962 = vpop.xlane.xlu0 %3961
        %v3963 = vsel %vm3959, %v3952, 0.0
        %3964 = vadd.xlane.f32.xlu0 %v3963
        %v3965 = vpop.xlane.xlu0 %3964
        %v3966 = vsel %vm3959, %v3953, 0.0
        %3967 = vadd.xlane.f32.xlu0 %v3966
        %v3968 = vpop.xlane.xlu0 %3967
        %v3969 = vsel %vm3959, %v3954, 0.0
        %3970 = vadd.xlane.f32.xlu0 %v3969
        %v3971 = vpop.xlane.xlu0 %3970
        %v3972 = vsel %vm3959, %v3955, 0.0
        %3973 = vadd.xlane.f32.xlu0 %v3972
        %v3974 = vpop.xlane.xlu0 %3973
        %v3975 = vsel %vm3959, %v3956, 0.0
        %3976 = vadd.xlane.f32.xlu0 %v3975
        %v3977 = vpop.xlane.xlu0 %3976
        %v3978 = vsel %vm3959, %v3957, 0.0
        %3979 = vadd.xlane.f32.xlu0 %v3978
        %v3980 = vpop.xlane.xlu0 %3979
        %v3981 = vsel %vm3959, %v3958, 0.0
        %3982 = vadd.xlane.f32.xlu0 %v3981
        %v3983 = vpop.xlane.xlu0 %3982
        %v3992 = vlaneseq
        %v3993 = vand.u32 %v3992, 127
        %v3994 = vlaneseq
        %v3995 = vshrl.u32 %v3994, 7
        %v3996 = vsub.s32 %v3993, %v3995
        %v3997 = vrot.slane %v3962, %v3996
        %v3998 = vlaneseq
        %v3999 = vshrl.u32 %v3998, 7
        %v4000 = vsub.s32 %v3993, %v3999
        %v4001 = vrot.slane %v3965, %v4000
        %v4002 = vlaneseq
        %v4003 = vshrl.u32 %v4002, 7
        %v4004 = vsub.s32 %v3993, %v4003
        %v4005 = vrot.slane %v3968, %v4004
        %v4006 = vlaneseq
        %v4007 = vshrl.u32 %v4006, 7
        %v4008 = vsub.s32 %v3993, %v4007
        %v4009 = vrot.slane %v3971, %v4008
        %v4010 = vlaneseq
        %v4011 = vshrl.u32 %v4010, 7
        %v4012 = vsub.s32 %v3993, %v4011
        %v4013 = vrot.slane %v3974, %v4012
        %v4014 = vlaneseq
        %v4015 = vshrl.u32 %v4014, 7
        %v4016 = vsub.s32 %v3993, %v4015
        %v4017 = vrot.slane %v3977, %v4016
        %v4018 = vlaneseq
        %v4019 = vshrl.u32 %v4018, 7
        %v4020 = vsub.s32 %v3993, %v4019
        %v4021 = vrot.slane %v3980, %v4020
        %v4022 = vlaneseq
        %v4023 = vshrl.u32 %v4022, 7
        %v4024 = vsub.s32 %v3993, %v4023
        %v4025 = vrot.slane %v3983, %v4024
        %vm4026 = vcmask 1041409
        %v4027 = vsel %vm4026, %v4001, %v3997
        %vm4028 = vcmask 1042434
        %v4029 = vsel %vm4028, %v4005, %v4027
        %vm4030 = vcmask 1043459
        %v4031 = vsel %vm4030, %v4009, %v4029
        %vm4032 = vcmask 1044484
        %v4033 = vsel %vm4032, %v4013, %v4031
        %vm4034 = vcmask 1045509
        %v4035 = vsel %vm4034, %v4017, %v4033
        %vm4036 = vcmask 1046534
        %v4037 = vsel %vm4036, %v4021, %v4035
        %vm4038 = vcmask 1047559
        %v4039 = vsel %vm4038, %v4025, %v4037
        %v4041 = vadd.f32 %v3950, %v4039
        %vm4042 = vcmask 15360
        %4043 = vst.msk [vmem:[#allocation3] sm:$0xff] %vm4042, %v4041
        %p4044 = scmp.eq.s32.totalorder %s27, 1
        // Predicated region
        $region53: #{tpu_custom_call.1} parent=35 // pred_check
          %p4045 = pneg %p4044
        $region54: #{tpu_custom_call.1} parent=35 // pred_check_branch
          %4047 = sbr.rel (%p4045) target = $region56
        $region55: #{tpu_custom_call.1} parent=35 // pred_region
          %v4048 = vld [vmem:[#allocation3] sm:$0xff]
          %v4049 = vld [vmem:[#allocation2] sm:$0xff]
          %v4050 = vld [vmem:[#allocation2 + $0x8] sm:$0xf]
          %v4051 = vld [vmem:[#allocation2 + $0xc] sm:$0xff]
          %v4052 = vld [vmem:[#allocation2 + $0x14] sm:$0xf]
          %v4053 = vld [vmem:[#allocation2 + $0x18] sm:$0xff]
          %v4054 = vld [vmem:[#allocation2 + $0x20] sm:$0xf]
          %v4055 = vld [vmem:[#allocation2 + $0x24] sm:$0xff]
          %v4056 = vld [vmem:[#allocation2 + $0x2c] sm:$0xf]
          %v4057 = vld [vmem:[#allocation2 + $0x30] sm:$0xff]
          %v4058 = vld [vmem:[#allocation2 + $0x38] sm:$0xf]
          %v4059 = vld [vmem:[#allocation2 + $0x3c] sm:$0xff]
          %v4060 = vld [vmem:[#allocation2 + $0x44] sm:$0xf]
          %v4061 = vld [vmem:[#allocation2 + $0x48] sm:$0xff]
          %v4062 = vld [vmem:[#allocation2 + $0x50] sm:$0xf]
          %v4063 = vld [vmem:[#allocation2 + $0x54] sm:$0xff]
          %v4064 = vld [vmem:[#allocation2 + $0x5c] sm:$0xf]
          %v4065 = vlaneseq
          %v4066 = vshrl.u32 %v4065, 7
          %v4067 = vsub.s32 0, %v4066
          %v4068 = vrot.slane %v4048, %v4067
          %4070 = vbcast.lane.b32.xlu0 %v4068, 256
          %v4071 = vpop.permute.xlu0 %4070
          %v4072 = vlaneseq
          %v4073 = vshrl.u32 %v4072, 7
          %v4074 = vsub.s32 1, %v4073
          %v4075 = vrot.slane %v4048, %v4074
          %4077 = vbcast.lane.b32.xlu0 %v4075, 256
          %v4078 = vpop.permute.xlu0 %4077
          %v4079 = vlaneseq
          %v4080 = vshrl.u32 %v4079, 7
          %v4081 = vsub.s32 2, %v4080
          %v4082 = vrot.slane %v4048, %v4081
          %4084 = vbcast.lane.b32.xlu0 %v4082, 256
          %v4085 = vpop.permute.xlu0 %4084
          %v4086 = vlaneseq
          %v4087 = vshrl.u32 %v4086, 7
          %v4088 = vsub.s32 3, %v4087
          %v4089 = vrot.slane %v4048, %v4088
          %4091 = vbcast.lane.b32.xlu0 %v4089, 256
          %v4092 = vpop.permute.xlu0 %4091
          %v4093 = vlaneseq
          %v4094 = vshrl.u32 %v4093, 7
          %v4095 = vsub.s32 4, %v4094
          %v4096 = vrot.slane %v4048, %v4095
          %4098 = vbcast.lane.b32.xlu0 %v4096, 256
          %v4099 = vpop.permute.xlu0 %4098
          %v4100 = vlaneseq
          %v4101 = vshrl.u32 %v4100, 7
          %v4102 = vsub.s32 5, %v4101
          %v4103 = vrot.slane %v4048, %v4102
          %4105 = vbcast.lane.b32.xlu0 %v4103, 256
          %v4106 = vpop.permute.xlu0 %4105
          %v4107 = vlaneseq
          %v4108 = vshrl.u32 %v4107, 7
          %v4109 = vsub.s32 6, %v4108
          %v4110 = vrot.slane %v4048, %v4109
          %4112 = vbcast.lane.b32.xlu0 %v4110, 256
          %v4113 = vpop.permute.xlu0 %4112
          %v4114 = vlaneseq
          %v4115 = vshrl.u32 %v4114, 7
          %v4116 = vsub.s32 7, %v4115
          %v4117 = vrot.slane %v4048, %v4116
          %4119 = vbcast.lane.b32.xlu0 %v4117, 256
          %v4120 = vpop.permute.xlu0 %4119
          %v4130 = vunpack.c.l.s4 269488144
          %v4131 = vunpack.c.0.s8 %v4130
          %v4132 = vlaneseq
          %v4133 = vshrl.u32 %v4132, 7
          %v4134 = vsub.s32 %v4131, %v4133
          %v4135 = vrot.slane %v4071, %v4134
          %v4137 = vunpack.c.l.s4 269488144
          %v4138 = vunpack.c.0.s8 %v4137
          %v4139 = vlaneseq
          %v4140 = vshrl.u32 %v4139, 7
          %v4141 = vsub.s32 %v4138, %v4140
          %v4142 = vrot.slane %v4078, %v4141
          %v4144 = vunpack.c.l.s4 269488144
          %v4145 = vunpack.c.0.s8 %v4144
          %v4146 = vlaneseq
          %v4147 = vshrl.u32 %v4146, 7
          %v4148 = vsub.s32 %v4145, %v4147
          %v4149 = vrot.slane %v4085, %v4148
          %v4151 = vunpack.c.l.s4 269488144
          %v4152 = vunpack.c.0.s8 %v4151
          %v4153 = vlaneseq
          %v4154 = vshrl.u32 %v4153, 7
          %v4155 = vsub.s32 %v4152, %v4154
          %v4156 = vrot.slane %v4092, %v4155
          %v4158 = vunpack.c.l.s4 269488144
          %v4159 = vunpack.c.0.s8 %v4158
          %v4160 = vlaneseq
          %v4161 = vshrl.u32 %v4160, 7
          %v4162 = vsub.s32 %v4159, %v4161
          %v4163 = vrot.slane %v4099, %v4162
          %v4165 = vunpack.c.l.s4 269488144
          %v4166 = vunpack.c.0.s8 %v4165
          %v4167 = vlaneseq
          %v4168 = vshrl.u32 %v4167, 7
          %v4169 = vsub.s32 %v4166, %v4168
          %v4170 = vrot.slane %v4106, %v4169
          %v4172 = vunpack.c.l.s4 269488144
          %v4173 = vunpack.c.0.s8 %v4172
          %v4174 = vlaneseq
          %v4175 = vshrl.u32 %v4174, 7
          %v4176 = vsub.s32 %v4173, %v4175
          %v4177 = vrot.slane %v4113, %v4176
          %v4179 = vunpack.c.l.s4 269488144
          %v4180 = vunpack.c.0.s8 %v4179
          %v4181 = vlaneseq
          %v4182 = vshrl.u32 %v4181, 7
          %v4183 = vsub.s32 %v4180, %v4182
          %v4184 = vrot.slane %v4120, %v4183
          %v4193 = vrcp.pop %v4135
          %v4194 = vmul.f32 %v4049, %v4193
          %v4195 = vmul.f32 %v4050, %v4193
          %v4196 = vrcp.pop %v4142
          %v4197 = vmul.f32 %v4051, %v4196
          %v4198 = vmul.f32 %v4052, %v4196
          %v4199 = vrcp.pop %v4149
          %v4200 = vmul.f32 %v4053, %v4199
          %v4201 = vmul.f32 %v4054, %v4199
          %v4202 = vrcp.pop %v4156
          %v4203 = vmul.f32 %v4055, %v4202
          %v4204 = vmul.f32 %v4056, %v4202
          %v4205 = vrcp.pop %v4163
          %v4206 = vmul.f32 %v4057, %v4205
          %v4207 = vmul.f32 %v4058, %v4205
          %v4208 = vrcp.pop %v4170
          %v4209 = vmul.f32 %v4059, %v4208
          %v4210 = vmul.f32 %v4060, %v4208
          %v4211 = vrcp.pop %v4177
          %v4212 = vmul.f32 %v4061, %v4211
          %v4213 = vmul.f32 %v4062, %v4211
          %v4214 = vrcp.pop %v4184
          %v4215 = vmul.f32 %v4063, %v4214
          %v4216 = vmul.f32 %v4064, %v4214
          %v4217 = vld [vmem:[#allocation9] sm:$0xff]
          %v4218 = vld [vmem:[#allocation9 + $0x8] sm:$0xf]
          %v4219 = vmul.f32 %v4194, %v4217
          %v4220 = vmul.f32 %v4195, %v4218
          %v4221 = vmul.f32 %v4197, %v4217
          %v4222 = vmul.f32 %v4198, %v4218
          %v4223 = vmul.f32 %v4200, %v4217
          %v4224 = vmul.f32 %v4201, %v4218
          %v4225 = vmul.f32 %v4203, %v4217
          %v4226 = vmul.f32 %v4204, %v4218
          %v4227 = vmul.f32 %v4206, %v4217
          %v4228 = vmul.f32 %v4207, %v4218
          %v4229 = vmul.f32 %v4209, %v4217
          %v4230 = vmul.f32 %v4210, %v4218
          %v4231 = vmul.f32 %v4212, %v4217
          %v4232 = vmul.f32 %v4213, %v4218
          %v4233 = vmul.f32 %v4215, %v4217
          %v4234 = vmul.f32 %v4216, %v4218
          %v4251 = vcombine.high %v4219, %v4219
          %v4253 = vunpack.c.l.s4 1983009808
          %v4254 = vunpack.c.0.s8 %v4253
          %v4255 = vlaneseq
          %v4256 = vshrl.u32 %v4255, 7
          %v4257 = vsub.s32 %v4254, %v4256
          %v4258 = vrot.slane %v4219, %v4257
          %v4260 = vunpack.c.l.s4 1983009808
          %v4261 = vunpack.c.0.s8 %v4260
          %v4262 = vlaneseq
          %v4263 = vshrl.u32 %v4262, 7
          %v4264 = vsub.s32 %v4261, %v4263
          %v4265 = vrot.slane %v4251, %v4264
          %v4266 = vcombine.high %v4258, %v4258
          %v4267 = vcombine.high %v4265, %v4265
          %v4269 = vunpack.c.l.s4 1983009808
          %v4270 = vunpack.c.0.s8 %v4269
          %v4271 = vlaneseq
          %v4272 = vshrl.u32 %v4271, 7
          %v4273 = vsub.s32 %v4270, %v4272
          %v4274 = vrot.slane %v4220, %v4273
          %v4275 = vcombine.high %v4274, %v4274
          %v4276 = vcombine.high %v4221, %v4221
          %v4278 = vunpack.c.l.s4 1983009808
          %v4279 = vunpack.c.0.s8 %v4278
          %v4280 = vlaneseq
          %v4281 = vshrl.u32 %v4280, 7
          %v4282 = vsub.s32 %v4279, %v4281
          %v4283 = vrot.slane %v4221, %v4282
          %v4285 = vunpack.c.l.s4 1983009808
          %v4286 = vunpack.c.0.s8 %v4285
          %v4287 = vlaneseq
          %v4288 = vshrl.u32 %v4287, 7
          %v4289 = vsub.s32 %v4286, %v4288
          %v4290 = vrot.slane %v4276, %v4289
          %v4291 = vcombine.high %v4283, %v4283
          %v4292 = vcombine.high %v4290, %v4290
          %v4294 = vunpack.c.l.s4 1983009808
          %v4295 = vunpack.c.0.s8 %v4294
          %v4296 = vlaneseq
          %v4297 = vshrl.u32 %v4296, 7
          %v4298 = vsub.s32 %v4295, %v4297
          %v4299 = vrot.slane %v4222, %v4298
          %v4300 = vcombine.high %v4299, %v4299
          %v4301 = vcombine.high %v4223, %v4223
          %v4303 = vunpack.c.l.s4 1983009808
          %v4304 = vunpack.c.0.s8 %v4303
          %v4305 = vlaneseq
          %v4306 = vshrl.u32 %v4305, 7
          %v4307 = vsub.s32 %v4304, %v4306
          %v4308 = vrot.slane %v4223, %v4307
          %v4310 = vunpack.c.l.s4 1983009808
          %v4311 = vunpack.c.0.s8 %v4310
          %v4312 = vlaneseq
          %v4313 = vshrl.u32 %v4312, 7
          %v4314 = vsub.s32 %v4311, %v4313
          %v4315 = vrot.slane %v4301, %v4314
          %v4316 = vcombine.high %v4308, %v4308
          %v4317 = vcombine.high %v4315, %v4315
          %v4319 = vunpack.c.l.s4 1983009808
          %v4320 = vunpack.c.0.s8 %v4319
          %v4321 = vlaneseq
          %v4322 = vshrl.u32 %v4321, 7
          %v4323 = vsub.s32 %v4320, %v4322
          %v4324 = vrot.slane %v4224, %v4323
          %v4325 = vcombine.high %v4324, %v4324
          %v4326 = vcombine.high %v4225, %v4225
          %v4328 = vunpack.c.l.s4 1983009808
          %v4329 = vunpack.c.0.s8 %v4328
          %v4330 = vlaneseq
          %v4331 = vshrl.u32 %v4330, 7
          %v4332 = vsub.s32 %v4329, %v4331
          %v4333 = vrot.slane %v4225, %v4332
          %v4335 = vunpack.c.l.s4 1983009808
          %v4336 = vunpack.c.0.s8 %v4335
          %v4337 = vlaneseq
          %v4338 = vshrl.u32 %v4337, 7
          %v4339 = vsub.s32 %v4336, %v4338
          %v4340 = vrot.slane %v4326, %v4339
          %v4341 = vcombine.high %v4333, %v4333
          %v4342 = vcombine.high %v4340, %v4340
          %v4344 = vunpack.c.l.s4 1983009808
          %v4345 = vunpack.c.0.s8 %v4344
          %v4346 = vlaneseq
          %v4347 = vshrl.u32 %v4346, 7
          %v4348 = vsub.s32 %v4345, %v4347
          %v4349 = vrot.slane %v4226, %v4348
          %v4350 = vcombine.high %v4349, %v4349
          %v4351 = vcombine.high %v4227, %v4227
          %v4353 = vunpack.c.l.s4 1983009808
          %v4354 = vunpack.c.0.s8 %v4353
          %v4355 = vlaneseq
          %v4356 = vshrl.u32 %v4355, 7
          %v4357 = vsub.s32 %v4354, %v4356
          %v4358 = vrot.slane %v4227, %v4357
          %v4360 = vunpack.c.l.s4 1983009808
          %v4361 = vunpack.c.0.s8 %v4360
          %v4362 = vlaneseq
          %v4363 = vshrl.u32 %v4362, 7
          %v4364 = vsub.s32 %v4361, %v4363
          %v4365 = vrot.slane %v4351, %v4364
          %v4366 = vcombine.high %v4358, %v4358
          %v4367 = vcombine.high %v4365, %v4365
          %v4369 = vunpack.c.l.s4 1983009808
          %v4370 = vunpack.c.0.s8 %v4369
          %v4371 = vlaneseq
          %v4372 = vshrl.u32 %v4371, 7
          %v4373 = vsub.s32 %v4370, %v4372
          %v4374 = vrot.slane %v4228, %v4373
          %v4375 = vcombine.high %v4374, %v4374
          %v4376 = vcombine.high %v4229, %v4229
          %v4378 = vunpack.c.l.s4 1983009808
          %v4379 = vunpack.c.0.s8 %v4378
          %v4380 = vlaneseq
          %v4381 = vshrl.u32 %v4380, 7
          %v4382 = vsub.s32 %v4379, %v4381
          %v4383 = vrot.slane %v4229, %v4382
          %v4385 = vunpack.c.l.s4 1983009808
          %v4386 = vunpack.c.0.s8 %v4385
          %v4387 = vlaneseq
          %v4388 = vshrl.u32 %v4387, 7
          %v4389 = vsub.s32 %v4386, %v4388
          %v4390 = vrot.slane %v4376, %v4389
          %v4391 = vcombine.high %v4383, %v4383
          %v4392 = vcombine.high %v4390, %v4390
          %v4394 = vunpack.c.l.s4 1983009808
          %v4395 = vunpack.c.0.s8 %v4394
          %v4396 = vlaneseq
          %v4397 = vshrl.u32 %v4396, 7
          %v4398 = vsub.s32 %v4395, %v4397
          %v4399 = vrot.slane %v4230, %v4398
          %v4400 = vcombine.high %v4399, %v4399
          %v4401 = vcombine.high %v4231, %v4231
          %v4403 = vunpack.c.l.s4 1983009808
          %v4404 = vunpack.c.0.s8 %v4403
          %v4405 = vlaneseq
          %v4406 = vshrl.u32 %v4405, 7
          %v4407 = vsub.s32 %v4404, %v4406
          %v4408 = vrot.slane %v4231, %v4407
          %v4410 = vunpack.c.l.s4 1983009808
          %v4411 = vunpack.c.0.s8 %v4410
          %v4412 = vlaneseq
          %v4413 = vshrl.u32 %v4412, 7
          %v4414 = vsub.s32 %v4411, %v4413
          %v4415 = vrot.slane %v4401, %v4414
          %v4416 = vcombine.high %v4408, %v4408
          %v4417 = vcombine.high %v4415, %v4415
          %v4419 = vunpack.c.l.s4 1983009808
          %v4420 = vunpack.c.0.s8 %v4419
          %v4421 = vlaneseq
          %v4422 = vshrl.u32 %v4421, 7
          %v4423 = vsub.s32 %v4420, %v4422
          %v4424 = vrot.slane %v4232, %v4423
          %v4425 = vcombine.high %v4424, %v4424
          %v4426 = vcombine.high %v4233, %v4233
          %v4428 = vunpack.c.l.s4 1983009808
          %v4429 = vunpack.c.0.s8 %v4428
          %v4430 = vlaneseq
          %v4431 = vshrl.u32 %v4430, 7
          %v4432 = vsub.s32 %v4429, %v4431
          %v4433 = vrot.slane %v4233, %v4432
          %v4435 = vunpack.c.l.s4 1983009808
          %v4436 = vunpack.c.0.s8 %v4435
          %v4437 = vlaneseq
          %v4438 = vshrl.u32 %v4437, 7
          %v4439 = vsub.s32 %v4436, %v4438
          %v4440 = vrot.slane %v4426, %v4439
          %v4441 = vcombine.high %v4433, %v4433
          %v4442 = vcombine.high %v4440, %v4440
          %v4444 = vunpack.c.l.s4 1983009808
          %v4445 = vunpack.c.0.s8 %v4444
          %v4446 = vlaneseq
          %v4447 = vshrl.u32 %v4446, 7
          %v4448 = vsub.s32 %v4445, %v4447
          %v4449 = vrot.slane %v4234, %v4448
          %v4450 = vcombine.high %v4449, %v4449
          %v4499 = vsel %vm3959, %v4258, 0.0
          %v4500 = vsel %vm3959, %v4266, 0.0
          %v4501 = vadd.f32 %v4499, %v4500
          %v4502 = vsel %vm3959, %v4265, 0.0
          %v4503 = vadd.f32 %v4501, %v4502
          %v4504 = vsel %vm3959, %v4267, 0.0
          %v4505 = vadd.f32 %v4503, %v4504
          %v4506 = vsel %vm3959, %v4274, 0.0
          %v4507 = vadd.f32 %v4505, %v4506
          %v4508 = vsel %vm3959, %v4275, 0.0
          %v4509 = vadd.f32 %v4507, %v4508
          %4510 = vadd.xlane.f32.xlu0 %v4509
          %v4511 = vpop.xlane.xlu0 %4510
          %v4512 = vsel %vm3959, %v4283, 0.0
          %v4513 = vsel %vm3959, %v4291, 0.0
          %v4514 = vadd.f32 %v4512, %v4513
          %v4515 = vsel %vm3959, %v4290, 0.0
          %v4516 = vadd.f32 %v4514, %v4515
          %v4517 = vsel %vm3959, %v4292, 0.0
          %v4518 = vadd.f32 %v4516, %v4517
          %v4519 = vsel %vm3959, %v4299, 0.0
          %v4520 = vadd.f32 %v4518, %v4519
          %v4521 = vsel %vm3959, %v4300, 0.0
          %v4522 = vadd.f32 %v4520, %v4521
          %4523 = vadd.xlane.f32.xlu0 %v4522
          %v4524 = vpop.xlane.xlu0 %4523
          %v4525 = vsel %vm3959, %v4308, 0.0
          %v4526 = vsel %vm3959, %v4316, 0.0
          %v4527 = vadd.f32 %v4525, %v4526
          %v4528 = vsel %vm3959, %v4315, 0.0
          %v4529 = vadd.f32 %v4527, %v4528
          %v4530 = vsel %vm3959, %v4317, 0.0
          %v4531 = vadd.f32 %v4529, %v4530
          %v4532 = vsel %vm3959, %v4324, 0.0
          %v4533 = vadd.f32 %v4531, %v4532
          %v4534 = vsel %vm3959, %v4325, 0.0
          %v4535 = vadd.f32 %v4533, %v4534
          %4536 = vadd.xlane.f32.xlu0 %v4535
          %v4537 = vpop.xlane.xlu0 %4536
          %v4538 = vsel %vm3959, %v4333, 0.0
          %v4539 = vsel %vm3959, %v4341, 0.0
          %v4540 = vadd.f32 %v4538, %v4539
          %v4541 = vsel %vm3959, %v4340, 0.0
          %v4542 = vadd.f32 %v4540, %v4541
          %v4543 = vsel %vm3959, %v4342, 0.0
          %v4544 = vadd.f32 %v4542, %v4543
          %v4545 = vsel %vm3959, %v4349, 0.0
          %v4546 = vadd.f32 %v4544, %v4545
          %v4547 = vsel %vm3959, %v4350, 0.0
          %v4548 = vadd.f32 %v4546, %v4547
          %4549 = vadd.xlane.f32.xlu0 %v4548
          %v4550 = vpop.xlane.xlu0 %4549
          %v4551 = vsel %vm3959, %v4358, 0.0
          %v4552 = vsel %vm3959, %v4366, 0.0
          %v4553 = vadd.f32 %v4551, %v4552
          %v4554 = vsel %vm3959, %v4365, 0.0
          %v4555 = vadd.f32 %v4553, %v4554
          %v4556 = vsel %vm3959, %v4367, 0.0
          %v4557 = vadd.f32 %v4555, %v4556
          %v4558 = vsel %vm3959, %v4374, 0.0
          %v4559 = vadd.f32 %v4557, %v4558
          %v4560 = vsel %vm3959, %v4375, 0.0
          %v4561 = vadd.f32 %v4559, %v4560
          %4562 = vadd.xlane.f32.xlu0 %v4561
          %v4563 = vpop.xlane.xlu0 %4562
          %v4564 = vsel %vm3959, %v4383, 0.0
          %v4565 = vsel %vm3959, %v4391, 0.0
          %v4566 = vadd.f32 %v4564, %v4565
          %v4567 = vsel %vm3959, %v4390, 0.0
          %v4568 = vadd.f32 %v4566, %v4567
          %v4569 = vsel %vm3959, %v4392, 0.0
          %v4570 = vadd.f32 %v4568, %v4569
          %v4571 = vsel %vm3959, %v4399, 0.0
          %v4572 = vadd.f32 %v4570, %v4571
          %v4573 = vsel %vm3959, %v4400, 0.0
          %v4574 = vadd.f32 %v4572, %v4573
          %4575 = vadd.xlane.f32.xlu0 %v4574
          %v4576 = vpop.xlane.xlu0 %4575
          %v4577 = vsel %vm3959, %v4408, 0.0
          %v4578 = vsel %vm3959, %v4416, 0.0
          %v4579 = vadd.f32 %v4577, %v4578
          %v4580 = vsel %vm3959, %v4415, 0.0
          %v4581 = vadd.f32 %v4579, %v4580
          %v4582 = vsel %vm3959, %v4417, 0.0
          %v4583 = vadd.f32 %v4581, %v4582
          %v4584 = vsel %vm3959, %v4424, 0.0
          %v4585 = vadd.f32 %v4583, %v4584
          %v4586 = vsel %vm3959, %v4425, 0.0
          %v4587 = vadd.f32 %v4585, %v4586
          %4588 = vadd.xlane.f32.xlu0 %v4587
          %v4589 = vpop.xlane.xlu0 %4588
          %v4590 = vsel %vm3959, %v4433, 0.0
          %v4591 = vsel %vm3959, %v4441, 0.0
          %v4592 = vadd.f32 %v4590, %v4591
          %v4593 = vsel %vm3959, %v4440, 0.0
          %v4594 = vadd.f32 %v4592, %v4593
          %v4595 = vsel %vm3959, %v4442, 0.0
          %v4596 = vadd.f32 %v4594, %v4595
          %v4597 = vsel %vm3959, %v4449, 0.0
          %v4598 = vadd.f32 %v4596, %v4597
          %v4599 = vsel %vm3959, %v4450, 0.0
          %v4600 = vadd.f32 %v4598, %v4599
          %4601 = vadd.xlane.f32.xlu0 %v4600
          %v4602 = vpop.xlane.xlu0 %4601
          %v4611 = vlaneseq
          %v4612 = vshrl.u32 %v4611, 7
          %v4613 = vsub.s32 %v3993, %v4612
          %v4614 = vrot.slane %v4511, %v4613
          %v4615 = vlaneseq
          %v4616 = vshrl.u32 %v4615, 7
          %v4617 = vsub.s32 %v3993, %v4616
          %v4618 = vrot.slane %v4524, %v4617
          %v4619 = vlaneseq
          %v4620 = vshrl.u32 %v4619, 7
          %v4621 = vsub.s32 %v3993, %v4620
          %v4622 = vrot.slane %v4537, %v4621
          %v4623 = vlaneseq
          %v4624 = vshrl.u32 %v4623, 7
          %v4625 = vsub.s32 %v3993, %v4624
          %v4626 = vrot.slane %v4550, %v4625
          %v4627 = vlaneseq
          %v4628 = vshrl.u32 %v4627, 7
          %v4629 = vsub.s32 %v3993, %v4628
          %v4630 = vrot.slane %v4563, %v4629
          %v4631 = vlaneseq
          %v4632 = vshrl.u32 %v4631, 7
          %v4633 = vsub.s32 %v3993, %v4632
          %v4634 = vrot.slane %v4576, %v4633
          %v4635 = vlaneseq
          %v4636 = vshrl.u32 %v4635, 7
          %v4637 = vsub.s32 %v3993, %v4636
          %v4638 = vrot.slane %v4589, %v4637
          %v4639 = vlaneseq
          %v4640 = vshrl.u32 %v4639, 7
          %v4641 = vsub.s32 %v3993, %v4640
          %v4642 = vrot.slane %v4602, %v4641
          %v4643 = vsel %vm4026, %v4618, %v4614
          %v4644 = vsel %vm4028, %v4622, %v4643
          %v4645 = vsel %vm4030, %v4626, %v4644
          %v4646 = vsel %vm4032, %v4630, %v4645
          %v4647 = vsel %vm4034, %v4634, %v4646
          %v4648 = vsel %vm4036, %v4638, %v4647
          %v4649 = vsel %vm4038, %v4642, %v4648
          %v4651 = vsel %vm4042, %v4649, 0.0
          %4652 = vadd.xlane.f32.xlu0 %v4651
          %v4653 = vpop.xlane.xlu0 %4652
          %s4654 = sld [smem:[#allocation4]]
          %v4655 = vstv %s4654
          %v4656 = vadd.f32 %v4653, %v4655
          %v4657 = vxor.u32 %v4656, 2147483648
          %v4658 = vmul.f32 %v4657, 1.442695
          %v4659 = vpow.pop %v4658
          %v4660 = vadd.f32 %v4659, 1.0
          %v4661 = vrcp.pop %v4660
          %v4662 = vmul.f32 1.0, %v4661
          %vm4663 = vcmask 7168
          %4664 = vst.msk [vmem:[%s318] sm:$0xff] %vm4663, %v4662
        $region56: #{tpu_custom_call.1} parent=35 // pred_fallthru
          _
        %p4665 = scmp.lt.s32.totalorder %s26, 1
        %s4666 = scalar_select %p4665, %s26, 1
        %s4667 = smul.addr %s4666, 8
        %s4668 = scalar_lea.vmem %s4, %s4667
        // Predicated region
        $region57: #{tpu_custom_call.1} parent=35 // pred_check
          %p4669 = pneg %p150
        $region58: #{tpu_custom_call.1} parent=35 // pred_check_branch
          %4671 = sbr.rel (%p4669) target = $region60
        $region59: #{tpu_custom_call.1} parent=35 // pred_region
          _
        $region60: #{tpu_custom_call.1} parent=35 // pred_fallthru
          _
      $region36: #{tpu_custom_call.1} parent=5 // pred_fallthru
        _
      %p4672 = scmp.le.s32.totalorder 2, %s17
      // Predicated region
      $region61: #{tpu_custom_call.1} parent=5 // pred_check
        %p4673 = pneg %p4672
      $region62: #{tpu_custom_call.1} parent=5 // pred_check_branch
        %4675 = sbr.rel (%p4673) target = $region64
      $region63: #{tpu_custom_call.1} parent=5 // pred_region
        %s4676 = ssub.s32 %s17, 2
        // Predicated region
        $region65: #{tpu_custom_call.1} parent=63 // pred_check
          %p4677 = pneg %p156
        $region66: #{tpu_custom_call.1} parent=63 // pred_check_branch
          %4679 = sbr.rel (%p4677) target = $region68
        $region67: #{tpu_custom_call.1} parent=63 // pred_region
          %p4680 = scmp.lt.s32.totalorder %s28, 1
          %s4681 = scalar_select %p4680, %s28, 1
          %s4682 = smul.addr %s4681, 8
          %s4683 = scalar_lea.vmem %s4, %s4682
        $region68: #{tpu_custom_call.1} parent=63 // pred_fallthru
          _
      $region64: #{tpu_custom_call.1} parent=5 // pred_fallthru
        _
    $region6: #{tpu_custom_call.1} parent=1 // loop_footer
      %s21 = sadd.s32 1, %s17
    $region7: #{tpu_custom_call.1} parent=1 // loop_footer_branch
      %16 = sbr.rel target = $region3
    $region8: #{tpu_custom_call.1} parent=1 // loop_exit
      _
    %4684 = vsyncpa [#allocation6], 1
    %s4685 = scalar_lea.sflag [#allocation6], 1
    %4686 = vsyncpa %s4685, 1
    %4687 = vsyncpa [#allocation8], 1
    %s4688 = scalar_lea.sflag [#allocation8], 1
    %4689 = vsyncpa %s4688, 1

</llo_original>
